<compile_context>
chip_gen: v7x
topology: tpu7x:2x2x1
jax: 0.10.0
libtpu: 0.0.40
codegen_flags: <defaults>
</compile_context>

<pallas_src>
import jax
import jax.numpy as jnp
import numpy as np
from jax.experimental import pallas as pl
from jax.experimental.pallas import tpu as pltpu


def _round_up(x, m):
    return ((x + m - 1) // m) * m


# ----------------------------------------------------------------------------
# Fused level kernel: conv3x3+LReLU -> conv3x3+LReLU -> (optional) AvgPool2d(2)
# One batch element per grid step; everything between HBM reads/writes in VMEM.
# ----------------------------------------------------------------------------
def _make_level_kernel(H, W, Wp, Cm, Cout, emit_pool, Ho, Wo, Wpo):
    M = H * Wp                     # flat output rows (W..Wp-1 are junk columns)

    def conv3x3(load_tap, w_ref, bias_f32):
        # im2col: 9 contiguous (M, Cin) tap slices -> one big-K MXU matmul.
        taps = [load_tap(dy * Wp + dx) for dy in range(3) for dx in range(3)]
        lhs = jnp.concatenate(taps, axis=1)                      # (M, 9*Cin)
        acc = jnp.dot(lhs, w_ref[...],
                      preferred_element_type=jnp.float32) + bias_f32
        return jnp.where(acc >= 0.0, acc, 0.2 * acc)             # LeakyReLU(0.2)

    def kernel(*refs):
        if emit_pool:
            (x_ref, w1_ref, b1_ref, w2_ref, b2_ref, g_ref,
             feat_ref, pool_ref, pad2) = refs
        else:
            (x_ref, w1_ref, b1_ref, w2_ref, b2_ref,
             feat_ref, pad2) = refs

        # ---- conv1 + LeakyReLU straight off the pre-padded flat input ----
        h1 = conv3x3(lambda off: x_ref[0, pl.ds(off, M), :], w1_ref, b1_ref[...])

        # ---- rebuild 'same' zero padding for conv2 with 3 bulk stores ----
        # Junk columns (w >= W) are masked to zero; stored at offset Wp+1 they
        # land exactly on the right/left zero borders of the padded rows.
        col = jax.lax.broadcasted_iota(jnp.int32, (M, 1), 0) % Wp
        h1m = jnp.where(col < W, h1, 0.0).astype(pad2.dtype)
        zrows = jnp.zeros((2 * Wp, Cm), pad2.dtype)
        pad2[pl.ds(0, 2 * Wp), :] = zrows                        # top border
        pad2[pl.ds((H + 1) * Wp, 2 * Wp), :] = zrows             # bottom border + tail
        pad2[pl.ds(Wp + 1, M), :] = h1m                          # interior, one store

        # ---- conv2 + LeakyReLU ----
        y = conv3x3(lambda off: pad2[pl.ds(off, M), :], w2_ref, b2_ref[...])

        # ---- level output: one flat bulk store (junk cols stripped on host) ----
        feat_ref[0, :, :] = y.astype(feat_ref.dtype)

        # ---- fused AvgPool2d(2): one matmul emits the NEXT level's
        #      pre-padded flat input (zero borders built into g_ref) ----
        if emit_pool:
            pooled = jnp.dot(g_ref[...], y.astype(g_ref.dtype),
                             preferred_element_type=jnp.float32)  # (Ho*Wpo, Cout)
            pool_ref[0, pl.ds(0, Wpo), :] = jnp.zeros((Wpo, Cout), pool_ref.dtype)
            pool_ref[0, pl.ds(Wpo, Ho * Wpo), :] = pooled.astype(pool_ref.dtype)
            pool_ref[0, pl.ds((Ho + 1) * Wpo, 2 * Wpo), :] = jnp.zeros(
                (2 * Wpo, Cout), pool_ref.dtype)

    return kernel


def _pool_matrix(H, W, Wp, dtype):
    """(Ho*Wpo, H*Wp) matrix doing AvgPool2d(2) + re-padding in one matmul."""
    Ho, Wo = H // 2, W // 2
    Wpo = _round_up(Wo + 2, 8)
    i = np.arange(Ho * Wpo)
    ho, p = i // Wpo, i % Wpo                  # output padded row block coords
    j = np.arange(H * Wp)
    h, w = j // Wp, j % Wp                     # input flat coords
    sel = ((p[:, None] >= 1) & (p[:, None] <= Wo)
           & (h[None, :] // 2 == ho[:, None])
           & (w[None, :] // 2 == (p[:, None] - 1))
           & (w[None, :] < W))
    return jnp.asarray(np.where(sel, 0.25, 0.0), dtype=dtype)


def pyramid_level(x_flat, H, W, w1, b1, w2, b2, *, emit_pool,
                  compute_dtype=jnp.bfloat16, out_dtype=jnp.float32):
    """One fused pyramid level.

    x_flat: (B, (H+3)*Wp, Cin) pre-padded flat image, Wp = round_up(W+2, 8).
    Returns a tuple: (feat_flat,) or (feat_flat, pool_flat) where
      feat_flat: (B, H*Wp, Cout)           -- junk cols W..Wp-1 stripped on host
      pool_flat: (B, (Ho+3)*Wpo, Cout)     -- next level's pre-padded flat input
    """
    B, FLAT, Cin = x_flat.shape
    Wp = _round_up(W + 2, 8)
    M = H * Wp
    assert FLAT == (H + 3) * Wp
    assert w1.shape[:3] == (3, 3, Cin), (w1.shape, Cin)
    Cm, Cout = w1.shape[-1], w2.shape[-1]

    # Host-side hoists: im2col-reshaped weights, f32 biases, pooling matrix.
    w1r = w1.reshape(9 * Cin, Cm).astype(compute_dtype)
    w2r = w2.reshape(9 * Cm, Cout).astype(compute_dtype)
    b1r = b1.reshape(1, Cm).astype(jnp.float32)
    b2r = b2.reshape(1, Cout).astype(jnp.float32)

    in_specs = [
        pl.BlockSpec((1, FLAT, Cin), lambda i: (i, 0, 0)),
        pl.BlockSpec((9 * Cin, Cm), lambda i: (0, 0)),
        pl.BlockSpec((1, Cm), lambda i: (0, 0)),
        pl.BlockSpec((9 * Cm, Cout), lambda i: (0, 0)),
        pl.BlockSpec((1, Cout), lambda i: (0, 0)),
    ]
    args = [x_flat.astype(compute_dtype), w1r, b1r, w2r, b2r]

    out_shape = [jax.ShapeDtypeStruct((B, M, Cout), out_dtype)]
    out_specs = [pl.BlockSpec((1, M, Cout), lambda i: (i, 0, 0))]

    Ho = Wo = Wpo = 0
    if emit_pool:
        Ho, Wo = H // 2, W // 2
        Wpo = _round_up(Wo + 2, 8)
        g = _pool_matrix(H, W, Wp, compute_dtype)           # (Ho*Wpo, M)
        in_specs.append(pl.BlockSpec((Ho * Wpo, M), lambda i: (0, 0)))
        args.append(g)
        out_shape.append(jax.ShapeDtypeStruct((B, (Ho + 3) * Wpo, Cout),
                                              compute_dtype))
        out_specs.append(pl.BlockSpec((1, (Ho + 3) * Wpo, Cout),
                                      lambda i: (i, 0, 0)))

    outs = pl.pallas_call(
        _make_level_kernel(H, W, Wp, Cm, Cout, emit_pool, Ho, Wo, Wpo),
        out_shape=tuple(out_shape),
        grid=(B,),
        in_specs=in_specs,
        out_specs=tuple(out_specs),
        scratch_shapes=[pltpu.VMEM(((H + 3) * Wp, Cm), compute_dtype)],
        compiler_params=pltpu.CompilerParams(
            dimension_semantics=("parallel",),
            vmem_limit_bytes=32 * 1024 * 1024),
    )(*args)
    return outs


# ----------------------------------------------------------------------------
# FeaturePyramidExtractor.forward
# ----------------------------------------------------------------------------
def feature_pyramid_extractor(x, params, number_of_levels=None,
                              compute_dtype=jnp.bfloat16):
    """x: (B, H, W, C) NHWC.  params[l] = (w1, b1, w2, b2) with HWIO weights.
    Level 0 = intro block; level l>0 consumes the AvgPool2d(2) of level l-1's
    output, which is computed (and re-padded) inside level l-1's kernel."""
    n_max = len(params)
    n = n_max if number_of_levels is None else number_of_levels
    assert n <= n_max, "requested more levels than this extractor supports"

    B, H, W, Cin = x.shape
    out_dtype = x.dtype

    # Level-0 host prep, done once: pad channels to a multiple of 8, add the
    # 'same' zero border (+ junk row/cols up to the 8-aligned stride), flatten.
    Cin_p = _round_up(Cin, 8)
    Wp0 = _round_up(W + 2, 8)
    xp = jnp.pad(x, ((0, 0), (1, 2), (1, Wp0 - W - 1), (0, Cin_p - Cin)))
    x_flat = xp.reshape(B, (H + 3) * Wp0, Cin_p).astype(compute_dtype)

    feats = []
    h, w = H, W
    for lvl in range(n):
        w1, b1, w2, b2 = params[lvl]
        if lvl == 0 and Cin_p != Cin:
            w1 = jnp.pad(w1, ((0, 0), (0, 0), (0, Cin_p - Cin), (0, 0)))
        emit_pool = (lvl + 1) < n            # last level's pooled map is unused
        outs = pyramid_level(x_flat, h, w, w1, b1, w2, b2,
                             emit_pool=emit_pool,
                             compute_dtype=compute_dtype,
                             out_dtype=out_dtype)
        wp = _round_up(w + 2, 8)
        cout = w2.shape[-1]
        feats.append(outs[0].reshape(B, h, wp, cout)[:, :, :w, :])
        if emit_pool:
            x_flat = outs[1]                 # already padded + flat for level l+1
            h, w = h // 2, w // 2
    return feats


# ----------------------------------------------------------------------------
# Pure-JAX reference (for correctness check)
# ----------------------------------------------------------------------------
def _ref_conv(x, w, b):
    y = jax.lax.conv_general_dilated(
        x, w, window_strides=(1, 1), padding="SAME",
        dimension_numbers=("NHWC", "HWIO", "NHWC"))
    y = y + b.reshape(1, 1, 1, -1)
    return jnp.where(y >= 0.0, y, 0.2 * y)


def _ref_pool(x):
    B, H, W, C = x.shape
    return x.reshape(B, H // 2, 2, W // 2, 2, C).mean(axis=(2, 4))


def ref_forward(x, params):
    feats = []
    for lvl, (w1, b1, w2, b2) in enumerate(params):
        if lvl > 0:
            x = _ref_pool(x)
        x = _ref_conv(x, w1, b1)
        x = _ref_conv(x, w2, b2)
        feats.append(x)
    return feats


if __name__ == "__main__":
    key = jax.random.PRNGKey(0)
    k_in, k_par = jax.random.split(key)

    # Small shapes: batch=2, in_channels=3, 16x16 spatial, multiplier=16, 3 levels.
    B, IN_CH, H, W = 2, 3, 16, 16
    MULT, LEVELS = 16, 3

    x = jax.random.normal(k_in, (B, H, W, IN_CH), jnp.float32)

    params = []
    cin = IN_CH
    for lvl in range(LEVELS):
        cout = MULT << lvl
        k_par, k1, k2, k3, k4 = jax.random.split(k_par, 5)
        params.append((
            0.05 * jax.random.normal(k1, (3, 3, cin, cout), jnp.float32),
            0.05 * jax.random.normal(k2, (cout,), jnp.float32),
            0.05 * jax.random.normal(k3, (3, 3, cout, cout), jnp.float32),
            0.05 * jax.random.normal(k4, (cout,), jnp.float32),
        ))
        cin = cout

    ref = ref_forward(x, params)

    # f32 MXU path: exact-semantics check.
    got32 = feature_pyramid_extractor(x, params, compute_dtype=jnp.float32)
    got32 = [jax.block_until_ready(f) for f in got32]
    for lvl, (g, r) in enumerate(zip(got32, ref)):
        assert g.shape == r.shape, (lvl, g.shape, r.shape)
        np.testing.assert_allclose(np.asarray(g), np.asarray(r),
                                   rtol=2e-3, atol=2e-3)

    # Default bf16 MXU operands (v6e/v7x fast path), f32 accumulation.
    got16 = feature_pyramid_extractor(x, params)
    got16 = [jax.block_until_ready(f) for f in got16]
    for lvl, (g, r) in enumerate(zip(got16, ref)):
        assert g.shape == r.shape, (lvl, g.shape, r.shape)
        np.testing.assert_allclose(np.asarray(g), np.asarray(r),
                                   rtol=3e-2, atol=3e-2)

    print("KERNEL_OK")
</pallas_src>

<mosaic_0001>
module attributes {stable_mosaic.version = 11 : i64} {
  func.func @kernel(%arg0: i32, %arg1: memref<1x456x8xf32, #tpu.memory_space<vmem>>, %arg2: memref<72x16xf32, #tpu.memory_space<vmem>>, %arg3: memref<1x16xf32, #tpu.memory_space<vmem>>, %arg4: memref<144x16xf32, #tpu.memory_space<vmem>>, %arg5: memref<1x16xf32, #tpu.memory_space<vmem>>, %arg6: memref<128x384xf32, #tpu.memory_space<vmem>>, %arg7: memref<1x384x16xf32, #tpu.memory_space<vmem>>, %arg8: memref<1x176x16xf32, #tpu.memory_space<vmem>>, %arg9: memref<456x16xf32, #tpu.memory_space<vmem>>) attributes {dimension_semantics = [#tpu.dimension_semantics<parallel>], iteration_bounds = array<i64: 2>, scalar_prefetch = 0 : i64, scratch_operands = 1 : i64, tpu.core_type = #tpu.core_type<tc>, window_params = [{transform_indices = @transform_0, window_bounds = array<i64: 1, 456, 8>}, {pipeline_mode = #tpu.pipeline_mode<synchronous>, transform_indices = @transform_1, window_bounds = array<i64: 72, 16>}, {pipeline_mode = #tpu.pipeline_mode<synchronous>, transform_indices = @transform_2, window_bounds = array<i64: 1, 16>}, {pipeline_mode = #tpu.pipeline_mode<synchronous>, transform_indices = @transform_3, window_bounds = array<i64: 144, 16>}, {pipeline_mode = #tpu.pipeline_mode<synchronous>, transform_indices = @transform_4, window_bounds = array<i64: 1, 16>}, {pipeline_mode = #tpu.pipeline_mode<synchronous>, transform_indices = @transform_5, window_bounds = array<i64: 128, 384>}, {transform_indices = @transform_6, window_bounds = array<i64: 1, 384, 16>}, {transform_indices = @transform_7, window_bounds = array<i64: 1, 176, 16>}]} {
    %c0 = arith.constant 0 : index
    %c0_0 = arith.constant 0 : index
    %0 = vector.load %arg3[%c0, %c0_0] : memref<1x16xf32, #tpu.memory_space<vmem>>, vector<1x16xf32>
    %c0_1 = arith.constant 0 : index
    %c0_2 = arith.constant 0 : index
    %c0_3 = arith.constant 0 : index
    %1 = vector.load %arg1[%c0_1, %c0_2, %c0_3] : memref<1x456x8xf32, #tpu.memory_space<vmem>>, vector<1x384x8xf32>
    %2 = vector.shape_cast %1 : vector<1x384x8xf32> to vector<384x8xf32>
    %c0_4 = arith.constant 0 : index
    %c1 = arith.constant 1 : index
    %c0_5 = arith.constant 0 : index
    %3 = vector.load %arg1[%c0_4, %c1, %c0_5] : memref<1x456x8xf32, #tpu.memory_space<vmem>>, vector<1x384x8xf32>
    %4 = vector.shape_cast %3 : vector<1x384x8xf32> to vector<384x8xf32>
    %c0_6 = arith.constant 0 : index
    %c2 = arith.constant 2 : index
    %c0_7 = arith.constant 0 : index
    %5 = vector.load %arg1[%c0_6, %c2, %c0_7] : memref<1x456x8xf32, #tpu.memory_space<vmem>>, vector<1x384x8xf32>
    %6 = vector.shape_cast %5 : vector<1x384x8xf32> to vector<384x8xf32>
    %c0_8 = arith.constant 0 : index
    %c24 = arith.constant 24 : index
    %c0_9 = arith.constant 0 : index
    %7 = vector.load %arg1[%c0_8, %c24, %c0_9] : memref<1x456x8xf32, #tpu.memory_space<vmem>>, vector<1x384x8xf32>
    %8 = vector.shape_cast %7 : vector<1x384x8xf32> to vector<384x8xf32>
    %c0_10 = arith.constant 0 : index
    %c25 = arith.constant 25 : index
    %c0_11 = arith.constant 0 : index
    %9 = vector.load %arg1[%c0_10, %c25, %c0_11] : memref<1x456x8xf32, #tpu.memory_space<vmem>>, vector<1x384x8xf32>
    %10 = vector.shape_cast %9 : vector<1x384x8xf32> to vector<384x8xf32>
    %c0_12 = arith.constant 0 : index
    %c26 = arith.constant 26 : index
    %c0_13 = arith.constant 0 : index
    %11 = vector.load %arg1[%c0_12, %c26, %c0_13] : memref<1x456x8xf32, #tpu.memory_space<vmem>>, vector<1x384x8xf32>
    %12 = vector.shape_cast %11 : vector<1x384x8xf32> to vector<384x8xf32>
    %c0_14 = arith.constant 0 : index
    %c48 = arith.constant 48 : index
    %c0_15 = arith.constant 0 : index
    %13 = vector.load %arg1[%c0_14, %c48, %c0_15] : memref<1x456x8xf32, #tpu.memory_space<vmem>>, vector<1x384x8xf32>
    %14 = vector.shape_cast %13 : vector<1x384x8xf32> to vector<384x8xf32>
    %c0_16 = arith.constant 0 : index
    %c49 = arith.constant 49 : index
    %c0_17 = arith.constant 0 : index
    %15 = vector.load %arg1[%c0_16, %c49, %c0_17] : memref<1x456x8xf32, #tpu.memory_space<vmem>>, vector<1x384x8xf32>
    %16 = vector.shape_cast %15 : vector<1x384x8xf32> to vector<384x8xf32>
    %c0_18 = arith.constant 0 : index
    %c50 = arith.constant 50 : index
    %c0_19 = arith.constant 0 : index
    %17 = vector.load %arg1[%c0_18, %c50, %c0_19] : memref<1x456x8xf32, #tpu.memory_space<vmem>>, vector<1x384x8xf32>
    %18 = vector.shape_cast %17 : vector<1x384x8xf32> to vector<384x8xf32>
    %19 = tpu.concatenate %2, %4, %6, %8, %10, %12, %14, %16, %18 in 1 : vector<384x8xf32>, vector<384x8xf32>, vector<384x8xf32>, vector<384x8xf32>, vector<384x8xf32>, vector<384x8xf32>, vector<384x8xf32>, vector<384x8xf32>, vector<384x8xf32> -> vector<384x72xf32>
    %c0_20 = arith.constant 0 : index
    %c0_21 = arith.constant 0 : index
    %20 = vector.load %arg2[%c0_20, %c0_21] : memref<72x16xf32, #tpu.memory_space<vmem>>, vector<72x16xf32>
    %cst = arith.constant dense<0.000000e+00> : vector<384x16xf32>
    %21 = tpu.matmul %19, %20, %cst {dimension_numbers = #tpu.dot_dimension_numbers<[1], [0], [0], [1], [0, 0, 1, 1], [], []>} : vector<384x72xf32>, vector<72x16xf32>, vector<384x16xf32> -> vector<384x16xf32>
    %22 = vector.broadcast %0 : vector<1x16xf32> to vector<384x16xf32>
    %23 = arith.addf %21, %22 : vector<384x16xf32>
    %cst_22 = arith.constant 0.000000e+00 : f32
    %24 = vector.broadcast %cst_22 : f32 to vector<384x16xf32>
    %25 = arith.cmpf oge, %23, %24 : vector<384x16xf32>
    %cst_23 = arith.constant 2.000000e-01 : f32
    %26 = vector.broadcast %cst_23 : f32 to vector<384x16xf32>
    %27 = arith.mulf %26, %23 : vector<384x16xf32>
    %28 = arith.select %25, %23, %27 : vector<384x16xi1>, vector<384x16xf32>
    %29 = tpu.iota {dimensions = array<i32: 0>} : vector<384x1xi32>
    %c24_i32 = arith.constant 24 : i32
    %c0_i32 = arith.constant 0 : i32
    %30 = arith.cmpi eq, %c24_i32, %c0_i32 : i32
    %c1_i32 = arith.constant 1 : i32
    %31 = arith.select %30, %c1_i32, %c24_i32 : i32
    %32 = vector.broadcast %31 : i32 to vector<384x1xi32>
    %33 = arith.remsi %29, %32 : vector<384x1xi32>
    %c0_i32_24 = arith.constant 0 : i32
    %34 = vector.broadcast %c0_i32_24 : i32 to vector<384x1xi32>
    %35 = arith.cmpi ne, %33, %34 : vector<384x1xi32>
    %c0_i32_25 = arith.constant 0 : i32
    %36 = vector.broadcast %c0_i32_25 : i32 to vector<384x1xi32>
    %37 = arith.cmpi slt, %33, %36 : vector<384x1xi32>
    %c0_i32_26 = arith.constant 0 : i32
    %38 = arith.cmpi slt, %31, %c0_i32_26 : i32
    %39 = vector.broadcast %38 : i1 to vector<384x1xi1>
    %40 = vector.broadcast %39 : vector<384x1xi1> to vector<384x1xi1>
    %41 = arith.xori %37, %40 : vector<384x1xi1>
    %42 = arith.andi %41, %35 : vector<384x1xi1>
    %43 = vector.broadcast %31 : i32 to vector<384x1xi32>
    %44 = arith.addi %33, %43 : vector<384x1xi32>
    %45 = arith.select %42, %44, %33 : vector<384x1xi1>, vector<384x1xi32>
    %c16_i32 = arith.constant 16 : i32
    %46 = vector.broadcast %c16_i32 : i32 to vector<384x1xi32>
    %47 = arith.cmpi slt, %45, %46 : vector<384x1xi32>
    %cst_27 = arith.constant 0.000000e+00 : f32
    %48 = vector.shape_cast %47 : vector<384x1xi1> to vector<384x1xi1>
    %49 = vector.broadcast %48 : vector<384x1xi1> to vector<384x16xi1>
    %50 = vector.broadcast %cst_27 : f32 to vector<384x16xf32>
    %51 = arith.select %49, %28, %50 : vector<384x16xi1>, vector<384x16xf32>
    %cst_28 = arith.constant 0.000000e+00 : f32
    %52 = vector.broadcast %cst_28 : f32 to vector<48x16xf32>
    %c0_29 = arith.constant 0 : index
    %c0_30 = arith.constant 0 : index
    %53 = vector.load %arg9[%c0_29, %c0_30] : memref<456x16xf32, #tpu.memory_space<vmem>>, vector<48x16xf32>
    tpu.vector_store %arg9[%c0_29, %c0_30], %52 {strides = array<i32>} : memref<456x16xf32, #tpu.memory_space<vmem>>, vector<48x16xf32>,
    %c408 = arith.constant 408 : index
    %c0_31 = arith.constant 0 : index
    %54 = vector.load %arg9[%c408, %c0_31] : memref<456x16xf32, #tpu.memory_space<vmem>>, vector<48x16xf32>
    tpu.vector_store %arg9[%c408, %c0_31], %52 {strides = array<i32>} : memref<456x16xf32, #tpu.memory_space<vmem>>, vector<48x16xf32>,
    %c25_32 = arith.constant 25 : index
    %c0_33 = arith.constant 0 : index
    %55 = vector.load %arg9[%c25_32, %c0_33] : memref<456x16xf32, #tpu.memory_space<vmem>>, vector<384x16xf32>
    tpu.vector_store %arg9[%c25_32, %c0_33], %51 {strides = array<i32>} : memref<456x16xf32, #tpu.memory_space<vmem>>, vector<384x16xf32>,
    %c0_34 = arith.constant 0 : index
    %c0_35 = arith.constant 0 : index
    %56 = vector.load %arg5[%c0_34, %c0_35] : memref<1x16xf32, #tpu.memory_space<vmem>>, vector<1x16xf32>
    %c0_36 = arith.constant 0 : index
    %c0_37 = arith.constant 0 : index
    %57 = vector.load %arg9[%c0_36, %c0_37] : memref<456x16xf32, #tpu.memory_space<vmem>>, vector<384x16xf32>
    %c1_38 = arith.constant 1 : index
    %c0_39 = arith.constant 0 : index
    %58 = vector.load %arg9[%c1_38, %c0_39] : memref<456x16xf32, #tpu.memory_space<vmem>>, vector<384x16xf32>
    %c2_40 = arith.constant 2 : index
    %c0_41 = arith.constant 0 : index
    %59 = vector.load %arg9[%c2_40, %c0_41] : memref<456x16xf32, #tpu.memory_space<vmem>>, vector<384x16xf32>
    %c24_42 = arith.constant 24 : index
    %c0_43 = arith.constant 0 : index
    %60 = vector.load %arg9[%c24_42, %c0_43] : memref<456x16xf32, #tpu.memory_space<vmem>>, vector<384x16xf32>
    %c25_44 = arith.constant 25 : index
    %c0_45 = arith.constant 0 : index
    %61 = vector.load %arg9[%c25_44, %c0_45] : memref<456x16xf32, #tpu.memory_space<vmem>>, vector<384x16xf32>
    %c26_46 = arith.constant 26 : index
    %c0_47 = arith.constant 0 : index
    %62 = vector.load %arg9[%c26_46, %c0_47] : memref<456x16xf32, #tpu.memory_space<vmem>>, vector<384x16xf32>
    %c48_48 = arith.constant 48 : index
    %c0_49 = arith.constant 0 : index
    %63 = vector.load %arg9[%c48_48, %c0_49] : memref<456x16xf32, #tpu.memory_space<vmem>>, vector<384x16xf32>
    %c49_50 = arith.constant 49 : index
    %c0_51 = arith.constant 0 : index
    %64 = vector.load %arg9[%c49_50, %c0_51] : memref<456x16xf32, #tpu.memory_space<vmem>>, vector<384x16xf32>
    %c50_52 = arith.constant 50 : index
    %c0_53 = arith.constant 0 : index
    %65 = vector.load %arg9[%c50_52, %c0_53] : memref<456x16xf32, #tpu.memory_space<vmem>>, vector<384x16xf32>
    %66 = tpu.concatenate %57, %58, %59, %60, %61, %62, %63, %64, %65 in 1 : vector<384x16xf32>, vector<384x16xf32>, vector<384x16xf32>, vector<384x16xf32>, vector<384x16xf32>, vector<384x16xf32>, vector<384x16xf32>, vector<384x16xf32>, vector<384x16xf32> -> vector<384x144xf32>
    %c0_54 = arith.constant 0 : index
    %c0_55 = arith.constant 0 : index
    %67 = vector.load %arg4[%c0_54, %c0_55] : memref<144x16xf32, #tpu.memory_space<vmem>>, vector<144x16xf32>
    %cst_56 = arith.constant dense<0.000000e+00> : vector<384x16xf32>
    %68 = tpu.matmul %66, %67, %cst_56 {dimension_numbers = #tpu.dot_dimension_numbers<[1], [0], [0], [1], [0, 0, 1, 1], [], []>} : vector<384x144xf32>, vector<144x16xf32>, vector<384x16xf32> -> vector<384x16xf32>
    %69 = vector.broadcast %56 : vector<1x16xf32> to vector<384x16xf32>
    %70 = arith.addf %68, %69 : vector<384x16xf32>
    %cst_57 = arith.constant 0.000000e+00 : f32
    %71 = vector.broadcast %cst_57 : f32 to vector<384x16xf32>
    %72 = arith.cmpf oge, %70, %71 : vector<384x16xf32>
    %cst_58 = arith.constant 2.000000e-01 : f32
    %73 = vector.broadcast %cst_58 : f32 to vector<384x16xf32>
    %74 = arith.mulf %73, %70 : vector<384x16xf32>
    %75 = arith.select %72, %70, %74 : vector<384x16xi1>, vector<384x16xf32>
    %c0_59 = arith.constant 0 : index
    %c0_60 = arith.constant 0 : index
    %c0_61 = arith.constant 0 : index
    %76 = vector.load %arg7[%c0_59, %c0_60, %c0_61] : memref<1x384x16xf32, #tpu.memory_space<vmem>>, vector<1x384x16xf32>
    %77 = vector.shape_cast %76 : vector<1x384x16xf32> to vector<384x16xf32>
    %78 = vector.shape_cast %75 : vector<384x16xf32> to vector<1x384x16xf32>
    tpu.vector_store %arg7[%c0_59, %c0_60, %c0_61], %78 {strides = array<i32>} : memref<1x384x16xf32, #tpu.memory_space<vmem>>, vector<1x384x16xf32>,
    %c0_62 = arith.constant 0 : index
    %c0_63 = arith.constant 0 : index
    %79 = vector.load %arg6[%c0_62, %c0_63] : memref<128x384xf32, #tpu.memory_space<vmem>>, vector<128x384xf32>
    %cst_64 = arith.constant dense<0.000000e+00> : vector<128x16xf32>
    %80 = tpu.matmul %79, %75, %cst_64 {dimension_numbers = #tpu.dot_dimension_numbers<[1], [0], [0], [1], [0, 0, 1, 1], [], []>} : vector<128x384xf32>, vector<384x16xf32>, vector<128x16xf32> -> vector<128x16xf32>
    %cst_65 = arith.constant 0.000000e+00 : f32
    %81 = vector.broadcast %cst_65 : f32 to vector<16x16xf32>
    %c0_66 = arith.constant 0 : index
    %c0_67 = arith.constant 0 : index
    %c0_68 = arith.constant 0 : index
    %82 = vector.load %arg8[%c0_66, %c0_67, %c0_68] : memref<1x176x16xf32, #tpu.memory_space<vmem>>, vector<1x16x16xf32>
    %83 = vector.shape_cast %82 : vector<1x16x16xf32> to vector<16x16xf32>
    %84 = vector.shape_cast %81 : vector<16x16xf32> to vector<1x16x16xf32>
    tpu.vector_store %arg8[%c0_66, %c0_67, %c0_68], %84 {strides = array<i32>} : memref<1x176x16xf32, #tpu.memory_space<vmem>>, vector<1x16x16xf32>,
    %c0_69 = arith.constant 0 : index
    %c16 = arith.constant 16 : index
    %c0_70 = arith.constant 0 : index
    %85 = vector.load %arg8[%c0_69, %c16, %c0_70] : memref<1x176x16xf32, #tpu.memory_space<vmem>>, vector<1x128x16xf32>
    %86 = vector.shape_cast %85 : vector<1x128x16xf32> to vector<128x16xf32>
    %87 = vector.shape_cast %80 : vector<128x16xf32> to vector<1x128x16xf32>
    tpu.vector_store %arg8[%c0_69, %c16, %c0_70], %87 {strides = array<i32>} : memref<1x176x16xf32, #tpu.memory_space<vmem>>, vector<1x128x16xf32>,
    %cst_71 = arith.constant 0.000000e+00 : f32
    %88 = vector.broadcast %cst_71 : f32 to vector<32x16xf32>
    %c0_72 = arith.constant 0 : index
    %c144 = arith.constant 144 : index
    %c0_73 = arith.constant 0 : index
    %89 = vector.load %arg8[%c0_72, %c144, %c0_73] : memref<1x176x16xf32, #tpu.memory_space<vmem>>, vector<1x32x16xf32>
    %90 = vector.shape_cast %89 : vector<1x32x16xf32> to vector<32x16xf32>
    %91 = vector.shape_cast %88 : vector<32x16xf32> to vector<1x32x16xf32>
    tpu.vector_store %arg8[%c0_72, %c144, %c0_73], %91 {strides = array<i32>} : memref<1x176x16xf32, #tpu.memory_space<vmem>>, vector<1x32x16xf32>,
    return
  }
  func.func @transform_0(%arg0: i32) -> (i32, i32, i32) {
    %c0_i32 = arith.constant 0 : i32
    %c0_i32_0 = arith.constant 0 : i32
    %c0_i32_1 = arith.constant 0 : i32
    return %arg0, %c0_i32, %c0_i32_0 : i32, i32, i32
  }
  func.func @transform_1(%arg0: i32) -> (i32, i32) {
    %c0_i32 = arith.constant 0 : i32
    %c0_i32_0 = arith.constant 0 : i32
    %c0_i32_1 = arith.constant 0 : i32
    return %c0_i32, %c0_i32_0 : i32, i32
  }
  func.func @transform_2(%arg0: i32) -> (i32, i32) {
    %c0_i32 = arith.constant 0 : i32
    %c0_i32_0 = arith.constant 0 : i32
    %c0_i32_1 = arith.constant 0 : i32
    return %c0_i32, %c0_i32_0 : i32, i32
  }
  func.func @transform_3(%arg0: i32) -> (i32, i32) {
    %c0_i32 = arith.constant 0 : i32
    %c0_i32_0 = arith.constant 0 : i32
    %c0_i32_1 = arith.constant 0 : i32
    return %c0_i32, %c0_i32_0 : i32, i32
  }
  func.func @transform_4(%arg0: i32) -> (i32, i32) {
    %c0_i32 = arith.constant 0 : i32
    %c0_i32_0 = arith.constant 0 : i32
    %c0_i32_1 = arith.constant 0 : i32
    return %c0_i32, %c0_i32_0 : i32, i32
  }
  func.func @transform_5(%arg0: i32) -> (i32, i32) {
    %c0_i32 = arith.constant 0 : i32
    %c0_i32_0 = arith.constant 0 : i32
    %c0_i32_1 = arith.constant 0 : i32
    return %c0_i32, %c0_i32_0 : i32, i32
  }
  func.func @transform_6(%arg0: i32) -> (i32, i32, i32) {
    %c0_i32 = arith.constant 0 : i32
    %c0_i32_0 = arith.constant 0 : i32
    %c0_i32_1 = arith.constant 0 : i32
    return %arg0, %c0_i32, %c0_i32_0 : i32, i32, i32
  }
  func.func @transform_7(%arg0: i32) -> (i32, i32, i32) {
    %c0_i32 = arith.constant 0 : i32
    %c0_i32_0 = arith.constant 0 : i32
    %c0_i32_1 = arith.constant 0 : i32
    return %arg0, %c0_i32, %c0_i32_0 : i32, i32, i32
  }
}

</mosaic_0001>

<llo_original>
// kernel: tpu_custom_call.1
$region0: #{tpu_custom_call.1}
  #allocation0 [shape = 'u32[]', space=smem, size = 0x4, offset = 0x4, fixed_abs, tag = 'smem constant byte address 0x4 - core index']
  #allocation1 [shape = 'u32[144,128]{1,0:T(1,128)}', space=vmem, size = 0x12000, scoped, tag = 'internal scratch']
  #allocation2 [shape = 'f32[456,16]{1,0:T(8,128)}', space=vmem, size = 0x39000, scoped, tag = 'scratch operand']
  %s0 = inlined_call_operand.vmem [shape: f32[2,456,8], index: 0, kind: input, shape index: {}]
  %s1 = inlined_call_operand.vmem [shape: f32[72,16], index: 1, kind: input, shape index: {}]
  %s2 = inlined_call_operand.vmem [shape: f32[1,16], index: 2, kind: input, shape index: {}]
  %s3 = inlined_call_operand.vmem [shape: f32[144,16], index: 3, kind: input, shape index: {}]
  %s4 = inlined_call_operand.vmem [shape: f32[1,16], index: 4, kind: input, shape index: {}]
  %s5 = inlined_call_operand.vmem [shape: f32[128,384], index: 5, kind: input, shape index: {}]
  %s6 = inlined_call_operand.vmem [shape: f32[2,384,16], index: 6, kind: output, shape index: {0}]
  %s7 = inlined_call_operand.vmem [shape: f32[2,176,16], index: 7, kind: output, shape index: {1}]
  %8 = xla_tuple %s6, %s7
  %s9 = sld [smem:[#allocation0]]
  $region65: #{tpu_custom_call.1} parent=0
    _
  %s11 = ssub.s32 1, %s9
  %s12 = scalar_select 0, %s11, %s9
  loop: start=0, step=1, limit=4
  $region2: #{tpu_custom_call.1} parent=0 // loop_pre_header
    _
  $region3: #{tpu_custom_call.1} parent=0 // loop_header
    %s14 = sphi 0, %s18
    %p15 = scmp.ge.s32.totalorder %s14, 4
    %s24 = sphi 0, %s26
    %s27 = sphi 0, %s24
    %s28 = sphi 0, %s27
    %s44 = sphi 0, %s28
    %s48 = sphi 0, %s48
    %s50 = sphi 0, %s48
    %s51 = sphi 0, %s50
    %s65 = sphi 0, %s51
    %s69 = sphi 0, %s69
    %s71 = sphi 0, %s69
    %s72 = sphi 0, %s71
    %s86 = sphi 0, %s72
    %s90 = sphi 0, %s90
    %s92 = sphi 0, %s90
    %s93 = sphi 0, %s92
    %s107 = sphi 0, %s93
    %s111 = sphi 0, %s111
    %s113 = sphi 0, %s111
    %s114 = sphi 0, %s113
    %s128 = sphi 0, %s114
    %s132 = sphi 0, %s132
    %s134 = sphi 0, %s132
    %s135 = sphi 0, %s134
    %s149 = sphi 0, %s135
    %s155 = sphi 0, %s157
    %s158 = sphi 0, %s155
    %s159 = sphi 0, %s158
    %s175 = sphi 0, %s159
    %s181 = sphi 0, %s183
    %s184 = sphi 0, %s181
    %s185 = sphi 0, %s184
    %s201 = sphi 0, %s185
  $region4: #{tpu_custom_call.1} parent=0 // loop_header_branch
    %17 = sbr.rel (%p15) target = $region8
  $region5: #{tpu_custom_call.1} parent=0 // loop_body
    %s19 = ssub.s32 %s14, 1
    %s20 = ssub.s32 %s14, 2
    %s21 = sadd.s32 %s14, 1
    %s22 = ssub.s32 %s14, %s21
    %p23 = scmp.eq.s32.totalorder %s22, 0
    %s25 = sadd.s32 %s24, 1
    %s26 = scalar_select %p23, %s24, %s25
    %p29 = pneg %p23
    %p30 = scmp.eq.s32.totalorder %s14, 1
    %p31 = por %p29, %p30
    %p32 = scmp.ne.s32.totalorder %s24, %s27
    %p33 = scmp.eq.s32.totalorder %s14, 0
    %p34 = por %p32, %p33
    %p35 = scmp.ne.s32.totalorder %s24, %s27
    %p36 = scmp.eq.s32.totalorder %s19, 1
    %p37 = por %p35, %p36
    %p38 = scmp.ne.s32.totalorder %s27, %s28
    %p39 = scmp.eq.s32.totalorder %s19, 0
    %p40 = por %p38, %p39
    %p41 = scmp.ne.s32.totalorder %s27, %s28
    %p42 = scmp.eq.s32.totalorder %s20, 1
    %p43 = por %p41, %p42
    %p45 = scmp.ne.s32.totalorder %s28, %s44
    %p46 = scmp.eq.s32.totalorder %s20, 0
    %p47 = por %p45, %p46
    %s49 = sadd.s32 %s48, 1
    %p52 = scmp.eq.s32.totalorder %s14, 1
    %p53 = scmp.ne.s32.totalorder %s48, %s50
    %p54 = scmp.eq.s32.totalorder %s14, 0
    %p55 = por %p53, %p54
    %p56 = scmp.ne.s32.totalorder %s48, %s50
    %p57 = scmp.eq.s32.totalorder %s19, 1
    %p58 = por %p56, %p57
    %p59 = scmp.ne.s32.totalorder %s50, %s51
    %p60 = scmp.eq.s32.totalorder %s19, 0
    %p61 = por %p59, %p60
    %p62 = scmp.ne.s32.totalorder %s50, %s51
    %p63 = scmp.eq.s32.totalorder %s20, 1
    %p64 = por %p62, %p63
    %p66 = scmp.ne.s32.totalorder %s51, %s65
    %p67 = scmp.eq.s32.totalorder %s20, 0
    %p68 = por %p66, %p67
    %s70 = sadd.s32 %s69, 1
    %p73 = scmp.eq.s32.totalorder %s14, 1
    %p74 = scmp.ne.s32.totalorder %s69, %s71
    %p75 = scmp.eq.s32.totalorder %s14, 0
    %p76 = por %p74, %p75
    %p77 = scmp.ne.s32.totalorder %s69, %s71
    %p78 = scmp.eq.s32.totalorder %s19, 1
    %p79 = por %p77, %p78
    %p80 = scmp.ne.s32.totalorder %s71, %s72
    %p81 = scmp.eq.s32.totalorder %s19, 0
    %p82 = por %p80, %p81
    %p83 = scmp.ne.s32.totalorder %s71, %s72
    %p84 = scmp.eq.s32.totalorder %s20, 1
    %p85 = por %p83, %p84
    %p87 = scmp.ne.s32.totalorder %s72, %s86
    %p88 = scmp.eq.s32.totalorder %s20, 0
    %p89 = por %p87, %p88
    %s91 = sadd.s32 %s90, 1
    %p94 = scmp.eq.s32.totalorder %s14, 1
    %p95 = scmp.ne.s32.totalorder %s90, %s92
    %p96 = scmp.eq.s32.totalorder %s14, 0
    %p97 = por %p95, %p96
    %p98 = scmp.ne.s32.totalorder %s90, %s92
    %p99 = scmp.eq.s32.totalorder %s19, 1
    %p100 = por %p98, %p99
    %p101 = scmp.ne.s32.totalorder %s92, %s93
    %p102 = scmp.eq.s32.totalorder %s19, 0
    %p103 = por %p101, %p102
    %p104 = scmp.ne.s32.totalorder %s92, %s93
    %p105 = scmp.eq.s32.totalorder %s20, 1
    %p106 = por %p104, %p105
    %p108 = scmp.ne.s32.totalorder %s93, %s107
    %p109 = scmp.eq.s32.totalorder %s20, 0
    %p110 = por %p108, %p109
    %s112 = sadd.s32 %s111, 1
    %p115 = scmp.eq.s32.totalorder %s14, 1
    %p116 = scmp.ne.s32.totalorder %s111, %s113
    %p117 = scmp.eq.s32.totalorder %s14, 0
    %p118 = por %p116, %p117
    %p119 = scmp.ne.s32.totalorder %s111, %s113
    %p120 = scmp.eq.s32.totalorder %s19, 1
    %p121 = por %p119, %p120
    %p122 = scmp.ne.s32.totalorder %s113, %s114
    %p123 = scmp.eq.s32.totalorder %s19, 0
    %p124 = por %p122, %p123
    %p125 = scmp.ne.s32.totalorder %s113, %s114
    %p126 = scmp.eq.s32.totalorder %s20, 1
    %p127 = por %p125, %p126
    %p129 = scmp.ne.s32.totalorder %s114, %s128
    %p130 = scmp.eq.s32.totalorder %s20, 0
    %p131 = por %p129, %p130
    %s133 = sadd.s32 %s132, 1
    %p136 = scmp.eq.s32.totalorder %s14, 1
    %p137 = scmp.ne.s32.totalorder %s132, %s134
    %p138 = scmp.eq.s32.totalorder %s14, 0
    %p139 = por %p137, %p138
    %p140 = scmp.ne.s32.totalorder %s132, %s134
    %p141 = scmp.eq.s32.totalorder %s19, 1
    %p142 = por %p140, %p141
    %p143 = scmp.ne.s32.totalorder %s134, %s135
    %p144 = scmp.eq.s32.totalorder %s19, 0
    %p145 = por %p143, %p144
    %p146 = scmp.ne.s32.totalorder %s134, %s135
    %p147 = scmp.eq.s32.totalorder %s20, 1
    %p148 = por %p146, %p147
    %p150 = scmp.ne.s32.totalorder %s135, %s149
    %p151 = scmp.eq.s32.totalorder %s20, 0
    %p152 = por %p150, %p151
    %s153 = ssub.s32 %s14, %s21
    %p154 = scmp.eq.s32.totalorder %s153, 0
    %s156 = sadd.s32 %s155, 1
    %s157 = scalar_select %p154, %s155, %s156
    %p160 = pneg %p154
    %p161 = scmp.eq.s32.totalorder %s14, 1
    %p162 = por %p160, %p161
    %p163 = scmp.ne.s32.totalorder %s155, %s158
    %p164 = scmp.eq.s32.totalorder %s14, 0
    %p165 = por %p163, %p164
    %p166 = scmp.ne.s32.totalorder %s155, %s158
    %p167 = scmp.eq.s32.totalorder %s19, 1
    %p168 = por %p166, %p167
    %p169 = scmp.ne.s32.totalorder %s158, %s159
    %p170 = scmp.eq.s32.totalorder %s19, 0
    %p171 = por %p169, %p170
    %p172 = scmp.ne.s32.totalorder %s158, %s159
    %p173 = scmp.eq.s32.totalorder %s20, 1
    %p174 = por %p172, %p173
    %p176 = scmp.ne.s32.totalorder %s159, %s175
    %p177 = scmp.eq.s32.totalorder %s20, 0
    %p178 = por %p176, %p177
    %s179 = ssub.s32 %s14, %s21
    %p180 = scmp.eq.s32.totalorder %s179, 0
    %s182 = sadd.s32 %s181, 1
    %s183 = scalar_select %p180, %s181, %s182
    %p186 = pneg %p180
    %p187 = scmp.eq.s32.totalorder %s14, 1
    %p188 = por %p186, %p187
    %p189 = scmp.ne.s32.totalorder %s181, %s184
    %p190 = scmp.eq.s32.totalorder %s14, 0
    %p191 = por %p189, %p190
    %p192 = scmp.ne.s32.totalorder %s181, %s184
    %p193 = scmp.eq.s32.totalorder %s19, 1
    %p194 = por %p192, %p193
    %p195 = scmp.ne.s32.totalorder %s184, %s185
    %p196 = scmp.eq.s32.totalorder %s19, 0
    %p197 = por %p195, %p196
    %p198 = scmp.ne.s32.totalorder %s184, %s185
    %p199 = scmp.eq.s32.totalorder %s20, 1
    %p200 = por %p198, %p199
    %p202 = scmp.ne.s32.totalorder %s185, %s201
    %p203 = scmp.eq.s32.totalorder %s20, 0
    %p204 = por %p202, %p203
    %p205 = scmp.le.s32.totalorder 1, %s14
    %p206 = scmp.lt.s32.totalorder %s14, 3
    %p207 = pnand %p205, %p206
    %p208 = pneg %p207
    // Predicated region
    $region9: #{tpu_custom_call.1} parent=5 // pred_check
      _
    $region10: #{tpu_custom_call.1} parent=5 // pred_check_branch
      %210 = sbr.rel (%p207) target = $region12
    $region11: #{tpu_custom_call.1} parent=5 // pred_region
      %s211 = ssub.s32 %s14, 1
      // Predicated region
      $region13: #{tpu_custom_call.1} parent=11 // pred_check
        %p212 = pneg %p61
      $region14: #{tpu_custom_call.1} parent=11 // pred_check_branch
        %214 = sbr.rel (%p212) target = $region16
      $region15: #{tpu_custom_call.1} parent=11 // pred_region
        _
      $region16: #{tpu_custom_call.1} parent=11 // pred_fallthru
        _
      // Predicated region
      $region17: #{tpu_custom_call.1} parent=11 // pred_check
        %p215 = pneg %p82
      $region18: #{tpu_custom_call.1} parent=11 // pred_check_branch
        %217 = sbr.rel (%p215) target = $region20
      $region19: #{tpu_custom_call.1} parent=11 // pred_region
        _
      $region20: #{tpu_custom_call.1} parent=11 // pred_fallthru
        _
      // Predicated region
      $region21: #{tpu_custom_call.1} parent=11 // pred_check
        %p218 = pneg %p103
      $region22: #{tpu_custom_call.1} parent=11 // pred_check_branch
        %220 = sbr.rel (%p218) target = $region24
      $region23: #{tpu_custom_call.1} parent=11 // pred_region
        _
      $region24: #{tpu_custom_call.1} parent=11 // pred_fallthru
        _
      // Predicated region
      $region25: #{tpu_custom_call.1} parent=11 // pred_check
        %p221 = pneg %p124
      $region26: #{tpu_custom_call.1} parent=11 // pred_check_branch
        %223 = sbr.rel (%p221) target = $region28
      $region27: #{tpu_custom_call.1} parent=11 // pred_region
        _
      $region28: #{tpu_custom_call.1} parent=11 // pred_fallthru
        _
      // Predicated region
      $region29: #{tpu_custom_call.1} parent=11 // pred_check
        %p224 = pneg %p145
      $region30: #{tpu_custom_call.1} parent=11 // pred_check_branch
        %226 = sbr.rel (%p224) target = $region32
      $region31: #{tpu_custom_call.1} parent=11 // pred_region
        _
      $region32: #{tpu_custom_call.1} parent=11 // pred_fallthru
        _
    $region12: #{tpu_custom_call.1} parent=5 // pred_fallthru
      _
    %p227 = scmp.lt.s32.totalorder %s14, 2
    // Predicated region
    $region33: #{tpu_custom_call.1} parent=5 // pred_check
      %p228 = pneg %p227
    $region34: #{tpu_custom_call.1} parent=5 // pred_check_branch
      %230 = sbr.rel (%p228) target = $region36
    $region35: #{tpu_custom_call.1} parent=5 // pred_region
      // Predicated region
      $region37: #{tpu_custom_call.1} parent=35 // pred_check
        %p231 = pneg %p34
      $region38: #{tpu_custom_call.1} parent=35 // pred_check_branch
        %233 = sbr.rel (%p231) target = $region40
      $region39: #{tpu_custom_call.1} parent=35 // pred_region
        %p234 = scmp.lt.s32.totalorder %s14, 1
        %s235 = scalar_select %p234, %s14, 1
        %s236 = smul.addr %s235, 57
        %s237 = smul.addr %s236, 8
        %s238 = scalar_lea.vmem %s0, %s237
      $region40: #{tpu_custom_call.1} parent=35 // pred_fallthru
        _
    $region36: #{tpu_custom_call.1} parent=5 // pred_fallthru
      _
    %p239 = scmp.le.s32.totalorder 1, %s14
    %p240 = scmp.lt.s32.totalorder %s14, 3
    %p241 = pnand %p239, %p240
    %p242 = pneg %p241
    // Predicated region
    $region41: #{tpu_custom_call.1} parent=5 // pred_check
      _
    $region42: #{tpu_custom_call.1} parent=5 // pred_check_branch
      %244 = sbr.rel (%p241) target = $region44
    $region43: #{tpu_custom_call.1} parent=5 // pred_region
      %s245 = ssub.s32 %s14, 1
      %p246 = scmp.lt.s32.totalorder %s19, 1
      %s247 = scalar_select %p246, %s19, 1
      %s248 = smul.addr %s247, 57
      %s249 = smul.addr %s248, 8
      %s250 = scalar_lea.vmem %s0, %s249
      %p251 = pneg %p40
      %p252 = pneg %p37
      %p253 = pneg %p61
      %p254 = pneg %p58
      %p255 = pneg %p82
      %p256 = pneg %p79
      %p257 = pneg %p103
      %p258 = pneg %p100
      %p259 = pneg %p124
      %p260 = pneg %p121
      %p261 = pneg %p145
      %p262 = pneg %p142
      %p263 = pneg %p171
      %p264 = pneg %p168
      %p265 = scmp.lt.s32.totalorder %s19, 1
      %s266 = scalar_select %p265, %s19, 1
      %s267 = smul.addr %s266, 48
      %s268 = smul.addr %s267, 8
      %s269 = scalar_lea.vmem %s6, %s268
      %p270 = pneg %p197
      %p271 = pneg %p194
      %p272 = scmp.lt.s32.totalorder %s19, 1
      %s273 = scalar_select %p272, %s19, 1
      %s274 = smul.addr %s273, 22
      %s275 = smul.addr %s274, 8
      %s276 = scalar_lea.vmem %s7, %s275
      %p277 = scmp.lt.s32.totalorder %s19, 1
      %s278 = scalar_select %p277, %s19, 1
      %s279 = smul.addr %s278, 57
      %s280 = smul.addr %s279, 8
      %s281 = scalar_lea.vmem %s0, %s280
      %p282 = scmp.lt.s32.totalorder %s19, 1
      %s283 = scalar_select %p282, %s19, 1
      %s284 = smul.addr %s283, 48
      %s285 = smul.addr %s284, 8
      %s286 = scalar_lea.vmem %s6, %s285
      %p287 = scmp.lt.s32.totalorder %s19, 1
      %s288 = scalar_select %p287, %s19, 1
      %s289 = smul.addr %s288, 22
      %s290 = smul.addr %s289, 8
      %s291 = scalar_lea.vmem %s7, %s290
      %v292 = vld [vmem:[%s2] sm:$0x1]
      %v293 = vld [vmem:[%s281] sm:$0xff]
      %v294 = vld [vmem:[%s281 + $0x8] sm:$0xff]
      %v295 = vld [vmem:[%s281 + $0x10] sm:$0xff]
      %v296 = vld [vmem:[%s281 + $0x18] sm:$0xff]
      %v297 = vld [vmem:[%s281 + $0x20] sm:$0xff]
      %v298 = vld [vmem:[%s281 + $0x28] sm:$0xff]
      %v299 = vld [vmem:[%s281 + $0x30] sm:$0xff]
      %v300 = vld [vmem:[%s281 + $0x38] sm:$0xff]
      %v301 = vld [vmem:[%s281 + $0x40] sm:$0xff]
      %v302 = vld [vmem:[%s281 + $0x48] sm:$0xff]
      %v303 = vld [vmem:[%s281 + $0x50] sm:$0xff]
      %v304 = vld [vmem:[%s281 + $0x58] sm:$0xff]
      %v305 = vld [vmem:[%s281 + $0x60] sm:$0xff]
      %v306 = vld [vmem:[%s281 + $0x68] sm:$0xff]
      %v307 = vld [vmem:[%s281 + $0x70] sm:$0xff]
      %v308 = vld [vmem:[%s281 + $0x78] sm:$0xff]
      %v309 = vld [vmem:[%s281 + $0x80] sm:$0xff]
      %v310 = vld [vmem:[%s281 + $0x88] sm:$0xff]
      %v311 = vld [vmem:[%s281 + $0x90] sm:$0xff]
      %v312 = vld [vmem:[%s281 + $0x98] sm:$0xff]
      %v313 = vld [vmem:[%s281 + $0xa0] sm:$0xff]
      %v314 = vld [vmem:[%s281 + $0xa8] sm:$0xff]
      %v315 = vld [vmem:[%s281 + $0xb0] sm:$0xff]
      %v316 = vld [vmem:[%s281 + $0xb8] sm:$0xff]
      %v317 = vld [vmem:[%s281 + $0xc0] sm:$0xff]
      %v318 = vld [vmem:[%s281 + $0xc8] sm:$0xff]
      %v319 = vld [vmem:[%s281 + $0xd0] sm:$0xff]
      %v320 = vld [vmem:[%s281 + $0xd8] sm:$0xff]
      %v321 = vld [vmem:[%s281 + $0xe0] sm:$0xff]
      %v322 = vld [vmem:[%s281 + $0xe8] sm:$0xff]
      %v323 = vld [vmem:[%s281 + $0xf0] sm:$0xff]
      %v324 = vld [vmem:[%s281 + $0xf8] sm:$0xff]
      %v325 = vld [vmem:[%s281 + $0x100] sm:$0xff]
      %v326 = vld [vmem:[%s281 + $0x108] sm:$0xff]
      %v327 = vld [vmem:[%s281 + $0x110] sm:$0xff]
      %v328 = vld [vmem:[%s281 + $0x118] sm:$0xff]
      %v329 = vld [vmem:[%s281 + $0x120] sm:$0xff]
      %v330 = vld [vmem:[%s281 + $0x128] sm:$0xff]
      %v331 = vld [vmem:[%s281 + $0x130] sm:$0xff]
      %v332 = vld [vmem:[%s281 + $0x138] sm:$0xff]
      %v333 = vld [vmem:[%s281 + $0x140] sm:$0xff]
      %v334 = vld [vmem:[%s281 + $0x148] sm:$0xff]
      %v335 = vld [vmem:[%s281 + $0x150] sm:$0xff]
      %v336 = vld [vmem:[%s281 + $0x158] sm:$0xff]
      %v337 = vld [vmem:[%s281 + $0x160] sm:$0xff]
      %v338 = vld [vmem:[%s281 + $0x168] sm:$0xff]
      %v339 = vld [vmem:[%s281 + $0x170] sm:$0xff]
      %v340 = vld [vmem:[%s281 + $0x178] sm:$0xff]
      %v341 = vld [vmem:[%s281 + $0x1] sm:$0xff]
      %v342 = vld [vmem:[%s281 + $0x9] sm:$0xff]
      %v343 = vld [vmem:[%s281 + $0x11] sm:$0xff]
      %v344 = vld [vmem:[%s281 + $0x19] sm:$0xff]
      %v345 = vld [vmem:[%s281 + $0x21] sm:$0xff]
      %v346 = vld [vmem:[%s281 + $0x29] sm:$0xff]
      %v347 = vld [vmem:[%s281 + $0x31] sm:$0xff]
      %v348 = vld [vmem:[%s281 + $0x39] sm:$0xff]
      %v349 = vld [vmem:[%s281 + $0x41] sm:$0xff]
      %v350 = vld [vmem:[%s281 + $0x49] sm:$0xff]
      %v351 = vld [vmem:[%s281 + $0x51] sm:$0xff]
      %v352 = vld [vmem:[%s281 + $0x59] sm:$0xff]
      %v353 = vld [vmem:[%s281 + $0x61] sm:$0xff]
      %v354 = vld [vmem:[%s281 + $0x69] sm:$0xff]
      %v355 = vld [vmem:[%s281 + $0x71] sm:$0xff]
      %v356 = vld [vmem:[%s281 + $0x79] sm:$0xff]
      %v357 = vld [vmem:[%s281 + $0x81] sm:$0xff]
      %v358 = vld [vmem:[%s281 + $0x89] sm:$0xff]
      %v359 = vld [vmem:[%s281 + $0x91] sm:$0xff]
      %v360 = vld [vmem:[%s281 + $0x99] sm:$0xff]
      %v361 = vld [vmem:[%s281 + $0xa1] sm:$0xff]
      %v362 = vld [vmem:[%s281 + $0xa9] sm:$0xff]
      %v363 = vld [vmem:[%s281 + $0xb1] sm:$0xff]
      %v364 = vld [vmem:[%s281 + $0xb9] sm:$0xff]
      %v365 = vld [vmem:[%s281 + $0xc1] sm:$0xff]
      %v366 = vld [vmem:[%s281 + $0xc9] sm:$0xff]
      %v367 = vld [vmem:[%s281 + $0xd1] sm:$0xff]
      %v368 = vld [vmem:[%s281 + $0xd9] sm:$0xff]
      %v369 = vld [vmem:[%s281 + $0xe1] sm:$0xff]
      %v370 = vld [vmem:[%s281 + $0xe9] sm:$0xff]
      %v371 = vld [vmem:[%s281 + $0xf1] sm:$0xff]
      %v372 = vld [vmem:[%s281 + $0xf9] sm:$0xff]
      %v373 = vld [vmem:[%s281 + $0x101] sm:$0xff]
      %v374 = vld [vmem:[%s281 + $0x109] sm:$0xff]
      %v375 = vld [vmem:[%s281 + $0x111] sm:$0xff]
      %v376 = vld [vmem:[%s281 + $0x119] sm:$0xff]
      %v377 = vld [vmem:[%s281 + $0x121] sm:$0xff]
      %v378 = vld [vmem:[%s281 + $0x129] sm:$0xff]
      %v379 = vld [vmem:[%s281 + $0x131] sm:$0xff]
      %v380 = vld [vmem:[%s281 + $0x139] sm:$0xff]
      %v381 = vld [vmem:[%s281 + $0x141] sm:$0xff]
      %v382 = vld [vmem:[%s281 + $0x149] sm:$0xff]
      %v383 = vld [vmem:[%s281 + $0x151] sm:$0xff]
      %v384 = vld [vmem:[%s281 + $0x159] sm:$0xff]
      %v385 = vld [vmem:[%s281 + $0x161] sm:$0xff]
      %v386 = vld [vmem:[%s281 + $0x169] sm:$0xff]
      %v387 = vld [vmem:[%s281 + $0x171] sm:$0xff]
      %v388 = vld [vmem:[%s281 + $0x179] sm:$0xff]
      %v389 = vld [vmem:[%s281 + $0x2] sm:$0xff]
      %v390 = vld [vmem:[%s281 + $0xa] sm:$0xff]
      %v391 = vld [vmem:[%s281 + $0x12] sm:$0xff]
      %v392 = vld [vmem:[%s281 + $0x1a] sm:$0xff]
      %v393 = vld [vmem:[%s281 + $0x22] sm:$0xff]
      %v394 = vld [vmem:[%s281 + $0x2a] sm:$0xff]
      %v395 = vld [vmem:[%s281 + $0x32] sm:$0xff]
      %v396 = vld [vmem:[%s281 + $0x3a] sm:$0xff]
      %v397 = vld [vmem:[%s281 + $0x42] sm:$0xff]
      %v398 = vld [vmem:[%s281 + $0x4a] sm:$0xff]
      %v399 = vld [vmem:[%s281 + $0x52] sm:$0xff]
      %v400 = vld [vmem:[%s281 + $0x5a] sm:$0xff]
      %v401 = vld [vmem:[%s281 + $0x62] sm:$0xff]
      %v402 = vld [vmem:[%s281 + $0x6a] sm:$0xff]
      %v403 = vld [vmem:[%s281 + $0x72] sm:$0xff]
      %v404 = vld [vmem:[%s281 + $0x7a] sm:$0xff]
      %v405 = vld [vmem:[%s281 + $0x82] sm:$0xff]
      %v406 = vld [vmem:[%s281 + $0x8a] sm:$0xff]
      %v407 = vld [vmem:[%s281 + $0x92] sm:$0xff]
      %v408 = vld [vmem:[%s281 + $0x9a] sm:$0xff]
      %v409 = vld [vmem:[%s281 + $0xa2] sm:$0xff]
      %v410 = vld [vmem:[%s281 + $0xaa] sm:$0xff]
      %v411 = vld [vmem:[%s281 + $0xb2] sm:$0xff]
      %v412 = vld [vmem:[%s281 + $0xba] sm:$0xff]
      %v413 = vld [vmem:[%s281 + $0xc2] sm:$0xff]
      %v414 = vld [vmem:[%s281 + $0xca] sm:$0xff]
      %v415 = vld [vmem:[%s281 + $0xd2] sm:$0xff]
      %v416 = vld [vmem:[%s281 + $0xda] sm:$0xff]
      %v417 = vld [vmem:[%s281 + $0xe2] sm:$0xff]
      %v418 = vld [vmem:[%s281 + $0xea] sm:$0xff]
      %v419 = vld [vmem:[%s281 + $0xf2] sm:$0xff]
      %v420 = vld [vmem:[%s281 + $0xfa] sm:$0xff]
      %v421 = vld [vmem:[%s281 + $0x102] sm:$0xff]
      %v422 = vld [vmem:[%s281 + $0x10a] sm:$0xff]
      %v423 = vld [vmem:[%s281 + $0x112] sm:$0xff]
      %v424 = vld [vmem:[%s281 + $0x11a] sm:$0xff]
      %v425 = vld [vmem:[%s281 + $0x122] sm:$0xff]
      %v426 = vld [vmem:[%s281 + $0x12a] sm:$0xff]
      %v427 = vld [vmem:[%s281 + $0x132] sm:$0xff]
      %v428 = vld [vmem:[%s281 + $0x13a] sm:$0xff]
      %v429 = vld [vmem:[%s281 + $0x142] sm:$0xff]
      %v430 = vld [vmem:[%s281 + $0x14a] sm:$0xff]
      %v431 = vld [vmem:[%s281 + $0x152] sm:$0xff]
      %v432 = vld [vmem:[%s281 + $0x15a] sm:$0xff]
      %v433 = vld [vmem:[%s281 + $0x162] sm:$0xff]
      %v434 = vld [vmem:[%s281 + $0x16a] sm:$0xff]
      %v435 = vld [vmem:[%s281 + $0x172] sm:$0xff]
      %v436 = vld [vmem:[%s281 + $0x17a] sm:$0xff]
      %v437 = vld [vmem:[%s281 + $0x180] sm:$0xff]
      %v438 = vld [vmem:[%s281 + $0x188] sm:$0xff]
      %v439 = vld [vmem:[%s281 + $0x190] sm:$0xff]
      %v440 = vld [vmem:[%s281 + $0x181] sm:$0xff]
      %v441 = vld [vmem:[%s281 + $0x189] sm:$0xff]
      %v442 = vld [vmem:[%s281 + $0x191] sm:$0xff]
      %v443 = vld [vmem:[%s281 + $0x182] sm:$0xff]
      %v444 = vld [vmem:[%s281 + $0x18a] sm:$0xff]
      %v445 = vld [vmem:[%s281 + $0x192] sm:$0xff]
      %v446 = vld [vmem:[%s281 + $0x198] sm:$0xff]
      %v447 = vld [vmem:[%s281 + $0x1a0] sm:$0xff]
      %v448 = vld [vmem:[%s281 + $0x1a8] sm:$0xff]
      %v449 = vld [vmem:[%s281 + $0x199] sm:$0xff]
      %v450 = vld [vmem:[%s281 + $0x1a1] sm:$0xff]
      %v451 = vld [vmem:[%s281 + $0x1a9] sm:$0xff]
      %v452 = vld [vmem:[%s281 + $0x19a] sm:$0xff]
      %v453 = vld [vmem:[%s281 + $0x1a2] sm:$0xff]
      %v454 = vld [vmem:[%s281 + $0x1aa] sm:$0xff]
      %503 = vrot.lane.b32.xlu0 %v341, 8
      %v504 = vpop.permute.xlu0 %503
      %505 = vrot.lane.b32.xlu0 %v342, 8
      %v506 = vpop.permute.xlu0 %505
      %507 = vrot.lane.b32.xlu0 %v343, 8
      %v508 = vpop.permute.xlu0 %507
      %509 = vrot.lane.b32.xlu0 %v344, 8
      %v510 = vpop.permute.xlu0 %509
      %511 = vrot.lane.b32.xlu0 %v345, 8
      %v512 = vpop.permute.xlu0 %511
      %513 = vrot.lane.b32.xlu0 %v346, 8
      %v514 = vpop.permute.xlu0 %513
      %515 = vrot.lane.b32.xlu0 %v347, 8
      %v516 = vpop.permute.xlu0 %515
      %517 = vrot.lane.b32.xlu0 %v348, 8
      %v518 = vpop.permute.xlu0 %517
      %519 = vrot.lane.b32.xlu0 %v349, 8
      %v520 = vpop.permute.xlu0 %519
      %521 = vrot.lane.b32.xlu0 %v350, 8
      %v522 = vpop.permute.xlu0 %521
      %523 = vrot.lane.b32.xlu0 %v351, 8
      %v524 = vpop.permute.xlu0 %523
      %525 = vrot.lane.b32.xlu0 %v352, 8
      %v526 = vpop.permute.xlu0 %525
      %527 = vrot.lane.b32.xlu0 %v353, 8
      %v528 = vpop.permute.xlu0 %527
      %529 = vrot.lane.b32.xlu0 %v354, 8
      %v530 = vpop.permute.xlu0 %529
      %531 = vrot.lane.b32.xlu0 %v355, 8
      %v532 = vpop.permute.xlu0 %531
      %533 = vrot.lane.b32.xlu0 %v356, 8
      %v534 = vpop.permute.xlu0 %533
      %535 = vrot.lane.b32.xlu0 %v357, 8
      %v536 = vpop.permute.xlu0 %535
      %537 = vrot.lane.b32.xlu0 %v358, 8
      %v538 = vpop.permute.xlu0 %537
      %539 = vrot.lane.b32.xlu0 %v359, 8
      %v540 = vpop.permute.xlu0 %539
      %541 = vrot.lane.b32.xlu0 %v360, 8
      %v542 = vpop.permute.xlu0 %541
      %543 = vrot.lane.b32.xlu0 %v361, 8
      %v544 = vpop.permute.xlu0 %543
      %545 = vrot.lane.b32.xlu0 %v362, 8
      %v546 = vpop.permute.xlu0 %545
      %547 = vrot.lane.b32.xlu0 %v363, 8
      %v548 = vpop.permute.xlu0 %547
      %549 = vrot.lane.b32.xlu0 %v364, 8
      %v550 = vpop.permute.xlu0 %549
      %551 = vrot.lane.b32.xlu0 %v365, 8
      %v552 = vpop.permute.xlu0 %551
      %553 = vrot.lane.b32.xlu0 %v366, 8
      %v554 = vpop.permute.xlu0 %553
      %555 = vrot.lane.b32.xlu0 %v367, 8
      %v556 = vpop.permute.xlu0 %555
      %557 = vrot.lane.b32.xlu0 %v368, 8
      %v558 = vpop.permute.xlu0 %557
      %559 = vrot.lane.b32.xlu0 %v369, 8
      %v560 = vpop.permute.xlu0 %559
      %561 = vrot.lane.b32.xlu0 %v370, 8
      %v562 = vpop.permute.xlu0 %561
      %563 = vrot.lane.b32.xlu0 %v371, 8
      %v564 = vpop.permute.xlu0 %563
      %565 = vrot.lane.b32.xlu0 %v372, 8
      %v566 = vpop.permute.xlu0 %565
      %567 = vrot.lane.b32.xlu0 %v373, 8
      %v568 = vpop.permute.xlu0 %567
      %569 = vrot.lane.b32.xlu0 %v374, 8
      %v570 = vpop.permute.xlu0 %569
      %571 = vrot.lane.b32.xlu0 %v375, 8
      %v572 = vpop.permute.xlu0 %571
      %573 = vrot.lane.b32.xlu0 %v376, 8
      %v574 = vpop.permute.xlu0 %573
      %575 = vrot.lane.b32.xlu0 %v377, 8
      %v576 = vpop.permute.xlu0 %575
      %577 = vrot.lane.b32.xlu0 %v378, 8
      %v578 = vpop.permute.xlu0 %577
      %579 = vrot.lane.b32.xlu0 %v379, 8
      %v580 = vpop.permute.xlu0 %579
      %581 = vrot.lane.b32.xlu0 %v380, 8
      %v582 = vpop.permute.xlu0 %581
      %583 = vrot.lane.b32.xlu0 %v381, 8
      %v584 = vpop.permute.xlu0 %583
      %585 = vrot.lane.b32.xlu0 %v382, 8
      %v586 = vpop.permute.xlu0 %585
      %587 = vrot.lane.b32.xlu0 %v383, 8
      %v588 = vpop.permute.xlu0 %587
      %589 = vrot.lane.b32.xlu0 %v384, 8
      %v590 = vpop.permute.xlu0 %589
      %591 = vrot.lane.b32.xlu0 %v385, 8
      %v592 = vpop.permute.xlu0 %591
      %593 = vrot.lane.b32.xlu0 %v386, 8
      %v594 = vpop.permute.xlu0 %593
      %595 = vrot.lane.b32.xlu0 %v387, 8
      %v596 = vpop.permute.xlu0 %595
      %597 = vrot.lane.b32.xlu0 %v388, 8
      %v598 = vpop.permute.xlu0 %597
      %695 = vrot.lane.b32.xlu0 %v389, 16
      %v696 = vpop.permute.xlu0 %695
      %697 = vrot.lane.b32.xlu0 %v390, 16
      %v698 = vpop.permute.xlu0 %697
      %699 = vrot.lane.b32.xlu0 %v391, 16
      %v700 = vpop.permute.xlu0 %699
      %701 = vrot.lane.b32.xlu0 %v392, 16
      %v702 = vpop.permute.xlu0 %701
      %703 = vrot.lane.b32.xlu0 %v393, 16
      %v704 = vpop.permute.xlu0 %703
      %705 = vrot.lane.b32.xlu0 %v394, 16
      %v706 = vpop.permute.xlu0 %705
      %707 = vrot.lane.b32.xlu0 %v395, 16
      %v708 = vpop.permute.xlu0 %707
      %709 = vrot.lane.b32.xlu0 %v396, 16
      %v710 = vpop.permute.xlu0 %709
      %711 = vrot.lane.b32.xlu0 %v397, 16
      %v712 = vpop.permute.xlu0 %711
      %713 = vrot.lane.b32.xlu0 %v398, 16
      %v714 = vpop.permute.xlu0 %713
      %715 = vrot.lane.b32.xlu0 %v399, 16
      %v716 = vpop.permute.xlu0 %715
      %717 = vrot.lane.b32.xlu0 %v400, 16
      %v718 = vpop.permute.xlu0 %717
      %719 = vrot.lane.b32.xlu0 %v401, 16
      %v720 = vpop.permute.xlu0 %719
      %721 = vrot.lane.b32.xlu0 %v402, 16
      %v722 = vpop.permute.xlu0 %721
      %723 = vrot.lane.b32.xlu0 %v403, 16
      %v724 = vpop.permute.xlu0 %723
      %725 = vrot.lane.b32.xlu0 %v404, 16
      %v726 = vpop.permute.xlu0 %725
      %727 = vrot.lane.b32.xlu0 %v405, 16
      %v728 = vpop.permute.xlu0 %727
      %729 = vrot.lane.b32.xlu0 %v406, 16
      %v730 = vpop.permute.xlu0 %729
      %731 = vrot.lane.b32.xlu0 %v407, 16
      %v732 = vpop.permute.xlu0 %731
      %733 = vrot.lane.b32.xlu0 %v408, 16
      %v734 = vpop.permute.xlu0 %733
      %735 = vrot.lane.b32.xlu0 %v409, 16
      %v736 = vpop.permute.xlu0 %735
      %737 = vrot.lane.b32.xlu0 %v410, 16
      %v738 = vpop.permute.xlu0 %737
      %739 = vrot.lane.b32.xlu0 %v411, 16
      %v740 = vpop.permute.xlu0 %739
      %741 = vrot.lane.b32.xlu0 %v412, 16
      %v742 = vpop.permute.xlu0 %741
      %743 = vrot.lane.b32.xlu0 %v413, 16
      %v744 = vpop.permute.xlu0 %743
      %745 = vrot.lane.b32.xlu0 %v414, 16
      %v746 = vpop.permute.xlu0 %745
      %747 = vrot.lane.b32.xlu0 %v415, 16
      %v748 = vpop.permute.xlu0 %747
      %749 = vrot.lane.b32.xlu0 %v416, 16
      %v750 = vpop.permute.xlu0 %749
      %751 = vrot.lane.b32.xlu0 %v417, 16
      %v752 = vpop.permute.xlu0 %751
      %753 = vrot.lane.b32.xlu0 %v418, 16
      %v754 = vpop.permute.xlu0 %753
      %755 = vrot.lane.b32.xlu0 %v419, 16
      %v756 = vpop.permute.xlu0 %755
      %757 = vrot.lane.b32.xlu0 %v420, 16
      %v758 = vpop.permute.xlu0 %757
      %759 = vrot.lane.b32.xlu0 %v421, 16
      %v760 = vpop.permute.xlu0 %759
      %761 = vrot.lane.b32.xlu0 %v422, 16
      %v762 = vpop.permute.xlu0 %761
      %763 = vrot.lane.b32.xlu0 %v423, 16
      %v764 = vpop.permute.xlu0 %763
      %765 = vrot.lane.b32.xlu0 %v424, 16
      %v766 = vpop.permute.xlu0 %765
      %767 = vrot.lane.b32.xlu0 %v425, 16
      %v768 = vpop.permute.xlu0 %767
      %769 = vrot.lane.b32.xlu0 %v426, 16
      %v770 = vpop.permute.xlu0 %769
      %771 = vrot.lane.b32.xlu0 %v427, 16
      %v772 = vpop.permute.xlu0 %771
      %773 = vrot.lane.b32.xlu0 %v428, 16
      %v774 = vpop.permute.xlu0 %773
      %775 = vrot.lane.b32.xlu0 %v429, 16
      %v776 = vpop.permute.xlu0 %775
      %777 = vrot.lane.b32.xlu0 %v430, 16
      %v778 = vpop.permute.xlu0 %777
      %779 = vrot.lane.b32.xlu0 %v431, 16
      %v780 = vpop.permute.xlu0 %779
      %781 = vrot.lane.b32.xlu0 %v432, 16
      %v782 = vpop.permute.xlu0 %781
      %783 = vrot.lane.b32.xlu0 %v433, 16
      %v784 = vpop.permute.xlu0 %783
      %785 = vrot.lane.b32.xlu0 %v434, 16
      %v786 = vpop.permute.xlu0 %785
      %787 = vrot.lane.b32.xlu0 %v435, 16
      %v788 = vpop.permute.xlu0 %787
      %789 = vrot.lane.b32.xlu0 %v436, 16
      %v790 = vpop.permute.xlu0 %789
      %887 = vrot.lane.b32.xlu0 %v296, 24
      %v888 = vpop.permute.xlu0 %887
      %889 = vrot.lane.b32.xlu0 %v297, 24
      %v890 = vpop.permute.xlu0 %889
      %891 = vrot.lane.b32.xlu0 %v298, 24
      %v892 = vpop.permute.xlu0 %891
      %893 = vrot.lane.b32.xlu0 %v299, 24
      %v894 = vpop.permute.xlu0 %893
      %895 = vrot.lane.b32.xlu0 %v300, 24
      %v896 = vpop.permute.xlu0 %895
      %897 = vrot.lane.b32.xlu0 %v301, 24
      %v898 = vpop.permute.xlu0 %897
      %899 = vrot.lane.b32.xlu0 %v302, 24
      %v900 = vpop.permute.xlu0 %899
      %901 = vrot.lane.b32.xlu0 %v303, 24
      %v902 = vpop.permute.xlu0 %901
      %903 = vrot.lane.b32.xlu0 %v304, 24
      %v904 = vpop.permute.xlu0 %903
      %905 = vrot.lane.b32.xlu0 %v305, 24
      %v906 = vpop.permute.xlu0 %905
      %907 = vrot.lane.b32.xlu0 %v306, 24
      %v908 = vpop.permute.xlu0 %907
      %909 = vrot.lane.b32.xlu0 %v307, 24
      %v910 = vpop.permute.xlu0 %909
      %911 = vrot.lane.b32.xlu0 %v308, 24
      %v912 = vpop.permute.xlu0 %911
      %913 = vrot.lane.b32.xlu0 %v309, 24
      %v914 = vpop.permute.xlu0 %913
      %915 = vrot.lane.b32.xlu0 %v310, 24
      %v916 = vpop.permute.xlu0 %915
      %917 = vrot.lane.b32.xlu0 %v311, 24
      %v918 = vpop.permute.xlu0 %917
      %919 = vrot.lane.b32.xlu0 %v312, 24
      %v920 = vpop.permute.xlu0 %919
      %921 = vrot.lane.b32.xlu0 %v313, 24
      %v922 = vpop.permute.xlu0 %921
      %923 = vrot.lane.b32.xlu0 %v314, 24
      %v924 = vpop.permute.xlu0 %923
      %925 = vrot.lane.b32.xlu0 %v315, 24
      %v926 = vpop.permute.xlu0 %925
      %927 = vrot.lane.b32.xlu0 %v316, 24
      %v928 = vpop.permute.xlu0 %927
      %929 = vrot.lane.b32.xlu0 %v317, 24
      %v930 = vpop.permute.xlu0 %929
      %931 = vrot.lane.b32.xlu0 %v318, 24
      %v932 = vpop.permute.xlu0 %931
      %933 = vrot.lane.b32.xlu0 %v319, 24
      %v934 = vpop.permute.xlu0 %933
      %935 = vrot.lane.b32.xlu0 %v320, 24
      %v936 = vpop.permute.xlu0 %935
      %937 = vrot.lane.b32.xlu0 %v321, 24
      %v938 = vpop.permute.xlu0 %937
      %939 = vrot.lane.b32.xlu0 %v322, 24
      %v940 = vpop.permute.xlu0 %939
      %941 = vrot.lane.b32.xlu0 %v323, 24
      %v942 = vpop.permute.xlu0 %941
      %943 = vrot.lane.b32.xlu0 %v324, 24
      %v944 = vpop.permute.xlu0 %943
      %945 = vrot.lane.b32.xlu0 %v325, 24
      %v946 = vpop.permute.xlu0 %945
      %947 = vrot.lane.b32.xlu0 %v326, 24
      %v948 = vpop.permute.xlu0 %947
      %949 = vrot.lane.b32.xlu0 %v327, 24
      %v950 = vpop.permute.xlu0 %949
      %951 = vrot.lane.b32.xlu0 %v328, 24
      %v952 = vpop.permute.xlu0 %951
      %953 = vrot.lane.b32.xlu0 %v329, 24
      %v954 = vpop.permute.xlu0 %953
      %955 = vrot.lane.b32.xlu0 %v330, 24
      %v956 = vpop.permute.xlu0 %955
      %957 = vrot.lane.b32.xlu0 %v331, 24
      %v958 = vpop.permute.xlu0 %957
      %959 = vrot.lane.b32.xlu0 %v332, 24
      %v960 = vpop.permute.xlu0 %959
      %961 = vrot.lane.b32.xlu0 %v333, 24
      %v962 = vpop.permute.xlu0 %961
      %963 = vrot.lane.b32.xlu0 %v334, 24
      %v964 = vpop.permute.xlu0 %963
      %965 = vrot.lane.b32.xlu0 %v335, 24
      %v966 = vpop.permute.xlu0 %965
      %967 = vrot.lane.b32.xlu0 %v336, 24
      %v968 = vpop.permute.xlu0 %967
      %969 = vrot.lane.b32.xlu0 %v337, 24
      %v970 = vpop.permute.xlu0 %969
      %971 = vrot.lane.b32.xlu0 %v338, 24
      %v972 = vpop.permute.xlu0 %971
      %973 = vrot.lane.b32.xlu0 %v339, 24
      %v974 = vpop.permute.xlu0 %973
      %975 = vrot.lane.b32.xlu0 %v340, 24
      %v976 = vpop.permute.xlu0 %975
      %977 = vrot.lane.b32.xlu0 %v437, 24
      %v978 = vpop.permute.xlu0 %977
      %979 = vrot.lane.b32.xlu0 %v438, 24
      %v980 = vpop.permute.xlu0 %979
      %981 = vrot.lane.b32.xlu0 %v439, 24
      %v982 = vpop.permute.xlu0 %981
      %1034 = vrot.lane.b32.xlu0 %v344, 32
      %v1035 = vpop.permute.xlu0 %1034
      %1036 = vrot.lane.b32.xlu0 %v345, 32
      %v1037 = vpop.permute.xlu0 %1036
      %1038 = vrot.lane.b32.xlu0 %v346, 32
      %v1039 = vpop.permute.xlu0 %1038
      %1040 = vrot.lane.b32.xlu0 %v347, 32
      %v1041 = vpop.permute.xlu0 %1040
      %1042 = vrot.lane.b32.xlu0 %v348, 32
      %v1043 = vpop.permute.xlu0 %1042
      %1044 = vrot.lane.b32.xlu0 %v349, 32
      %v1045 = vpop.permute.xlu0 %1044
      %1046 = vrot.lane.b32.xlu0 %v350, 32
      %v1047 = vpop.permute.xlu0 %1046
      %1048 = vrot.lane.b32.xlu0 %v351, 32
      %v1049 = vpop.permute.xlu0 %1048
      %1050 = vrot.lane.b32.xlu0 %v352, 32
      %v1051 = vpop.permute.xlu0 %1050
      %1052 = vrot.lane.b32.xlu0 %v353, 32
      %v1053 = vpop.permute.xlu0 %1052
      %1054 = vrot.lane.b32.xlu0 %v354, 32
      %v1055 = vpop.permute.xlu0 %1054
      %1056 = vrot.lane.b32.xlu0 %v355, 32
      %v1057 = vpop.permute.xlu0 %1056
      %1058 = vrot.lane.b32.xlu0 %v356, 32
      %v1059 = vpop.permute.xlu0 %1058
      %1060 = vrot.lane.b32.xlu0 %v357, 32
      %v1061 = vpop.permute.xlu0 %1060
      %1062 = vrot.lane.b32.xlu0 %v358, 32
      %v1063 = vpop.permute.xlu0 %1062
      %1064 = vrot.lane.b32.xlu0 %v359, 32
      %v1065 = vpop.permute.xlu0 %1064
      %1066 = vrot.lane.b32.xlu0 %v360, 32
      %v1067 = vpop.permute.xlu0 %1066
      %1068 = vrot.lane.b32.xlu0 %v361, 32
      %v1069 = vpop.permute.xlu0 %1068
      %1070 = vrot.lane.b32.xlu0 %v362, 32
      %v1071 = vpop.permute.xlu0 %1070
      %1072 = vrot.lane.b32.xlu0 %v363, 32
      %v1073 = vpop.permute.xlu0 %1072
      %1074 = vrot.lane.b32.xlu0 %v364, 32
      %v1075 = vpop.permute.xlu0 %1074
      %1076 = vrot.lane.b32.xlu0 %v365, 32
      %v1077 = vpop.permute.xlu0 %1076
      %1078 = vrot.lane.b32.xlu0 %v366, 32
      %v1079 = vpop.permute.xlu0 %1078
      %1080 = vrot.lane.b32.xlu0 %v367, 32
      %v1081 = vpop.permute.xlu0 %1080
      %1082 = vrot.lane.b32.xlu0 %v368, 32
      %v1083 = vpop.permute.xlu0 %1082
      %1084 = vrot.lane.b32.xlu0 %v369, 32
      %v1085 = vpop.permute.xlu0 %1084
      %1086 = vrot.lane.b32.xlu0 %v370, 32
      %v1087 = vpop.permute.xlu0 %1086
      %1088 = vrot.lane.b32.xlu0 %v371, 32
      %v1089 = vpop.permute.xlu0 %1088
      %1090 = vrot.lane.b32.xlu0 %v372, 32
      %v1091 = vpop.permute.xlu0 %1090
      %1092 = vrot.lane.b32.xlu0 %v373, 32
      %v1093 = vpop.permute.xlu0 %1092
      %1094 = vrot.lane.b32.xlu0 %v374, 32
      %v1095 = vpop.permute.xlu0 %1094
      %1096 = vrot.lane.b32.xlu0 %v375, 32
      %v1097 = vpop.permute.xlu0 %1096
      %1098 = vrot.lane.b32.xlu0 %v376, 32
      %v1099 = vpop.permute.xlu0 %1098
      %1100 = vrot.lane.b32.xlu0 %v377, 32
      %v1101 = vpop.permute.xlu0 %1100
      %1102 = vrot.lane.b32.xlu0 %v378, 32
      %v1103 = vpop.permute.xlu0 %1102
      %1104 = vrot.lane.b32.xlu0 %v379, 32
      %v1105 = vpop.permute.xlu0 %1104
      %1106 = vrot.lane.b32.xlu0 %v380, 32
      %v1107 = vpop.permute.xlu0 %1106
      %1108 = vrot.lane.b32.xlu0 %v381, 32
      %v1109 = vpop.permute.xlu0 %1108
      %1110 = vrot.lane.b32.xlu0 %v382, 32
      %v1111 = vpop.permute.xlu0 %1110
      %1112 = vrot.lane.b32.xlu0 %v383, 32
      %v1113 = vpop.permute.xlu0 %1112
      %1114 = vrot.lane.b32.xlu0 %v384, 32
      %v1115 = vpop.permute.xlu0 %1114
      %1116 = vrot.lane.b32.xlu0 %v385, 32
      %v1117 = vpop.permute.xlu0 %1116
      %1118 = vrot.lane.b32.xlu0 %v386, 32
      %v1119 = vpop.permute.xlu0 %1118
      %1120 = vrot.lane.b32.xlu0 %v387, 32
      %v1121 = vpop.permute.xlu0 %1120
      %1122 = vrot.lane.b32.xlu0 %v388, 32
      %v1123 = vpop.permute.xlu0 %1122
      %1124 = vrot.lane.b32.xlu0 %v440, 32
      %v1125 = vpop.permute.xlu0 %1124
      %1126 = vrot.lane.b32.xlu0 %v441, 32
      %v1127 = vpop.permute.xlu0 %1126
      %1128 = vrot.lane.b32.xlu0 %v442, 32
      %v1129 = vpop.permute.xlu0 %1128
      %1181 = vrot.lane.b32.xlu0 %v392, 40
      %v1182 = vpop.permute.xlu0 %1181
      %1183 = vrot.lane.b32.xlu0 %v393, 40
      %v1184 = vpop.permute.xlu0 %1183
      %1185 = vrot.lane.b32.xlu0 %v394, 40
      %v1186 = vpop.permute.xlu0 %1185
      %1187 = vrot.lane.b32.xlu0 %v395, 40
      %v1188 = vpop.permute.xlu0 %1187
      %1189 = vrot.lane.b32.xlu0 %v396, 40
      %v1190 = vpop.permute.xlu0 %1189
      %1191 = vrot.lane.b32.xlu0 %v397, 40
      %v1192 = vpop.permute.xlu0 %1191
      %1193 = vrot.lane.b32.xlu0 %v398, 40
      %v1194 = vpop.permute.xlu0 %1193
      %1195 = vrot.lane.b32.xlu0 %v399, 40
      %v1196 = vpop.permute.xlu0 %1195
      %1197 = vrot.lane.b32.xlu0 %v400, 40
      %v1198 = vpop.permute.xlu0 %1197
      %1199 = vrot.lane.b32.xlu0 %v401, 40
      %v1200 = vpop.permute.xlu0 %1199
      %1201 = vrot.lane.b32.xlu0 %v402, 40
      %v1202 = vpop.permute.xlu0 %1201
      %1203 = vrot.lane.b32.xlu0 %v403, 40
      %v1204 = vpop.permute.xlu0 %1203
      %1205 = vrot.lane.b32.xlu0 %v404, 40
      %v1206 = vpop.permute.xlu0 %1205
      %1207 = vrot.lane.b32.xlu0 %v405, 40
      %v1208 = vpop.permute.xlu0 %1207
      %1209 = vrot.lane.b32.xlu0 %v406, 40
      %v1210 = vpop.permute.xlu0 %1209
      %1211 = vrot.lane.b32.xlu0 %v407, 40
      %v1212 = vpop.permute.xlu0 %1211
      %1213 = vrot.lane.b32.xlu0 %v408, 40
      %v1214 = vpop.permute.xlu0 %1213
      %1215 = vrot.lane.b32.xlu0 %v409, 40
      %v1216 = vpop.permute.xlu0 %1215
      %1217 = vrot.lane.b32.xlu0 %v410, 40
      %v1218 = vpop.permute.xlu0 %1217
      %1219 = vrot.lane.b32.xlu0 %v411, 40
      %v1220 = vpop.permute.xlu0 %1219
      %1221 = vrot.lane.b32.xlu0 %v412, 40
      %v1222 = vpop.permute.xlu0 %1221
      %1223 = vrot.lane.b32.xlu0 %v413, 40
      %v1224 = vpop.permute.xlu0 %1223
      %1225 = vrot.lane.b32.xlu0 %v414, 40
      %v1226 = vpop.permute.xlu0 %1225
      %1227 = vrot.lane.b32.xlu0 %v415, 40
      %v1228 = vpop.permute.xlu0 %1227
      %1229 = vrot.lane.b32.xlu0 %v416, 40
      %v1230 = vpop.permute.xlu0 %1229
      %1231 = vrot.lane.b32.xlu0 %v417, 40
      %v1232 = vpop.permute.xlu0 %1231
      %1233 = vrot.lane.b32.xlu0 %v418, 40
      %v1234 = vpop.permute.xlu0 %1233
      %1235 = vrot.lane.b32.xlu0 %v419, 40
      %v1236 = vpop.permute.xlu0 %1235
      %1237 = vrot.lane.b32.xlu0 %v420, 40
      %v1238 = vpop.permute.xlu0 %1237
      %1239 = vrot.lane.b32.xlu0 %v421, 40
      %v1240 = vpop.permute.xlu0 %1239
      %1241 = vrot.lane.b32.xlu0 %v422, 40
      %v1242 = vpop.permute.xlu0 %1241
      %1243 = vrot.lane.b32.xlu0 %v423, 40
      %v1244 = vpop.permute.xlu0 %1243
      %1245 = vrot.lane.b32.xlu0 %v424, 40
      %v1246 = vpop.permute.xlu0 %1245
      %1247 = vrot.lane.b32.xlu0 %v425, 40
      %v1248 = vpop.permute.xlu0 %1247
      %1249 = vrot.lane.b32.xlu0 %v426, 40
      %v1250 = vpop.permute.xlu0 %1249
      %1251 = vrot.lane.b32.xlu0 %v427, 40
      %v1252 = vpop.permute.xlu0 %1251
      %1253 = vrot.lane.b32.xlu0 %v428, 40
      %v1254 = vpop.permute.xlu0 %1253
      %1255 = vrot.lane.b32.xlu0 %v429, 40
      %v1256 = vpop.permute.xlu0 %1255
      %1257 = vrot.lane.b32.xlu0 %v430, 40
      %v1258 = vpop.permute.xlu0 %1257
      %1259 = vrot.lane.b32.xlu0 %v431, 40
      %v1260 = vpop.permute.xlu0 %1259
      %1261 = vrot.lane.b32.xlu0 %v432, 40
      %v1262 = vpop.permute.xlu0 %1261
      %1263 = vrot.lane.b32.xlu0 %v433, 40
      %v1264 = vpop.permute.xlu0 %1263
      %1265 = vrot.lane.b32.xlu0 %v434, 40
      %v1266 = vpop.permute.xlu0 %1265
      %1267 = vrot.lane.b32.xlu0 %v435, 40
      %v1268 = vpop.permute.xlu0 %1267
      %1269 = vrot.lane.b32.xlu0 %v436, 40
      %v1270 = vpop.permute.xlu0 %1269
      %1271 = vrot.lane.b32.xlu0 %v443, 40
      %v1272 = vpop.permute.xlu0 %1271
      %1273 = vrot.lane.b32.xlu0 %v444, 40
      %v1274 = vpop.permute.xlu0 %1273
      %1275 = vrot.lane.b32.xlu0 %v445, 40
      %v1276 = vpop.permute.xlu0 %1275
      %1328 = vrot.lane.b32.xlu0 %v299, 48
      %v1329 = vpop.permute.xlu0 %1328
      %1330 = vrot.lane.b32.xlu0 %v300, 48
      %v1331 = vpop.permute.xlu0 %1330
      %1332 = vrot.lane.b32.xlu0 %v301, 48
      %v1333 = vpop.permute.xlu0 %1332
      %1334 = vrot.lane.b32.xlu0 %v302, 48
      %v1335 = vpop.permute.xlu0 %1334
      %1336 = vrot.lane.b32.xlu0 %v303, 48
      %v1337 = vpop.permute.xlu0 %1336
      %1338 = vrot.lane.b32.xlu0 %v304, 48
      %v1339 = vpop.permute.xlu0 %1338
      %1340 = vrot.lane.b32.xlu0 %v305, 48
      %v1341 = vpop.permute.xlu0 %1340
      %1342 = vrot.lane.b32.xlu0 %v306, 48
      %v1343 = vpop.permute.xlu0 %1342
      %1344 = vrot.lane.b32.xlu0 %v307, 48
      %v1345 = vpop.permute.xlu0 %1344
      %1346 = vrot.lane.b32.xlu0 %v308, 48
      %v1347 = vpop.permute.xlu0 %1346
      %1348 = vrot.lane.b32.xlu0 %v309, 48
      %v1349 = vpop.permute.xlu0 %1348
      %1350 = vrot.lane.b32.xlu0 %v310, 48
      %v1351 = vpop.permute.xlu0 %1350
      %1352 = vrot.lane.b32.xlu0 %v311, 48
      %v1353 = vpop.permute.xlu0 %1352
      %1354 = vrot.lane.b32.xlu0 %v312, 48
      %v1355 = vpop.permute.xlu0 %1354
      %1356 = vrot.lane.b32.xlu0 %v313, 48
      %v1357 = vpop.permute.xlu0 %1356
      %1358 = vrot.lane.b32.xlu0 %v314, 48
      %v1359 = vpop.permute.xlu0 %1358
      %1360 = vrot.lane.b32.xlu0 %v315, 48
      %v1361 = vpop.permute.xlu0 %1360
      %1362 = vrot.lane.b32.xlu0 %v316, 48
      %v1363 = vpop.permute.xlu0 %1362
      %1364 = vrot.lane.b32.xlu0 %v317, 48
      %v1365 = vpop.permute.xlu0 %1364
      %1366 = vrot.lane.b32.xlu0 %v318, 48
      %v1367 = vpop.permute.xlu0 %1366
      %1368 = vrot.lane.b32.xlu0 %v319, 48
      %v1369 = vpop.permute.xlu0 %1368
      %1370 = vrot.lane.b32.xlu0 %v320, 48
      %v1371 = vpop.permute.xlu0 %1370
      %1372 = vrot.lane.b32.xlu0 %v321, 48
      %v1373 = vpop.permute.xlu0 %1372
      %1374 = vrot.lane.b32.xlu0 %v322, 48
      %v1375 = vpop.permute.xlu0 %1374
      %1376 = vrot.lane.b32.xlu0 %v323, 48
      %v1377 = vpop.permute.xlu0 %1376
      %1378 = vrot.lane.b32.xlu0 %v324, 48
      %v1379 = vpop.permute.xlu0 %1378
      %1380 = vrot.lane.b32.xlu0 %v325, 48
      %v1381 = vpop.permute.xlu0 %1380
      %1382 = vrot.lane.b32.xlu0 %v326, 48
      %v1383 = vpop.permute.xlu0 %1382
      %1384 = vrot.lane.b32.xlu0 %v327, 48
      %v1385 = vpop.permute.xlu0 %1384
      %1386 = vrot.lane.b32.xlu0 %v328, 48
      %v1387 = vpop.permute.xlu0 %1386
      %1388 = vrot.lane.b32.xlu0 %v329, 48
      %v1389 = vpop.permute.xlu0 %1388
      %1390 = vrot.lane.b32.xlu0 %v330, 48
      %v1391 = vpop.permute.xlu0 %1390
      %1392 = vrot.lane.b32.xlu0 %v331, 48
      %v1393 = vpop.permute.xlu0 %1392
      %1394 = vrot.lane.b32.xlu0 %v332, 48
      %v1395 = vpop.permute.xlu0 %1394
      %1396 = vrot.lane.b32.xlu0 %v333, 48
      %v1397 = vpop.permute.xlu0 %1396
      %1398 = vrot.lane.b32.xlu0 %v334, 48
      %v1399 = vpop.permute.xlu0 %1398
      %1400 = vrot.lane.b32.xlu0 %v335, 48
      %v1401 = vpop.permute.xlu0 %1400
      %1402 = vrot.lane.b32.xlu0 %v336, 48
      %v1403 = vpop.permute.xlu0 %1402
      %1404 = vrot.lane.b32.xlu0 %v337, 48
      %v1405 = vpop.permute.xlu0 %1404
      %1406 = vrot.lane.b32.xlu0 %v338, 48
      %v1407 = vpop.permute.xlu0 %1406
      %1408 = vrot.lane.b32.xlu0 %v339, 48
      %v1409 = vpop.permute.xlu0 %1408
      %1410 = vrot.lane.b32.xlu0 %v340, 48
      %v1411 = vpop.permute.xlu0 %1410
      %1412 = vrot.lane.b32.xlu0 %v437, 48
      %v1413 = vpop.permute.xlu0 %1412
      %1414 = vrot.lane.b32.xlu0 %v438, 48
      %v1415 = vpop.permute.xlu0 %1414
      %1416 = vrot.lane.b32.xlu0 %v439, 48
      %v1417 = vpop.permute.xlu0 %1416
      %1418 = vrot.lane.b32.xlu0 %v446, 48
      %v1419 = vpop.permute.xlu0 %1418
      %1420 = vrot.lane.b32.xlu0 %v447, 48
      %v1421 = vpop.permute.xlu0 %1420
      %1422 = vrot.lane.b32.xlu0 %v448, 48
      %v1423 = vpop.permute.xlu0 %1422
      %1475 = vrot.lane.b32.xlu0 %v347, 56
      %v1476 = vpop.permute.xlu0 %1475
      %1477 = vrot.lane.b32.xlu0 %v348, 56
      %v1478 = vpop.permute.xlu0 %1477
      %1479 = vrot.lane.b32.xlu0 %v349, 56
      %v1480 = vpop.permute.xlu0 %1479
      %1481 = vrot.lane.b32.xlu0 %v350, 56
      %v1482 = vpop.permute.xlu0 %1481
      %1483 = vrot.lane.b32.xlu0 %v351, 56
      %v1484 = vpop.permute.xlu0 %1483
      %1485 = vrot.lane.b32.xlu0 %v352, 56
      %v1486 = vpop.permute.xlu0 %1485
      %1487 = vrot.lane.b32.xlu0 %v353, 56
      %v1488 = vpop.permute.xlu0 %1487
      %1489 = vrot.lane.b32.xlu0 %v354, 56
      %v1490 = vpop.permute.xlu0 %1489
      %1491 = vrot.lane.b32.xlu0 %v355, 56
      %v1492 = vpop.permute.xlu0 %1491
      %1493 = vrot.lane.b32.xlu0 %v356, 56
      %v1494 = vpop.permute.xlu0 %1493
      %1495 = vrot.lane.b32.xlu0 %v357, 56
      %v1496 = vpop.permute.xlu0 %1495
      %1497 = vrot.lane.b32.xlu0 %v358, 56
      %v1498 = vpop.permute.xlu0 %1497
      %1499 = vrot.lane.b32.xlu0 %v359, 56
      %v1500 = vpop.permute.xlu0 %1499
      %1501 = vrot.lane.b32.xlu0 %v360, 56
      %v1502 = vpop.permute.xlu0 %1501
      %1503 = vrot.lane.b32.xlu0 %v361, 56
      %v1504 = vpop.permute.xlu0 %1503
      %1505 = vrot.lane.b32.xlu0 %v362, 56
      %v1506 = vpop.permute.xlu0 %1505
      %1507 = vrot.lane.b32.xlu0 %v363, 56
      %v1508 = vpop.permute.xlu0 %1507
      %1509 = vrot.lane.b32.xlu0 %v364, 56
      %v1510 = vpop.permute.xlu0 %1509
      %1511 = vrot.lane.b32.xlu0 %v365, 56
      %v1512 = vpop.permute.xlu0 %1511
      %1513 = vrot.lane.b32.xlu0 %v366, 56
      %v1514 = vpop.permute.xlu0 %1513
      %1515 = vrot.lane.b32.xlu0 %v367, 56
      %v1516 = vpop.permute.xlu0 %1515
      %1517 = vrot.lane.b32.xlu0 %v368, 56
      %v1518 = vpop.permute.xlu0 %1517
      %1519 = vrot.lane.b32.xlu0 %v369, 56
      %v1520 = vpop.permute.xlu0 %1519
      %1521 = vrot.lane.b32.xlu0 %v370, 56
      %v1522 = vpop.permute.xlu0 %1521
      %1523 = vrot.lane.b32.xlu0 %v371, 56
      %v1524 = vpop.permute.xlu0 %1523
      %1525 = vrot.lane.b32.xlu0 %v372, 56
      %v1526 = vpop.permute.xlu0 %1525
      %1527 = vrot.lane.b32.xlu0 %v373, 56
      %v1528 = vpop.permute.xlu0 %1527
      %1529 = vrot.lane.b32.xlu0 %v374, 56
      %v1530 = vpop.permute.xlu0 %1529
      %1531 = vrot.lane.b32.xlu0 %v375, 56
      %v1532 = vpop.permute.xlu0 %1531
      %1533 = vrot.lane.b32.xlu0 %v376, 56
      %v1534 = vpop.permute.xlu0 %1533
      %1535 = vrot.lane.b32.xlu0 %v377, 56
      %v1536 = vpop.permute.xlu0 %1535
      %1537 = vrot.lane.b32.xlu0 %v378, 56
      %v1538 = vpop.permute.xlu0 %1537
      %1539 = vrot.lane.b32.xlu0 %v379, 56
      %v1540 = vpop.permute.xlu0 %1539
      %1541 = vrot.lane.b32.xlu0 %v380, 56
      %v1542 = vpop.permute.xlu0 %1541
      %1543 = vrot.lane.b32.xlu0 %v381, 56
      %v1544 = vpop.permute.xlu0 %1543
      %1545 = vrot.lane.b32.xlu0 %v382, 56
      %v1546 = vpop.permute.xlu0 %1545
      %1547 = vrot.lane.b32.xlu0 %v383, 56
      %v1548 = vpop.permute.xlu0 %1547
      %1549 = vrot.lane.b32.xlu0 %v384, 56
      %v1550 = vpop.permute.xlu0 %1549
      %1551 = vrot.lane.b32.xlu0 %v385, 56
      %v1552 = vpop.permute.xlu0 %1551
      %1553 = vrot.lane.b32.xlu0 %v386, 56
      %v1554 = vpop.permute.xlu0 %1553
      %1555 = vrot.lane.b32.xlu0 %v387, 56
      %v1556 = vpop.permute.xlu0 %1555
      %1557 = vrot.lane.b32.xlu0 %v388, 56
      %v1558 = vpop.permute.xlu0 %1557
      %1559 = vrot.lane.b32.xlu0 %v440, 56
      %v1560 = vpop.permute.xlu0 %1559
      %1561 = vrot.lane.b32.xlu0 %v441, 56
      %v1562 = vpop.permute.xlu0 %1561
      %1563 = vrot.lane.b32.xlu0 %v442, 56
      %v1564 = vpop.permute.xlu0 %1563
      %1565 = vrot.lane.b32.xlu0 %v449, 56
      %v1566 = vpop.permute.xlu0 %1565
      %1567 = vrot.lane.b32.xlu0 %v450, 56
      %v1568 = vpop.permute.xlu0 %1567
      %1569 = vrot.lane.b32.xlu0 %v451, 56
      %v1570 = vpop.permute.xlu0 %1569
      %1622 = vrot.lane.b32.xlu0 %v395, 64
      %v1623 = vpop.permute.xlu0 %1622
      %1624 = vrot.lane.b32.xlu0 %v396, 64
      %v1625 = vpop.permute.xlu0 %1624
      %1626 = vrot.lane.b32.xlu0 %v397, 64
      %v1627 = vpop.permute.xlu0 %1626
      %1628 = vrot.lane.b32.xlu0 %v398, 64
      %v1629 = vpop.permute.xlu0 %1628
      %1630 = vrot.lane.b32.xlu0 %v399, 64
      %v1631 = vpop.permute.xlu0 %1630
      %1632 = vrot.lane.b32.xlu0 %v400, 64
      %v1633 = vpop.permute.xlu0 %1632
      %1634 = vrot.lane.b32.xlu0 %v401, 64
      %v1635 = vpop.permute.xlu0 %1634
      %1636 = vrot.lane.b32.xlu0 %v402, 64
      %v1637 = vpop.permute.xlu0 %1636
      %1638 = vrot.lane.b32.xlu0 %v403, 64
      %v1639 = vpop.permute.xlu0 %1638
      %1640 = vrot.lane.b32.xlu0 %v404, 64
      %v1641 = vpop.permute.xlu0 %1640
      %1642 = vrot.lane.b32.xlu0 %v405, 64
      %v1643 = vpop.permute.xlu0 %1642
      %1644 = vrot.lane.b32.xlu0 %v406, 64
      %v1645 = vpop.permute.xlu0 %1644
      %1646 = vrot.lane.b32.xlu0 %v407, 64
      %v1647 = vpop.permute.xlu0 %1646
      %1648 = vrot.lane.b32.xlu0 %v408, 64
      %v1649 = vpop.permute.xlu0 %1648
      %1650 = vrot.lane.b32.xlu0 %v409, 64
      %v1651 = vpop.permute.xlu0 %1650
      %1652 = vrot.lane.b32.xlu0 %v410, 64
      %v1653 = vpop.permute.xlu0 %1652
      %1654 = vrot.lane.b32.xlu0 %v411, 64
      %v1655 = vpop.permute.xlu0 %1654
      %1656 = vrot.lane.b32.xlu0 %v412, 64
      %v1657 = vpop.permute.xlu0 %1656
      %1658 = vrot.lane.b32.xlu0 %v413, 64
      %v1659 = vpop.permute.xlu0 %1658
      %1660 = vrot.lane.b32.xlu0 %v414, 64
      %v1661 = vpop.permute.xlu0 %1660
      %1662 = vrot.lane.b32.xlu0 %v415, 64
      %v1663 = vpop.permute.xlu0 %1662
      %1664 = vrot.lane.b32.xlu0 %v416, 64
      %v1665 = vpop.permute.xlu0 %1664
      %1666 = vrot.lane.b32.xlu0 %v417, 64
      %v1667 = vpop.permute.xlu0 %1666
      %1668 = vrot.lane.b32.xlu0 %v418, 64
      %v1669 = vpop.permute.xlu0 %1668
      %1670 = vrot.lane.b32.xlu0 %v419, 64
      %v1671 = vpop.permute.xlu0 %1670
      %1672 = vrot.lane.b32.xlu0 %v420, 64
      %v1673 = vpop.permute.xlu0 %1672
      %1674 = vrot.lane.b32.xlu0 %v421, 64
      %v1675 = vpop.permute.xlu0 %1674
      %1676 = vrot.lane.b32.xlu0 %v422, 64
      %v1677 = vpop.permute.xlu0 %1676
      %1678 = vrot.lane.b32.xlu0 %v423, 64
      %v1679 = vpop.permute.xlu0 %1678
      %1680 = vrot.lane.b32.xlu0 %v424, 64
      %v1681 = vpop.permute.xlu0 %1680
      %1682 = vrot.lane.b32.xlu0 %v425, 64
      %v1683 = vpop.permute.xlu0 %1682
      %1684 = vrot.lane.b32.xlu0 %v426, 64
      %v1685 = vpop.permute.xlu0 %1684
      %1686 = vrot.lane.b32.xlu0 %v427, 64
      %v1687 = vpop.permute.xlu0 %1686
      %1688 = vrot.lane.b32.xlu0 %v428, 64
      %v1689 = vpop.permute.xlu0 %1688
      %1690 = vrot.lane.b32.xlu0 %v429, 64
      %v1691 = vpop.permute.xlu0 %1690
      %1692 = vrot.lane.b32.xlu0 %v430, 64
      %v1693 = vpop.permute.xlu0 %1692
      %1694 = vrot.lane.b32.xlu0 %v431, 64
      %v1695 = vpop.permute.xlu0 %1694
      %1696 = vrot.lane.b32.xlu0 %v432, 64
      %v1697 = vpop.permute.xlu0 %1696
      %1698 = vrot.lane.b32.xlu0 %v433, 64
      %v1699 = vpop.permute.xlu0 %1698
      %1700 = vrot.lane.b32.xlu0 %v434, 64
      %v1701 = vpop.permute.xlu0 %1700
      %1702 = vrot.lane.b32.xlu0 %v435, 64
      %v1703 = vpop.permute.xlu0 %1702
      %1704 = vrot.lane.b32.xlu0 %v436, 64
      %v1705 = vpop.permute.xlu0 %1704
      %1706 = vrot.lane.b32.xlu0 %v443, 64
      %v1707 = vpop.permute.xlu0 %1706
      %1708 = vrot.lane.b32.xlu0 %v444, 64
      %v1709 = vpop.permute.xlu0 %1708
      %1710 = vrot.lane.b32.xlu0 %v445, 64
      %v1711 = vpop.permute.xlu0 %1710
      %1712 = vrot.lane.b32.xlu0 %v452, 64
      %v1713 = vpop.permute.xlu0 %1712
      %1714 = vrot.lane.b32.xlu0 %v453, 64
      %v1715 = vpop.permute.xlu0 %1714
      %1716 = vrot.lane.b32.xlu0 %v454, 64
      %v1717 = vpop.permute.xlu0 %1716
      %vm1766 = vcmask 64512
      %v1767 = vsel %vm1766, %v293, %v504
      %v1768 = vsel %vm1766, %v294, %v506
      %v1769 = vsel %vm1766, %v295, %v508
      %v1770 = vsel %vm1766, %v296, %v510
      %v1771 = vsel %vm1766, %v297, %v512
      %v1772 = vsel %vm1766, %v298, %v514
      %v1773 = vsel %vm1766, %v299, %v516
      %v1774 = vsel %vm1766, %v300, %v518
      %v1775 = vsel %vm1766, %v301, %v520
      %v1776 = vsel %vm1766, %v302, %v522
      %v1777 = vsel %vm1766, %v303, %v524
      %v1778 = vsel %vm1766, %v304, %v526
      %v1779 = vsel %vm1766, %v305, %v528
      %v1780 = vsel %vm1766, %v306, %v530
      %v1781 = vsel %vm1766, %v307, %v532
      %v1782 = vsel %vm1766, %v308, %v534
      %v1783 = vsel %vm1766, %v309, %v536
      %v1784 = vsel %vm1766, %v310, %v538
      %v1785 = vsel %vm1766, %v311, %v540
      %v1786 = vsel %vm1766, %v312, %v542
      %v1787 = vsel %vm1766, %v313, %v544
      %v1788 = vsel %vm1766, %v314, %v546
      %v1789 = vsel %vm1766, %v315, %v548
      %v1790 = vsel %vm1766, %v316, %v550
      %v1791 = vsel %vm1766, %v317, %v552
      %v1792 = vsel %vm1766, %v318, %v554
      %v1793 = vsel %vm1766, %v319, %v556
      %v1794 = vsel %vm1766, %v320, %v558
      %v1795 = vsel %vm1766, %v321, %v560
      %v1796 = vsel %vm1766, %v322, %v562
      %v1797 = vsel %vm1766, %v323, %v564
      %v1798 = vsel %vm1766, %v324, %v566
      %v1799 = vsel %vm1766, %v325, %v568
      %v1800 = vsel %vm1766, %v326, %v570
      %v1801 = vsel %vm1766, %v327, %v572
      %v1802 = vsel %vm1766, %v328, %v574
      %v1803 = vsel %vm1766, %v329, %v576
      %v1804 = vsel %vm1766, %v330, %v578
      %v1805 = vsel %vm1766, %v331, %v580
      %v1806 = vsel %vm1766, %v332, %v582
      %v1807 = vsel %vm1766, %v333, %v584
      %v1808 = vsel %vm1766, %v334, %v586
      %v1809 = vsel %vm1766, %v335, %v588
      %v1810 = vsel %vm1766, %v336, %v590
      %v1811 = vsel %vm1766, %v337, %v592
      %v1812 = vsel %vm1766, %v338, %v594
      %v1813 = vsel %vm1766, %v339, %v596
      %v1814 = vsel %vm1766, %v340, %v598
      %vm1815 = vcmask 130048
      %v1816 = vsel %vm1815, %v1767, %v696
      %v1817 = vsel %vm1815, %v1768, %v698
      %v1818 = vsel %vm1815, %v1769, %v700
      %v1819 = vsel %vm1815, %v1770, %v702
      %v1820 = vsel %vm1815, %v1771, %v704
      %v1821 = vsel %vm1815, %v1772, %v706
      %v1822 = vsel %vm1815, %v1773, %v708
      %v1823 = vsel %vm1815, %v1774, %v710
      %v1824 = vsel %vm1815, %v1775, %v712
      %v1825 = vsel %vm1815, %v1776, %v714
      %v1826 = vsel %vm1815, %v1777, %v716
      %v1827 = vsel %vm1815, %v1778, %v718
      %v1828 = vsel %vm1815, %v1779, %v720
      %v1829 = vsel %vm1815, %v1780, %v722
      %v1830 = vsel %vm1815, %v1781, %v724
      %v1831 = vsel %vm1815, %v1782, %v726
      %v1832 = vsel %vm1815, %v1783, %v728
      %v1833 = vsel %vm1815, %v1784, %v730
      %v1834 = vsel %vm1815, %v1785, %v732
      %v1835 = vsel %vm1815, %v1786, %v734
      %v1836 = vsel %vm1815, %v1787, %v736
      %v1837 = vsel %vm1815, %v1788, %v738
      %v1838 = vsel %vm1815, %v1789, %v740
      %v1839 = vsel %vm1815, %v1790, %v742
      %v1840 = vsel %vm1815, %v1791, %v744
      %v1841 = vsel %vm1815, %v1792, %v746
      %v1842 = vsel %vm1815, %v1793, %v748
      %v1843 = vsel %vm1815, %v1794, %v750
      %v1844 = vsel %vm1815, %v1795, %v752
      %v1845 = vsel %vm1815, %v1796, %v754
      %v1846 = vsel %vm1815, %v1797, %v756
      %v1847 = vsel %vm1815, %v1798, %v758
      %v1848 = vsel %vm1815, %v1799, %v760
      %v1849 = vsel %vm1815, %v1800, %v762
      %v1850 = vsel %vm1815, %v1801, %v764
      %v1851 = vsel %vm1815, %v1802, %v766
      %v1852 = vsel %vm1815, %v1803, %v768
      %v1853 = vsel %vm1815, %v1804, %v770
      %v1854 = vsel %vm1815, %v1805, %v772
      %v1855 = vsel %vm1815, %v1806, %v774
      %v1856 = vsel %vm1815, %v1807, %v776
      %v1857 = vsel %vm1815, %v1808, %v778
      %v1858 = vsel %vm1815, %v1809, %v780
      %v1859 = vsel %vm1815, %v1810, %v782
      %v1860 = vsel %vm1815, %v1811, %v784
      %v1861 = vsel %vm1815, %v1812, %v786
      %v1862 = vsel %vm1815, %v1813, %v788
      %v1863 = vsel %vm1815, %v1814, %v790
      %vm1864 = vcmask 195584
      %v1865 = vsel %vm1864, %v1816, %v888
      %v1866 = vsel %vm1864, %v1817, %v890
      %v1867 = vsel %vm1864, %v1818, %v892
      %v1868 = vsel %vm1864, %v1819, %v894
      %v1869 = vsel %vm1864, %v1820, %v896
      %v1870 = vsel %vm1864, %v1821, %v898
      %v1871 = vsel %vm1864, %v1822, %v900
      %v1872 = vsel %vm1864, %v1823, %v902
      %v1873 = vsel %vm1864, %v1824, %v904
      %v1874 = vsel %vm1864, %v1825, %v906
      %v1875 = vsel %vm1864, %v1826, %v908
      %v1876 = vsel %vm1864, %v1827, %v910
      %v1877 = vsel %vm1864, %v1828, %v912
      %v1878 = vsel %vm1864, %v1829, %v914
      %v1879 = vsel %vm1864, %v1830, %v916
      %v1880 = vsel %vm1864, %v1831, %v918
      %v1881 = vsel %vm1864, %v1832, %v920
      %v1882 = vsel %vm1864, %v1833, %v922
      %v1883 = vsel %vm1864, %v1834, %v924
      %v1884 = vsel %vm1864, %v1835, %v926
      %v1885 = vsel %vm1864, %v1836, %v928
      %v1886 = vsel %vm1864, %v1837, %v930
      %v1887 = vsel %vm1864, %v1838, %v932
      %v1888 = vsel %vm1864, %v1839, %v934
      %v1889 = vsel %vm1864, %v1840, %v936
      %v1890 = vsel %vm1864, %v1841, %v938
      %v1891 = vsel %vm1864, %v1842, %v940
      %v1892 = vsel %vm1864, %v1843, %v942
      %v1893 = vsel %vm1864, %v1844, %v944
      %v1894 = vsel %vm1864, %v1845, %v946
      %v1895 = vsel %vm1864, %v1846, %v948
      %v1896 = vsel %vm1864, %v1847, %v950
      %v1897 = vsel %vm1864, %v1848, %v952
      %v1898 = vsel %vm1864, %v1849, %v954
      %v1899 = vsel %vm1864, %v1850, %v956
      %v1900 = vsel %vm1864, %v1851, %v958
      %v1901 = vsel %vm1864, %v1852, %v960
      %v1902 = vsel %vm1864, %v1853, %v962
      %v1903 = vsel %vm1864, %v1854, %v964
      %v1904 = vsel %vm1864, %v1855, %v966
      %v1905 = vsel %vm1864, %v1856, %v968
      %v1906 = vsel %vm1864, %v1857, %v970
      %v1907 = vsel %vm1864, %v1858, %v972
      %v1908 = vsel %vm1864, %v1859, %v974
      %v1909 = vsel %vm1864, %v1860, %v976
      %v1910 = vsel %vm1864, %v1861, %v978
      %v1911 = vsel %vm1864, %v1862, %v980
      %v1912 = vsel %vm1864, %v1863, %v982
      %vm1913 = vcmask 261120
      %v1914 = vsel %vm1913, %v1865, %v1035
      %v1915 = vsel %vm1913, %v1866, %v1037
      %v1916 = vsel %vm1913, %v1867, %v1039
      %v1917 = vsel %vm1913, %v1868, %v1041
      %v1918 = vsel %vm1913, %v1869, %v1043
      %v1919 = vsel %vm1913, %v1870, %v1045
      %v1920 = vsel %vm1913, %v1871, %v1047
      %v1921 = vsel %vm1913, %v1872, %v1049
      %v1922 = vsel %vm1913, %v1873, %v1051
      %v1923 = vsel %vm1913, %v1874, %v1053
      %v1924 = vsel %vm1913, %v1875, %v1055
      %v1925 = vsel %vm1913, %v1876, %v1057
      %v1926 = vsel %vm1913, %v1877, %v1059
      %v1927 = vsel %vm1913, %v1878, %v1061
      %v1928 = vsel %vm1913, %v1879, %v1063
      %v1929 = vsel %vm1913, %v1880, %v1065
      %v1930 = vsel %vm1913, %v1881, %v1067
      %v1931 = vsel %vm1913, %v1882, %v1069
      %v1932 = vsel %vm1913, %v1883, %v1071
      %v1933 = vsel %vm1913, %v1884, %v1073
      %v1934 = vsel %vm1913, %v1885, %v1075
      %v1935 = vsel %vm1913, %v1886, %v1077
      %v1936 = vsel %vm1913, %v1887, %v1079
      %v1937 = vsel %vm1913, %v1888, %v1081
      %v1938 = vsel %vm1913, %v1889, %v1083
      %v1939 = vsel %vm1913, %v1890, %v1085
      %v1940 = vsel %vm1913, %v1891, %v1087
      %v1941 = vsel %vm1913, %v1892, %v1089
      %v1942 = vsel %vm1913, %v1893, %v1091
      %v1943 = vsel %vm1913, %v1894, %v1093
      %v1944 = vsel %vm1913, %v1895, %v1095
      %v1945 = vsel %vm1913, %v1896, %v1097
      %v1946 = vsel %vm1913, %v1897, %v1099
      %v1947 = vsel %vm1913, %v1898, %v1101
      %v1948 = vsel %vm1913, %v1899, %v1103
      %v1949 = vsel %vm1913, %v1900, %v1105
      %v1950 = vsel %vm1913, %v1901, %v1107
      %v1951 = vsel %vm1913, %v1902, %v1109
      %v1952 = vsel %vm1913, %v1903, %v1111
      %v1953 = vsel %vm1913, %v1904, %v1113
      %v1954 = vsel %vm1913, %v1905, %v1115
      %v1955 = vsel %vm1913, %v1906, %v1117
      %v1956 = vsel %vm1913, %v1907, %v1119
      %v1957 = vsel %vm1913, %v1908, %v1121
      %v1958 = vsel %vm1913, %v1909, %v1123
      %v1959 = vsel %vm1913, %v1910, %v1125
      %v1960 = vsel %vm1913, %v1911, %v1127
      %v1961 = vsel %vm1913, %v1912, %v1129
      %vm1962 = vcmask 326656
      %v1963 = vsel %vm1962, %v1914, %v1182
      %v1964 = vsel %vm1962, %v1915, %v1184
      %v1965 = vsel %vm1962, %v1916, %v1186
      %v1966 = vsel %vm1962, %v1917, %v1188
      %v1967 = vsel %vm1962, %v1918, %v1190
      %v1968 = vsel %vm1962, %v1919, %v1192
      %v1969 = vsel %vm1962, %v1920, %v1194
      %v1970 = vsel %vm1962, %v1921, %v1196
      %v1971 = vsel %vm1962, %v1922, %v1198
      %v1972 = vsel %vm1962, %v1923, %v1200
      %v1973 = vsel %vm1962, %v1924, %v1202
      %v1974 = vsel %vm1962, %v1925, %v1204
      %v1975 = vsel %vm1962, %v1926, %v1206
      %v1976 = vsel %vm1962, %v1927, %v1208
      %v1977 = vsel %vm1962, %v1928, %v1210
      %v1978 = vsel %vm1962, %v1929, %v1212
      %v1979 = vsel %vm1962, %v1930, %v1214
      %v1980 = vsel %vm1962, %v1931, %v1216
      %v1981 = vsel %vm1962, %v1932, %v1218
      %v1982 = vsel %vm1962, %v1933, %v1220
      %v1983 = vsel %vm1962, %v1934, %v1222
      %v1984 = vsel %vm1962, %v1935, %v1224
      %v1985 = vsel %vm1962, %v1936, %v1226
      %v1986 = vsel %vm1962, %v1937, %v1228
      %v1987 = vsel %vm1962, %v1938, %v1230
      %v1988 = vsel %vm1962, %v1939, %v1232
      %v1989 = vsel %vm1962, %v1940, %v1234
      %v1990 = vsel %vm1962, %v1941, %v1236
      %v1991 = vsel %vm1962, %v1942, %v1238
      %v1992 = vsel %vm1962, %v1943, %v1240
      %v1993 = vsel %vm1962, %v1944, %v1242
      %v1994 = vsel %vm1962, %v1945, %v1244
      %v1995 = vsel %vm1962, %v1946, %v1246
      %v1996 = vsel %vm1962, %v1947, %v1248
      %v1997 = vsel %vm1962, %v1948, %v1250
      %v1998 = vsel %vm1962, %v1949, %v1252
      %v1999 = vsel %vm1962, %v1950, %v1254
      %v2000 = vsel %vm1962, %v1951, %v1256
      %v2001 = vsel %vm1962, %v1952, %v1258
      %v2002 = vsel %vm1962, %v1953, %v1260
      %v2003 = vsel %vm1962, %v1954, %v1262
      %v2004 = vsel %vm1962, %v1955, %v1264
      %v2005 = vsel %vm1962, %v1956, %v1266
      %v2006 = vsel %vm1962, %v1957, %v1268
      %v2007 = vsel %vm1962, %v1958, %v1270
      %v2008 = vsel %vm1962, %v1959, %v1272
      %v2009 = vsel %vm1962, %v1960, %v1274
      %v2010 = vsel %vm1962, %v1961, %v1276
      %vm2011 = vcmask 392192
      %v2012 = vsel %vm2011, %v1963, %v1329
      %v2013 = vsel %vm2011, %v1964, %v1331
      %v2014 = vsel %vm2011, %v1965, %v1333
      %v2015 = vsel %vm2011, %v1966, %v1335
      %v2016 = vsel %vm2011, %v1967, %v1337
      %v2017 = vsel %vm2011, %v1968, %v1339
      %v2018 = vsel %vm2011, %v1969, %v1341
      %v2019 = vsel %vm2011, %v1970, %v1343
      %v2020 = vsel %vm2011, %v1971, %v1345
      %v2021 = vsel %vm2011, %v1972, %v1347
      %v2022 = vsel %vm2011, %v1973, %v1349
      %v2023 = vsel %vm2011, %v1974, %v1351
      %v2024 = vsel %vm2011, %v1975, %v1353
      %v2025 = vsel %vm2011, %v1976, %v1355
      %v2026 = vsel %vm2011, %v1977, %v1357
      %v2027 = vsel %vm2011, %v1978, %v1359
      %v2028 = vsel %vm2011, %v1979, %v1361
      %v2029 = vsel %vm2011, %v1980, %v1363
      %v2030 = vsel %vm2011, %v1981, %v1365
      %v2031 = vsel %vm2011, %v1982, %v1367
      %v2032 = vsel %vm2011, %v1983, %v1369
      %v2033 = vsel %vm2011, %v1984, %v1371
      %v2034 = vsel %vm2011, %v1985, %v1373
      %v2035 = vsel %vm2011, %v1986, %v1375
      %v2036 = vsel %vm2011, %v1987, %v1377
      %v2037 = vsel %vm2011, %v1988, %v1379
      %v2038 = vsel %vm2011, %v1989, %v1381
      %v2039 = vsel %vm2011, %v1990, %v1383
      %v2040 = vsel %vm2011, %v1991, %v1385
      %v2041 = vsel %vm2011, %v1992, %v1387
      %v2042 = vsel %vm2011, %v1993, %v1389
      %v2043 = vsel %vm2011, %v1994, %v1391
      %v2044 = vsel %vm2011, %v1995, %v1393
      %v2045 = vsel %vm2011, %v1996, %v1395
      %v2046 = vsel %vm2011, %v1997, %v1397
      %v2047 = vsel %vm2011, %v1998, %v1399
      %v2048 = vsel %vm2011, %v1999, %v1401
      %v2049 = vsel %vm2011, %v2000, %v1403
      %v2050 = vsel %vm2011, %v2001, %v1405
      %v2051 = vsel %vm2011, %v2002, %v1407
      %v2052 = vsel %vm2011, %v2003, %v1409
      %v2053 = vsel %vm2011, %v2004, %v1411
      %v2054 = vsel %vm2011, %v2005, %v1413
      %v2055 = vsel %vm2011, %v2006, %v1415
      %v2056 = vsel %vm2011, %v2007, %v1417
      %v2057 = vsel %vm2011, %v2008, %v1419
      %v2058 = vsel %vm2011, %v2009, %v1421
      %v2059 = vsel %vm2011, %v2010, %v1423
      %vm2060 = vcmask 457728
      %v2061 = vsel %vm2060, %v2012, %v1476
      %v2062 = vsel %vm2060, %v2013, %v1478
      %v2063 = vsel %vm2060, %v2014, %v1480
      %v2064 = vsel %vm2060, %v2015, %v1482
      %v2065 = vsel %vm2060, %v2016, %v1484
      %v2066 = vsel %vm2060, %v2017, %v1486
      %v2067 = vsel %vm2060, %v2018, %v1488
      %v2068 = vsel %vm2060, %v2019, %v1490
      %v2069 = vsel %vm2060, %v2020, %v1492
      %v2070 = vsel %vm2060, %v2021, %v1494
      %v2071 = vsel %vm2060, %v2022, %v1496
      %v2072 = vsel %vm2060, %v2023, %v1498
      %v2073 = vsel %vm2060, %v2024, %v1500
      %v2074 = vsel %vm2060, %v2025, %v1502
      %v2075 = vsel %vm2060, %v2026, %v1504
      %v2076 = vsel %vm2060, %v2027, %v1506
      %v2077 = vsel %vm2060, %v2028, %v1508
      %v2078 = vsel %vm2060, %v2029, %v1510
      %v2079 = vsel %vm2060, %v2030, %v1512
      %v2080 = vsel %vm2060, %v2031, %v1514
      %v2081 = vsel %vm2060, %v2032, %v1516
      %v2082 = vsel %vm2060, %v2033, %v1518
      %v2083 = vsel %vm2060, %v2034, %v1520
      %v2084 = vsel %vm2060, %v2035, %v1522
      %v2085 = vsel %vm2060, %v2036, %v1524
      %v2086 = vsel %vm2060, %v2037, %v1526
      %v2087 = vsel %vm2060, %v2038, %v1528
      %v2088 = vsel %vm2060, %v2039, %v1530
      %v2089 = vsel %vm2060, %v2040, %v1532
      %v2090 = vsel %vm2060, %v2041, %v1534
      %v2091 = vsel %vm2060, %v2042, %v1536
      %v2092 = vsel %vm2060, %v2043, %v1538
      %v2093 = vsel %vm2060, %v2044, %v1540
      %v2094 = vsel %vm2060, %v2045, %v1542
      %v2095 = vsel %vm2060, %v2046, %v1544
      %v2096 = vsel %vm2060, %v2047, %v1546
      %v2097 = vsel %vm2060, %v2048, %v1548
      %v2098 = vsel %vm2060, %v2049, %v1550
      %v2099 = vsel %vm2060, %v2050, %v1552
      %v2100 = vsel %vm2060, %v2051, %v1554
      %v2101 = vsel %vm2060, %v2052, %v1556
      %v2102 = vsel %vm2060, %v2053, %v1558
      %v2103 = vsel %vm2060, %v2054, %v1560
      %v2104 = vsel %vm2060, %v2055, %v1562
      %v2105 = vsel %vm2060, %v2056, %v1564
      %v2106 = vsel %vm2060, %v2057, %v1566
      %v2107 = vsel %vm2060, %v2058, %v1568
      %v2108 = vsel %vm2060, %v2059, %v1570
      %vm2109 = vcmask 523264
      %v2110 = vsel %vm2109, %v2061, %v1623
      %v2111 = vsel %vm2109, %v2062, %v1625
      %v2112 = vsel %vm2109, %v2063, %v1627
      %v2113 = vsel %vm2109, %v2064, %v1629
      %v2114 = vsel %vm2109, %v2065, %v1631
      %v2115 = vsel %vm2109, %v2066, %v1633
      %v2116 = vsel %vm2109, %v2067, %v1635
      %v2117 = vsel %vm2109, %v2068, %v1637
      %v2118 = vsel %vm2109, %v2069, %v1639
      %v2119 = vsel %vm2109, %v2070, %v1641
      %v2120 = vsel %vm2109, %v2071, %v1643
      %v2121 = vsel %vm2109, %v2072, %v1645
      %v2122 = vsel %vm2109, %v2073, %v1647
      %v2123 = vsel %vm2109, %v2074, %v1649
      %v2124 = vsel %vm2109, %v2075, %v1651
      %v2125 = vsel %vm2109, %v2076, %v1653
      %v2126 = vsel %vm2109, %v2077, %v1655
      %v2127 = vsel %vm2109, %v2078, %v1657
      %v2128 = vsel %vm2109, %v2079, %v1659
      %v2129 = vsel %vm2109, %v2080, %v1661
      %v2130 = vsel %vm2109, %v2081, %v1663
      %v2131 = vsel %vm2109, %v2082, %v1665
      %v2132 = vsel %vm2109, %v2083, %v1667
      %v2133 = vsel %vm2109, %v2084, %v1669
      %v2134 = vsel %vm2109, %v2085, %v1671
      %v2135 = vsel %vm2109, %v2086, %v1673
      %v2136 = vsel %vm2109, %v2087, %v1675
      %v2137 = vsel %vm2109, %v2088, %v1677
      %v2138 = vsel %vm2109, %v2089, %v1679
      %v2139 = vsel %vm2109, %v2090, %v1681
      %v2140 = vsel %vm2109, %v2091, %v1683
      %v2141 = vsel %vm2109, %v2092, %v1685
      %v2142 = vsel %vm2109, %v2093, %v1687
      %v2143 = vsel %vm2109, %v2094, %v1689
      %v2144 = vsel %vm2109, %v2095, %v1691
      %v2145 = vsel %vm2109, %v2096, %v1693
      %v2146 = vsel %vm2109, %v2097, %v1695
      %v2147 = vsel %vm2109, %v2098, %v1697
      %v2148 = vsel %vm2109, %v2099, %v1699
      %v2149 = vsel %vm2109, %v2100, %v1701
      %v2150 = vsel %vm2109, %v2101, %v1703
      %v2151 = vsel %vm2109, %v2102, %v1705
      %v2152 = vsel %vm2109, %v2103, %v1707
      %v2153 = vsel %vm2109, %v2104, %v1709
      %v2154 = vsel %vm2109, %v2105, %v1711
      %v2155 = vsel %vm2109, %v2106, %v1713
      %v2156 = vsel %vm2109, %v2107, %v1715
      %v2157 = vsel %vm2109, %v2108, %v1717
      %v2158 = vld [vmem:[%s1] sm:$0xff]
      %v2159 = vld [vmem:[%s1 + $0x8] sm:$0xff]
      %v2160 = vld [vmem:[%s1 + $0x10] sm:$0xff]
      %v2161 = vld [vmem:[%s1 + $0x18] sm:$0xff]
      %v2162 = vld [vmem:[%s1 + $0x20] sm:$0xff]
      %v2163 = vld [vmem:[%s1 + $0x28] sm:$0xff]
      %v2164 = vld [vmem:[%s1 + $0x30] sm:$0xff]
      %v2165 = vld [vmem:[%s1 + $0x38] sm:$0xff]
      %v2166 = vld [vmem:[%s1 + $0x40] sm:$0xff]
      %v2168 = vlaneseq
      %v2169 = vshrl.u32 %v2168, 7
      %v2170 = vsub.s32 0, %v2169
      %v2171 = vrot.slane %v292, %v2170
      %vm2173 = vcmask 588800
      %v2175 = vsel %vm2173, %v2110, 0
      %v2178 = vsel %vm2173, %v2111, 0
      %v2181 = vsel %vm2173, %v2112, 0
      %v2184 = vsel %vm2173, %v2113, 0
      %v2187 = vsel %vm2173, %v2114, 0
      %v2190 = vsel %vm2173, %v2115, 0
      %v2193 = vsel %vm2173, %v2116, 0
      %v2196 = vsel %vm2173, %v2117, 0
      %v2199 = vsel %vm2173, %v2118, 0
      %v2202 = vsel %vm2173, %v2119, 0
      %v2205 = vsel %vm2173, %v2120, 0
      %v2208 = vsel %vm2173, %v2121, 0
      %v2211 = vsel %vm2173, %v2122, 0
      %v2214 = vsel %vm2173, %v2123, 0
      %v2217 = vsel %vm2173, %v2124, 0
      %v2220 = vsel %vm2173, %v2125, 0
      %v2223 = vsel %vm2173, %v2126, 0
      %v2226 = vsel %vm2173, %v2127, 0
      %v2229 = vsel %vm2173, %v2128, 0
      %v2232 = vsel %vm2173, %v2129, 0
      %v2235 = vsel %vm2173, %v2130, 0
      %v2238 = vsel %vm2173, %v2131, 0
      %v2241 = vsel %vm2173, %v2132, 0
      %v2244 = vsel %vm2173, %v2133, 0
      %v2247 = vsel %vm2173, %v2134, 0
      %v2250 = vsel %vm2173, %v2135, 0
      %v2253 = vsel %vm2173, %v2136, 0
      %v2256 = vsel %vm2173, %v2137, 0
      %v2259 = vsel %vm2173, %v2138, 0
      %v2262 = vsel %vm2173, %v2139, 0
      %v2265 = vsel %vm2173, %v2140, 0
      %v2268 = vsel %vm2173, %v2141, 0
      %v2271 = vsel %vm2173, %v2142, 0
      %v2274 = vsel %vm2173, %v2143, 0
      %v2277 = vsel %vm2173, %v2144, 0
      %v2280 = vsel %vm2173, %v2145, 0
      %v2283 = vsel %vm2173, %v2146, 0
      %v2286 = vsel %vm2173, %v2147, 0
      %v2289 = vsel %vm2173, %v2148, 0
      %v2292 = vsel %vm2173, %v2149, 0
      %v2295 = vsel %vm2173, %v2150, 0
      %v2298 = vsel %vm2173, %v2151, 0
      %v2301 = vsel %vm2173, %v2152, 0
      %v2304 = vsel %vm2173, %v2153, 0
      %v2307 = vsel %vm2173, %v2154, 0
      %v2310 = vsel %vm2173, %v2155, 0
      %v2313 = vsel %vm2173, %v2156, 0
      %v2316 = vsel %vm2173, %v2157, 0
      %2318 = vmatprep.subr.mxu0 0.0
      %2319 = vmatpush1.msra.mxu0 %v2158
      %2320 = vmatprep.subr.mxu0 0.0
      %2321 = vmatpush1.msra.mxu0 %v2159
      %2322 = vmatprep.subr.mxu0 0.0
      %2323 = vmatpush1.msra.mxu0 %v2160
      %2324 = vmatprep.subr.mxu0 0.0
      %2325 = vmatpush1.msra.mxu0 %v2161
      %2326 = vmatprep.subr.mxu0 0.0
      %2327 = vmatpush1.msra.mxu0 %v2162
      %2328 = vmatprep.subr.mxu0 0.0
      %2329 = vmatpush1.msra.mxu0 %v2163
      %2330 = vmatprep.subr.mxu0 0.0
      %2331 = vmatpush1.msra.mxu0 %v2164
      %2332 = vmatprep.subr.mxu0 0.0
      %2333 = vmatpush1.msra.mxu0 %v2165
      %2334 = vmatprep.subr.mxu0 0.0
      %2335 = vmatpush1.msra.mxu0 %v2166
      %2336 = vmatprep.subr.mxu0 0.0
      %2337 = vmatpush1.msra.mxu0 0.0
      %2338 = vmatprep.subr.mxu0 0.0
      %2339 = vmatpush1.msra.mxu0 0.0
      %2340 = vmatprep.subr.mxu0 0.0
      %2341 = vmatpush1.msra.mxu0 0.0
      %2342 = vmatprep.subr.mxu0 0.0
      %2343 = vmatpush1.msra.mxu0 0.0
      %2344 = vmatprep.subr.mxu0 0.0
      %2345 = vmatpush1.msra.mxu0 0.0
      %2346 = vmatprep.subr.mxu0 0.0
      %2347 = vmatpush1.msra.mxu0 0.0
      %2348 = vmatprep.subr.mxu0 0.0
      %2349 = vmatpush1.msra.mxu0 0.0
      %2350 = vmatprep.subr.mxu0 0.0
      %2351 = vmatpush1.msra.mxu0 0.0
      %2352 = vmatprep.subr.mxu0 0.0
      %2353 = vmatpush1.msra.mxu0 0.0
      %2354 = vmatprep.subr.mxu0 0.0
      %2355 = vmatpush1.msra.mxu0 0.0
      %2356 = vmatprep.subr.mxu0 0.0
      %2357 = vmatpush1.msra.mxu0 0.0
      %2358 = vmatprep.subr.mxu0 0.0
      %2359 = vmatpush1.msra.mxu0 0.0
      %2360 = vmatprep.subr.mxu0 0.0
      %2361 = vmatpush1.msra.mxu0 0.0
      %2362 = vmatprep.subr.mxu0 0.0
      %2363 = vmatpush1.msra.mxu0 0.0
      %2364 = vmatprep.subr.mxu0 0.0
      %2365 = vmatpush1.msra.mxu0 0.0
      %2366 = vmatprep.subr.mxu0 0.0
      %2367 = vmatpush1.msra.mxu0 0.0
      %2368 = vmatprep.subr.mxu0 0.0
      %2369 = vmatpush1.msra.mxu0 0.0
      %2370 = vmatprep.subr.mxu0 0.0
      %2371 = vmatpush1.msra.mxu0 0.0
      %2372 = vmatprep.subr.mxu0 0.0
      %2373 = vmatpush1.msra.mxu0 0.0
      %2374 = vmatprep.subr.mxu0 0.0
      %2375 = vmatpush1.msra.mxu0 0.0
      %2376 = vmatprep.subr.mxu0 0.0
      %2377 = vmatpush1.msra.mxu0 0.0
      %2378 = vmatprep.subr.mxu0 0.0
      %2379 = vmatpush1.msra.mxu0 0.0
      %2380 = vmatprep.subr.mxu0 0.0
      %2381 = vmatpush1.msra.mxu0 0.0
      %2382 = vmatprep.mubr.f32.mxu0 0.0
      %2383 = vmatmul.mubr.f32.gmra.mrb[0].mxu0 %v2175
      %v2384 = vpop.f32.mrb[0].mxu0
      %v2385 = vadd.f32 %v2171, %v2384
      %v2386 = vpop.f32.mrb[0].mxu0
      %2387 = vmatprep.mubr.f32.mxu0 0.0
      %2388 = vmatmul.mubr.f32.gmra.mrb[0].mxu0 %v2178
      %v2389 = vpop.f32.mrb[0].mxu0
      %v2390 = vadd.f32 %v2171, %v2389
      %v2391 = vpop.f32.mrb[0].mxu0
      %2392 = vmatprep.mubr.f32.mxu0 0.0
      %2393 = vmatmul.mubr.f32.gmra.mrb[0].mxu0 %v2181
      %v2394 = vpop.f32.mrb[0].mxu0
      %v2395 = vadd.f32 %v2171, %v2394
      %v2396 = vpop.f32.mrb[0].mxu0
      %2397 = vmatprep.mubr.f32.mxu0 0.0
      %2398 = vmatmul.mubr.f32.gmra.mrb[0].mxu0 %v2184
      %v2399 = vpop.f32.mrb[0].mxu0
      %v2400 = vadd.f32 %v2171, %v2399
      %v2401 = vpop.f32.mrb[0].mxu0
      %2402 = vmatprep.mubr.f32.mxu0 0.0
      %2403 = vmatmul.mubr.f32.gmra.mrb[0].mxu0 %v2187
      %v2404 = vpop.f32.mrb[0].mxu0
      %v2405 = vadd.f32 %v2171, %v2404
      %v2406 = vpop.f32.mrb[0].mxu0
      %2407 = vmatprep.mubr.f32.mxu0 0.0
      %2408 = vmatmul.mubr.f32.gmra.mrb[0].mxu0 %v2190
      %v2409 = vpop.f32.mrb[0].mxu0
      %v2410 = vadd.f32 %v2171, %v2409
      %v2411 = vpop.f32.mrb[0].mxu0
      %2412 = vmatprep.mubr.f32.mxu0 0.0
      %2413 = vmatmul.mubr.f32.gmra.mrb[0].mxu0 %v2193
      %v2414 = vpop.f32.mrb[0].mxu0
      %v2415 = vadd.f32 %v2171, %v2414
      %v2416 = vpop.f32.mrb[0].mxu0
      %2417 = vmatprep.mubr.f32.mxu0 0.0
      %2418 = vmatmul.mubr.f32.gmra.mrb[0].mxu0 %v2196
      %v2419 = vpop.f32.mrb[0].mxu0
      %v2420 = vadd.f32 %v2171, %v2419
      %v2421 = vpop.f32.mrb[0].mxu0
      %2422 = vmatprep.mubr.f32.mxu0 0.0
      %2423 = vmatmul.mubr.f32.gmra.mrb[0].mxu0 %v2199
      %v2424 = vpop.f32.mrb[0].mxu0
      %v2425 = vadd.f32 %v2171, %v2424
      %v2426 = vpop.f32.mrb[0].mxu0
      %2427 = vmatprep.mubr.f32.mxu0 0.0
      %2428 = vmatmul.mubr.f32.gmra.mrb[0].mxu0 %v2202
      %v2429 = vpop.f32.mrb[0].mxu0
      %v2430 = vadd.f32 %v2171, %v2429
      %v2431 = vpop.f32.mrb[0].mxu0
      %2432 = vmatprep.mubr.f32.mxu0 0.0
      %2433 = vmatmul.mubr.f32.gmra.mrb[0].mxu0 %v2205
      %v2434 = vpop.f32.mrb[0].mxu0
      %v2435 = vadd.f32 %v2171, %v2434
      %v2436 = vpop.f32.mrb[0].mxu0
      %2437 = vmatprep.mubr.f32.mxu0 0.0
      %2438 = vmatmul.mubr.f32.gmra.mrb[0].mxu0 %v2208
      %v2439 = vpop.f32.mrb[0].mxu0
      %v2440 = vadd.f32 %v2171, %v2439
      %v2441 = vpop.f32.mrb[0].mxu0
      %2442 = vmatprep.mubr.f32.mxu0 0.0
      %2443 = vmatmul.mubr.f32.gmra.mrb[0].mxu0 %v2211
      %v2444 = vpop.f32.mrb[0].mxu0
      %v2445 = vadd.f32 %v2171, %v2444
      %v2446 = vpop.f32.mrb[0].mxu0
      %2447 = vmatprep.mubr.f32.mxu0 0.0
      %2448 = vmatmul.mubr.f32.gmra.mrb[0].mxu0 %v2214
      %v2449 = vpop.f32.mrb[0].mxu0
      %v2450 = vadd.f32 %v2171, %v2449
      %v2451 = vpop.f32.mrb[0].mxu0
      %2452 = vmatprep.mubr.f32.mxu0 0.0
      %2453 = vmatmul.mubr.f32.gmra.mrb[0].mxu0 %v2217
      %v2454 = vpop.f32.mrb[0].mxu0
      %v2455 = vadd.f32 %v2171, %v2454
      %v2456 = vpop.f32.mrb[0].mxu0
      %2457 = vmatprep.mubr.f32.mxu0 0.0
      %2458 = vmatmul.mubr.f32.gmra.mrb[0].mxu0 %v2220
      %v2459 = vpop.f32.mrb[0].mxu0
      %v2460 = vadd.f32 %v2171, %v2459
      %v2461 = vpop.f32.mrb[0].mxu0
      %2462 = vmatprep.mubr.f32.mxu0 0.0
      %2463 = vmatmul.mubr.f32.gmra.mrb[0].mxu0 %v2223
      %v2464 = vpop.f32.mrb[0].mxu0
      %v2465 = vadd.f32 %v2171, %v2464
      %v2466 = vpop.f32.mrb[0].mxu0
      %2467 = vmatprep.mubr.f32.mxu0 0.0
      %2468 = vmatmul.mubr.f32.gmra.mrb[0].mxu0 %v2226
      %v2469 = vpop.f32.mrb[0].mxu0
      %v2470 = vadd.f32 %v2171, %v2469
      %v2471 = vpop.f32.mrb[0].mxu0
      %2472 = vmatprep.mubr.f32.mxu0 0.0
      %2473 = vmatmul.mubr.f32.gmra.mrb[0].mxu0 %v2229
      %v2474 = vpop.f32.mrb[0].mxu0
      %v2475 = vadd.f32 %v2171, %v2474
      %v2476 = vpop.f32.mrb[0].mxu0
      %2477 = vmatprep.mubr.f32.mxu0 0.0
      %2478 = vmatmul.mubr.f32.gmra.mrb[0].mxu0 %v2232
      %v2479 = vpop.f32.mrb[0].mxu0
      %v2480 = vadd.f32 %v2171, %v2479
      %v2481 = vpop.f32.mrb[0].mxu0
      %2482 = vmatprep.mubr.f32.mxu0 0.0
      %2483 = vmatmul.mubr.f32.gmra.mrb[0].mxu0 %v2235
      %v2484 = vpop.f32.mrb[0].mxu0
      %v2485 = vadd.f32 %v2171, %v2484
      %v2486 = vpop.f32.mrb[0].mxu0
      %2487 = vmatprep.mubr.f32.mxu0 0.0
      %2488 = vmatmul.mubr.f32.gmra.mrb[0].mxu0 %v2238
      %v2489 = vpop.f32.mrb[0].mxu0
      %v2490 = vadd.f32 %v2171, %v2489
      %v2491 = vpop.f32.mrb[0].mxu0
      %2492 = vmatprep.mubr.f32.mxu0 0.0
      %2493 = vmatmul.mubr.f32.gmra.mrb[0].mxu0 %v2241
      %v2494 = vpop.f32.mrb[0].mxu0
      %v2495 = vadd.f32 %v2171, %v2494
      %v2496 = vpop.f32.mrb[0].mxu0
      %2497 = vmatprep.mubr.f32.mxu0 0.0
      %2498 = vmatmul.mubr.f32.gmra.mrb[0].mxu0 %v2244
      %v2499 = vpop.f32.mrb[0].mxu0
      %v2500 = vadd.f32 %v2171, %v2499
      %v2501 = vpop.f32.mrb[0].mxu0
      %2502 = vmatprep.mubr.f32.mxu0 0.0
      %2503 = vmatmul.mubr.f32.gmra.mrb[0].mxu0 %v2247
      %v2504 = vpop.f32.mrb[0].mxu0
      %v2505 = vadd.f32 %v2171, %v2504
      %v2506 = vpop.f32.mrb[0].mxu0
      %2507 = vmatprep.mubr.f32.mxu0 0.0
      %2508 = vmatmul.mubr.f32.gmra.mrb[0].mxu0 %v2250
      %v2509 = vpop.f32.mrb[0].mxu0
      %v2510 = vadd.f32 %v2171, %v2509
      %v2511 = vpop.f32.mrb[0].mxu0
      %2512 = vmatprep.mubr.f32.mxu0 0.0
      %2513 = vmatmul.mubr.f32.gmra.mrb[0].mxu0 %v2253
      %v2514 = vpop.f32.mrb[0].mxu0
      %v2515 = vadd.f32 %v2171, %v2514
      %v2516 = vpop.f32.mrb[0].mxu0
      %2517 = vmatprep.mubr.f32.mxu0 0.0
      %2518 = vmatmul.mubr.f32.gmra.mrb[0].mxu0 %v2256
      %v2519 = vpop.f32.mrb[0].mxu0
      %v2520 = vadd.f32 %v2171, %v2519
      %v2521 = vpop.f32.mrb[0].mxu0
      %2522 = vmatprep.mubr.f32.mxu0 0.0
      %2523 = vmatmul.mubr.f32.gmra.mrb[0].mxu0 %v2259
      %v2524 = vpop.f32.mrb[0].mxu0
      %v2525 = vadd.f32 %v2171, %v2524
      %v2526 = vpop.f32.mrb[0].mxu0
      %2527 = vmatprep.mubr.f32.mxu0 0.0
      %2528 = vmatmul.mubr.f32.gmra.mrb[0].mxu0 %v2262
      %v2529 = vpop.f32.mrb[0].mxu0
      %v2530 = vadd.f32 %v2171, %v2529
      %v2531 = vpop.f32.mrb[0].mxu0
      %2532 = vmatprep.mubr.f32.mxu0 0.0
      %2533 = vmatmul.mubr.f32.gmra.mrb[0].mxu0 %v2265
      %v2534 = vpop.f32.mrb[0].mxu0
      %v2535 = vadd.f32 %v2171, %v2534
      %v2536 = vpop.f32.mrb[0].mxu0
      %2537 = vmatprep.mubr.f32.mxu0 0.0
      %2538 = vmatmul.mubr.f32.gmra.mrb[0].mxu0 %v2268
      %v2539 = vpop.f32.mrb[0].mxu0
      %v2540 = vadd.f32 %v2171, %v2539
      %v2541 = vpop.f32.mrb[0].mxu0
      %2542 = vmatprep.mubr.f32.mxu0 0.0
      %2543 = vmatmul.mubr.f32.gmra.mrb[0].mxu0 %v2271
      %v2544 = vpop.f32.mrb[0].mxu0
      %v2545 = vadd.f32 %v2171, %v2544
      %v2546 = vpop.f32.mrb[0].mxu0
      %2547 = vmatprep.mubr.f32.mxu0 0.0
      %2548 = vmatmul.mubr.f32.gmra.mrb[0].mxu0 %v2274
      %v2549 = vpop.f32.mrb[0].mxu0
      %v2550 = vadd.f32 %v2171, %v2549
      %v2551 = vpop.f32.mrb[0].mxu0
      %2552 = vmatprep.mubr.f32.mxu0 0.0
      %2553 = vmatmul.mubr.f32.gmra.mrb[0].mxu0 %v2277
      %v2554 = vpop.f32.mrb[0].mxu0
      %v2555 = vadd.f32 %v2171, %v2554
      %v2556 = vpop.f32.mrb[0].mxu0
      %2557 = vmatprep.mubr.f32.mxu0 0.0
      %2558 = vmatmul.mubr.f32.gmra.mrb[0].mxu0 %v2280
      %v2559 = vpop.f32.mrb[0].mxu0
      %v2560 = vadd.f32 %v2171, %v2559
      %v2561 = vpop.f32.mrb[0].mxu0
      %2562 = vmatprep.mubr.f32.mxu0 0.0
      %2563 = vmatmul.mubr.f32.gmra.mrb[0].mxu0 %v2283
      %v2564 = vpop.f32.mrb[0].mxu0
      %v2565 = vadd.f32 %v2171, %v2564
      %v2566 = vpop.f32.mrb[0].mxu0
      %2567 = vmatprep.mubr.f32.mxu0 0.0
      %2568 = vmatmul.mubr.f32.gmra.mrb[0].mxu0 %v2286
      %v2569 = vpop.f32.mrb[0].mxu0
      %v2570 = vadd.f32 %v2171, %v2569
      %v2571 = vpop.f32.mrb[0].mxu0
      %2572 = vmatprep.mubr.f32.mxu0 0.0
      %2573 = vmatmul.mubr.f32.gmra.mrb[0].mxu0 %v2289
      %v2574 = vpop.f32.mrb[0].mxu0
      %v2575 = vadd.f32 %v2171, %v2574
      %v2576 = vpop.f32.mrb[0].mxu0
      %2577 = vmatprep.mubr.f32.mxu0 0.0
      %2578 = vmatmul.mubr.f32.gmra.mrb[0].mxu0 %v2292
      %v2579 = vpop.f32.mrb[0].mxu0
      %v2580 = vadd.f32 %v2171, %v2579
      %v2581 = vpop.f32.mrb[0].mxu0
      %2582 = vmatprep.mubr.f32.mxu0 0.0
      %2583 = vmatmul.mubr.f32.gmra.mrb[0].mxu0 %v2295
      %v2584 = vpop.f32.mrb[0].mxu0
      %v2585 = vadd.f32 %v2171, %v2584
      %v2586 = vpop.f32.mrb[0].mxu0
      %2587 = vmatprep.mubr.f32.mxu0 0.0
      %2588 = vmatmul.mubr.f32.gmra.mrb[0].mxu0 %v2298
      %v2589 = vpop.f32.mrb[0].mxu0
      %v2590 = vadd.f32 %v2171, %v2589
      %v2591 = vpop.f32.mrb[0].mxu0
      %2592 = vmatprep.mubr.f32.mxu0 0.0
      %2593 = vmatmul.mubr.f32.gmra.mrb[0].mxu0 %v2301
      %v2594 = vpop.f32.mrb[0].mxu0
      %v2595 = vadd.f32 %v2171, %v2594
      %v2596 = vpop.f32.mrb[0].mxu0
      %2597 = vmatprep.mubr.f32.mxu0 0.0
      %2598 = vmatmul.mubr.f32.gmra.mrb[0].mxu0 %v2304
      %v2599 = vpop.f32.mrb[0].mxu0
      %v2600 = vadd.f32 %v2171, %v2599
      %v2601 = vpop.f32.mrb[0].mxu0
      %2602 = vmatprep.mubr.f32.mxu0 0.0
      %2603 = vmatmul.mubr.f32.gmra.mrb[0].mxu0 %v2307
      %v2604 = vpop.f32.mrb[0].mxu0
      %v2605 = vadd.f32 %v2171, %v2604
      %v2606 = vpop.f32.mrb[0].mxu0
      %2607 = vmatprep.mubr.f32.mxu0 0.0
      %2608 = vmatmul.mubr.f32.gmra.mrb[0].mxu0 %v2310
      %v2609 = vpop.f32.mrb[0].mxu0
      %v2610 = vadd.f32 %v2171, %v2609
      %v2611 = vpop.f32.mrb[0].mxu0
      %2612 = vmatprep.mubr.f32.mxu0 0.0
      %2613 = vmatmul.mubr.f32.gmra.mrb[0].mxu0 %v2313
      %v2614 = vpop.f32.mrb[0].mxu0
      %v2615 = vadd.f32 %v2171, %v2614
      %v2616 = vpop.f32.mrb[0].mxu0
      %2617 = vmatprep.mubr.f32.mxu0 0.0
      %2618 = vmatmul.mubr.f32.gmra.mrb[0].mxu0 %v2316
      %v2619 = vpop.f32.mrb[0].mxu0
      %v2620 = vadd.f32 %v2171, %v2619
      %v2621 = vpop.f32.mrb[0].mxu0
      %2622 = vdwg.mxu0
      %vm2623 = vcmp.ge.f32.partialorder %v2385, 0.0
      %vm2624 = vcmp.ge.f32.partialorder %v2390, 0.0
      %vm2625 = vcmp.ge.f32.partialorder %v2395, 0.0
      %vm2626 = vcmp.ge.f32.partialorder %v2400, 0.0
      %vm2627 = vcmp.ge.f32.partialorder %v2405, 0.0
      %vm2628 = vcmp.ge.f32.partialorder %v2410, 0.0
      %vm2629 = vcmp.ge.f32.partialorder %v2415, 0.0
      %vm2630 = vcmp.ge.f32.partialorder %v2420, 0.0
      %vm2631 = vcmp.ge.f32.partialorder %v2425, 0.0
      %vm2632 = vcmp.ge.f32.partialorder %v2430, 0.0
      %vm2633 = vcmp.ge.f32.partialorder %v2435, 0.0
      %vm2634 = vcmp.ge.f32.partialorder %v2440, 0.0
      %vm2635 = vcmp.ge.f32.partialorder %v2445, 0.0
      %vm2636 = vcmp.ge.f32.partialorder %v2450, 0.0
      %vm2637 = vcmp.ge.f32.partialorder %v2455, 0.0
      %vm2638 = vcmp.ge.f32.partialorder %v2460, 0.0
      %vm2639 = vcmp.ge.f32.partialorder %v2465, 0.0
      %vm2640 = vcmp.ge.f32.partialorder %v2470, 0.0
      %vm2641 = vcmp.ge.f32.partialorder %v2475, 0.0
      %vm2642 = vcmp.ge.f32.partialorder %v2480, 0.0
      %vm2643 = vcmp.ge.f32.partialorder %v2485, 0.0
      %vm2644 = vcmp.ge.f32.partialorder %v2490, 0.0
      %vm2645 = vcmp.ge.f32.partialorder %v2495, 0.0
      %vm2646 = vcmp.ge.f32.partialorder %v2500, 0.0
      %vm2647 = vcmp.ge.f32.partialorder %v2505, 0.0
      %vm2648 = vcmp.ge.f32.partialorder %v2510, 0.0
      %vm2649 = vcmp.ge.f32.partialorder %v2515, 0.0
      %vm2650 = vcmp.ge.f32.partialorder %v2520, 0.0
      %vm2651 = vcmp.ge.f32.partialorder %v2525, 0.0
      %vm2652 = vcmp.ge.f32.partialorder %v2530, 0.0
      %vm2653 = vcmp.ge.f32.partialorder %v2535, 0.0
      %vm2654 = vcmp.ge.f32.partialorder %v2540, 0.0
      %vm2655 = vcmp.ge.f32.partialorder %v2545, 0.0
      %vm2656 = vcmp.ge.f32.partialorder %v2550, 0.0
      %vm2657 = vcmp.ge.f32.partialorder %v2555, 0.0
      %vm2658 = vcmp.ge.f32.partialorder %v2560, 0.0
      %vm2659 = vcmp.ge.f32.partialorder %v2565, 0.0
      %vm2660 = vcmp.ge.f32.partialorder %v2570, 0.0
      %vm2661 = vcmp.ge.f32.partialorder %v2575, 0.0
      %vm2662 = vcmp.ge.f32.partialorder %v2580, 0.0
      %vm2663 = vcmp.ge.f32.partialorder %v2585, 0.0
      %vm2664 = vcmp.ge.f32.partialorder %v2590, 0.0
      %vm2665 = vcmp.ge.f32.partialorder %v2595, 0.0
      %vm2666 = vcmp.ge.f32.partialorder %v2600, 0.0
      %vm2667 = vcmp.ge.f32.partialorder %v2605, 0.0
      %vm2668 = vcmp.ge.f32.partialorder %v2610, 0.0
      %vm2669 = vcmp.ge.f32.partialorder %v2615, 0.0
      %vm2670 = vcmp.ge.f32.partialorder %v2620, 0.0
      %v2671 = vmul.f32 %v2385, 0.2
      %v2672 = vmul.f32 %v2390, 0.2
      %v2673 = vmul.f32 %v2395, 0.2
      %v2674 = vmul.f32 %v2400, 0.2
      %v2675 = vmul.f32 %v2405, 0.2
      %v2676 = vmul.f32 %v2410, 0.2
      %v2677 = vmul.f32 %v2415, 0.2
      %v2678 = vmul.f32 %v2420, 0.2
      %v2679 = vmul.f32 %v2425, 0.2
      %v2680 = vmul.f32 %v2430, 0.2
      %v2681 = vmul.f32 %v2435, 0.2
      %v2682 = vmul.f32 %v2440, 0.2
      %v2683 = vmul.f32 %v2445, 0.2
      %v2684 = vmul.f32 %v2450, 0.2
      %v2685 = vmul.f32 %v2455, 0.2
      %v2686 = vmul.f32 %v2460, 0.2
      %v2687 = vmul.f32 %v2465, 0.2
      %v2688 = vmul.f32 %v2470, 0.2
      %v2689 = vmul.f32 %v2475, 0.2
      %v2690 = vmul.f32 %v2480, 0.2
      %v2691 = vmul.f32 %v2485, 0.2
      %v2692 = vmul.f32 %v2490, 0.2
      %v2693 = vmul.f32 %v2495, 0.2
      %v2694 = vmul.f32 %v2500, 0.2
      %v2695 = vmul.f32 %v2505, 0.2
      %v2696 = vmul.f32 %v2510, 0.2
      %v2697 = vmul.f32 %v2515, 0.2
      %v2698 = vmul.f32 %v2520, 0.2
      %v2699 = vmul.f32 %v2525, 0.2
      %v2700 = vmul.f32 %v2530, 0.2
      %v2701 = vmul.f32 %v2535, 0.2
      %v2702 = vmul.f32 %v2540, 0.2
      %v2703 = vmul.f32 %v2545, 0.2
      %v2704 = vmul.f32 %v2550, 0.2
      %v2705 = vmul.f32 %v2555, 0.2
      %v2706 = vmul.f32 %v2560, 0.2
      %v2707 = vmul.f32 %v2565, 0.2
      %v2708 = vmul.f32 %v2570, 0.2
      %v2709 = vmul.f32 %v2575, 0.2
      %v2710 = vmul.f32 %v2580, 0.2
      %v2711 = vmul.f32 %v2585, 0.2
      %v2712 = vmul.f32 %v2590, 0.2
      %v2713 = vmul.f32 %v2595, 0.2
      %v2714 = vmul.f32 %v2600, 0.2
      %v2715 = vmul.f32 %v2605, 0.2
      %v2716 = vmul.f32 %v2610, 0.2
      %v2717 = vmul.f32 %v2615, 0.2
      %v2718 = vmul.f32 %v2620, 0.2
      %v2719 = vsel %vm2623, %v2385, %v2671
      %v2720 = vsel %vm2624, %v2390, %v2672
      %v2721 = vsel %vm2625, %v2395, %v2673
      %v2722 = vsel %vm2626, %v2400, %v2674
      %v2723 = vsel %vm2627, %v2405, %v2675
      %v2724 = vsel %vm2628, %v2410, %v2676
      %v2725 = vsel %vm2629, %v2415, %v2677
      %v2726 = vsel %vm2630, %v2420, %v2678
      %v2727 = vsel %vm2631, %v2425, %v2679
      %v2728 = vsel %vm2632, %v2430, %v2680
      %v2729 = vsel %vm2633, %v2435, %v2681
      %v2730 = vsel %vm2634, %v2440, %v2682
      %v2731 = vsel %vm2635, %v2445, %v2683
      %v2732 = vsel %vm2636, %v2450, %v2684
      %v2733 = vsel %vm2637, %v2455, %v2685
      %v2734 = vsel %vm2638, %v2460, %v2686
      %v2735 = vsel %vm2639, %v2465, %v2687
      %v2736 = vsel %vm2640, %v2470, %v2688
      %v2737 = vsel %vm2641, %v2475, %v2689
      %v2738 = vsel %vm2642, %v2480, %v2690
      %v2739 = vsel %vm2643, %v2485, %v2691
      %v2740 = vsel %vm2644, %v2490, %v2692
      %v2741 = vsel %vm2645, %v2495, %v2693
      %v2742 = vsel %vm2646, %v2500, %v2694
      %v2743 = vsel %vm2647, %v2505, %v2695
      %v2744 = vsel %vm2648, %v2510, %v2696
      %v2745 = vsel %vm2649, %v2515, %v2697
      %v2746 = vsel %vm2650, %v2520, %v2698
      %v2747 = vsel %vm2651, %v2525, %v2699
      %v2748 = vsel %vm2652, %v2530, %v2700
      %v2749 = vsel %vm2653, %v2535, %v2701
      %v2750 = vsel %vm2654, %v2540, %v2702
      %v2751 = vsel %vm2655, %v2545, %v2703
      %v2752 = vsel %vm2656, %v2550, %v2704
      %v2753 = vsel %vm2657, %v2555, %v2705
      %v2754 = vsel %vm2658, %v2560, %v2706
      %v2755 = vsel %vm2659, %v2565, %v2707
      %v2756 = vsel %vm2660, %v2570, %v2708
      %v2757 = vsel %vm2661, %v2575, %v2709
      %v2758 = vsel %vm2662, %v2580, %v2710
      %v2759 = vsel %vm2663, %v2585, %v2711
      %v2760 = vsel %vm2664, %v2590, %v2712
      %v2761 = vsel %vm2665, %v2595, %v2713
      %v2762 = vsel %vm2666, %v2600, %v2714
      %v2763 = vsel %vm2667, %v2605, %v2715
      %v2764 = vsel %vm2668, %v2610, %v2716
      %v2765 = vsel %vm2669, %v2615, %v2717
      %v2766 = vsel %vm2670, %v2620, %v2718
      %v2767 = vlaneseq
      %v2768 = vshrl.u32 %v2767, 7
      %v2769 = vadd.s32 %v2768, 8
      %v2770 = vadd.s32 %v2768, 16
      %v2771 = vadd.s32 %v2768, 24
      %v2772 = vadd.s32 %v2768, 32
      %v2773 = vadd.s32 %v2768, 40
      %v2774 = vadd.s32 %v2768, 48
      %v2775 = vadd.s32 %v2768, 56
      %v2776 = vadd.s32 %v2768, 64
      %v2777 = vadd.s32 %v2768, 72
      %v2778 = vadd.s32 %v2768, 80
      %v2779 = vadd.s32 %v2768, 88
      %v2780 = vadd.s32 %v2768, 96
      %v2781 = vadd.s32 %v2768, 104
      %v2782 = vadd.s32 %v2768, 112
      %v2783 = vadd.s32 %v2768, 120
      %v2784 = vadd.s32 %v2768, 128
      %v2785 = vadd.s32 %v2768, 136
      %v2786 = vadd.s32 %v2768, 144
      %v2787 = vadd.s32 %v2768, 152
      %v2788 = vadd.s32 %v2768, 160
      %v2789 = vadd.s32 %v2768, 168
      %v2790 = vadd.s32 %v2768, 176
      %v2791 = vadd.s32 %v2768, 184
      %v2792 = vadd.s32 %v2768, 192
      %v2793 = vadd.s32 %v2768, 200
      %v2794 = vadd.s32 %v2768, 208
      %v2795 = vadd.s32 %v2768, 216
      %v2796 = vadd.s32 %v2768, 224
      %v2797 = vadd.s32 %v2768, 232
      %v2798 = vadd.s32 %v2768, 240
      %v2799 = vadd.s32 %v2768, 248
      %v2800 = vadd.s32 %v2768, 256
      %v2801 = vadd.s32 %v2768, 264
      %v2802 = vadd.s32 %v2768, 272
      %v2803 = vadd.s32 %v2768, 280
      %v2804 = vadd.s32 %v2768, 288
      %v2805 = vadd.s32 %v2768, 296
      %v2806 = vadd.s32 %v2768, 304
      %v2807 = vadd.s32 %v2768, 312
      %v2808 = vadd.s32 %v2768, 320
      %v2809 = vadd.s32 %v2768, 328
      %v2810 = vadd.s32 %v2768, 336
      %v2811 = vadd.s32 %v2768, 344
      %v2812 = vadd.s32 %v2768, 352
      %v2813 = vadd.s32 %v2768, 360
      %v2814 = vadd.s32 %v2768, 368
      %v2815 = vadd.s32 %v2768, 376
      %vm2816 = vcmp.lt.s32.totalorder %v2768, 0
      %v2817 = vsub.s32 0, %v2768
      %v2818 = vsel %vm2816, %v2817, %v2768
      %v2819 = vmul.u32.u64.compose %v2818, 2863311531
      %v2820 = vextract.low.u32 %v2819
      %v2821 = vextract.high.u32 %v2819
      %v2822 = vshrl.u32 %v2821, 4
      %v2823 = vmul.u32 %v2822, 24
      %v2824 = vsub.s32 %v2818, %v2823
      %v2825 = vsub.s32 0, %v2824
      %v2826 = vsel %vm2816, %v2825, %v2824
      %vm2827 = vcmp.lt.s32.totalorder %v2769, 0
      %v2828 = vsub.s32 0, %v2769
      %v2829 = vsel %vm2827, %v2828, %v2769
      %v2830 = vmul.u32.u64.compose %v2829, 2863311531
      %v2831 = vextract.low.u32 %v2830
      %v2832 = vextract.high.u32 %v2830
      %v2833 = vshrl.u32 %v2832, 4
      %v2834 = vmul.u32 %v2833, 24
      %v2835 = vsub.s32 %v2829, %v2834
      %v2836 = vsub.s32 0, %v2835
      %v2837 = vsel %vm2827, %v2836, %v2835
      %vm2838 = vcmp.lt.s32.totalorder %v2770, 0
      %v2839 = vsub.s32 0, %v2770
      %v2840 = vsel %vm2838, %v2839, %v2770
      %v2841 = vmul.u32.u64.compose %v2840, 2863311531
      %v2842 = vextract.low.u32 %v2841
      %v2843 = vextract.high.u32 %v2841
      %v2844 = vshrl.u32 %v2843, 4
      %v2845 = vmul.u32 %v2844, 24
      %v2846 = vsub.s32 %v2840, %v2845
      %v2847 = vsub.s32 0, %v2846
      %v2848 = vsel %vm2838, %v2847, %v2846
      %vm2849 = vcmp.lt.s32.totalorder %v2771, 0
      %v2850 = vsub.s32 0, %v2771
      %v2851 = vsel %vm2849, %v2850, %v2771
      %v2852 = vmul.u32.u64.compose %v2851, 2863311531
      %v2853 = vextract.low.u32 %v2852
      %v2854 = vextract.high.u32 %v2852
      %v2855 = vshrl.u32 %v2854, 4
      %v2856 = vmul.u32 %v2855, 24
      %v2857 = vsub.s32 %v2851, %v2856
      %v2858 = vsub.s32 0, %v2857
      %v2859 = vsel %vm2849, %v2858, %v2857
      %vm2860 = vcmp.lt.s32.totalorder %v2772, 0
      %v2861 = vsub.s32 0, %v2772
      %v2862 = vsel %vm2860, %v2861, %v2772
      %v2863 = vmul.u32.u64.compose %v2862, 2863311531
      %v2864 = vextract.low.u32 %v2863
      %v2865 = vextract.high.u32 %v2863
      %v2866 = vshrl.u32 %v2865, 4
      %v2867 = vmul.u32 %v2866, 24
      %v2868 = vsub.s32 %v2862, %v2867
      %v2869 = vsub.s32 0, %v2868
      %v2870 = vsel %vm2860, %v2869, %v2868
      %vm2871 = vcmp.lt.s32.totalorder %v2773, 0
      %v2872 = vsub.s32 0, %v2773
      %v2873 = vsel %vm2871, %v2872, %v2773
      %v2874 = vmul.u32.u64.compose %v2873, 2863311531
      %v2875 = vextract.low.u32 %v2874
      %v2876 = vextract.high.u32 %v2874
      %v2877 = vshrl.u32 %v2876, 4
      %v2878 = vmul.u32 %v2877, 24
      %v2879 = vsub.s32 %v2873, %v2878
      %v2880 = vsub.s32 0, %v2879
      %v2881 = vsel %vm2871, %v2880, %v2879
      %vm2882 = vcmp.lt.s32.totalorder %v2774, 0
      %v2883 = vsub.s32 0, %v2774
      %v2884 = vsel %vm2882, %v2883, %v2774
      %v2885 = vmul.u32.u64.compose %v2884, 2863311531
      %v2886 = vextract.low.u32 %v2885
      %v2887 = vextract.high.u32 %v2885
      %v2888 = vshrl.u32 %v2887, 4
      %v2889 = vmul.u32 %v2888, 24
      %v2890 = vsub.s32 %v2884, %v2889
      %v2891 = vsub.s32 0, %v2890
      %v2892 = vsel %vm2882, %v2891, %v2890
      %vm2893 = vcmp.lt.s32.totalorder %v2775, 0
      %v2894 = vsub.s32 0, %v2775
      %v2895 = vsel %vm2893, %v2894, %v2775
      %v2896 = vmul.u32.u64.compose %v2895, 2863311531
      %v2897 = vextract.low.u32 %v2896
      %v2898 = vextract.high.u32 %v2896
      %v2899 = vshrl.u32 %v2898, 4
      %v2900 = vmul.u32 %v2899, 24
      %v2901 = vsub.s32 %v2895, %v2900
      %v2902 = vsub.s32 0, %v2901
      %v2903 = vsel %vm2893, %v2902, %v2901
      %vm2904 = vcmp.lt.s32.totalorder %v2776, 0
      %v2905 = vsub.s32 0, %v2776
      %v2906 = vsel %vm2904, %v2905, %v2776
      %v2907 = vmul.u32.u64.compose %v2906, 2863311531
      %v2908 = vextract.low.u32 %v2907
      %v2909 = vextract.high.u32 %v2907
      %v2910 = vshrl.u32 %v2909, 4
      %v2911 = vmul.u32 %v2910, 24
      %v2912 = vsub.s32 %v2906, %v2911
      %v2913 = vsub.s32 0, %v2912
      %v2914 = vsel %vm2904, %v2913, %v2912
      %vm2915 = vcmp.lt.s32.totalorder %v2777, 0
      %v2916 = vsub.s32 0, %v2777
      %v2917 = vsel %vm2915, %v2916, %v2777
      %v2918 = vmul.u32.u64.compose %v2917, 2863311531
      %v2919 = vextract.low.u32 %v2918
      %v2920 = vextract.high.u32 %v2918
      %v2921 = vshrl.u32 %v2920, 4
      %v2922 = vmul.u32 %v2921, 24
      %v2923 = vsub.s32 %v2917, %v2922
      %v2924 = vsub.s32 0, %v2923
      %v2925 = vsel %vm2915, %v2924, %v2923
      %vm2926 = vcmp.lt.s32.totalorder %v2778, 0
      %v2927 = vsub.s32 0, %v2778
      %v2928 = vsel %vm2926, %v2927, %v2778
      %v2929 = vmul.u32.u64.compose %v2928, 2863311531
      %v2930 = vextract.low.u32 %v2929
      %v2931 = vextract.high.u32 %v2929
      %v2932 = vshrl.u32 %v2931, 4
      %v2933 = vmul.u32 %v2932, 24
      %v2934 = vsub.s32 %v2928, %v2933
      %v2935 = vsub.s32 0, %v2934
      %v2936 = vsel %vm2926, %v2935, %v2934
      %vm2937 = vcmp.lt.s32.totalorder %v2779, 0
      %v2938 = vsub.s32 0, %v2779
      %v2939 = vsel %vm2937, %v2938, %v2779
      %v2940 = vmul.u32.u64.compose %v2939, 2863311531
      %v2941 = vextract.low.u32 %v2940
      %v2942 = vextract.high.u32 %v2940
      %v2943 = vshrl.u32 %v2942, 4
      %v2944 = vmul.u32 %v2943, 24
      %v2945 = vsub.s32 %v2939, %v2944
      %v2946 = vsub.s32 0, %v2945
      %v2947 = vsel %vm2937, %v2946, %v2945
      %vm2948 = vcmp.lt.s32.totalorder %v2780, 0
      %v2949 = vsub.s32 0, %v2780
      %v2950 = vsel %vm2948, %v2949, %v2780
      %v2951 = vmul.u32.u64.compose %v2950, 2863311531
      %v2952 = vextract.low.u32 %v2951
      %v2953 = vextract.high.u32 %v2951
      %v2954 = vshrl.u32 %v2953, 4
      %v2955 = vmul.u32 %v2954, 24
      %v2956 = vsub.s32 %v2950, %v2955
      %v2957 = vsub.s32 0, %v2956
      %v2958 = vsel %vm2948, %v2957, %v2956
      %vm2959 = vcmp.lt.s32.totalorder %v2781, 0
      %v2960 = vsub.s32 0, %v2781
      %v2961 = vsel %vm2959, %v2960, %v2781
      %v2962 = vmul.u32.u64.compose %v2961, 2863311531
      %v2963 = vextract.low.u32 %v2962
      %v2964 = vextract.high.u32 %v2962
      %v2965 = vshrl.u32 %v2964, 4
      %v2966 = vmul.u32 %v2965, 24
      %v2967 = vsub.s32 %v2961, %v2966
      %v2968 = vsub.s32 0, %v2967
      %v2969 = vsel %vm2959, %v2968, %v2967
      %vm2970 = vcmp.lt.s32.totalorder %v2782, 0
      %v2971 = vsub.s32 0, %v2782
      %v2972 = vsel %vm2970, %v2971, %v2782
      %v2973 = vmul.u32.u64.compose %v2972, 2863311531
      %v2974 = vextract.low.u32 %v2973
      %v2975 = vextract.high.u32 %v2973
      %v2976 = vshrl.u32 %v2975, 4
      %v2977 = vmul.u32 %v2976, 24
      %v2978 = vsub.s32 %v2972, %v2977
      %v2979 = vsub.s32 0, %v2978
      %v2980 = vsel %vm2970, %v2979, %v2978
      %vm2981 = vcmp.lt.s32.totalorder %v2783, 0
      %v2982 = vsub.s32 0, %v2783
      %v2983 = vsel %vm2981, %v2982, %v2783
      %v2984 = vmul.u32.u64.compose %v2983, 2863311531
      %v2985 = vextract.low.u32 %v2984
      %v2986 = vextract.high.u32 %v2984
      %v2987 = vshrl.u32 %v2986, 4
      %v2988 = vmul.u32 %v2987, 24
      %v2989 = vsub.s32 %v2983, %v2988
      %v2990 = vsub.s32 0, %v2989
      %v2991 = vsel %vm2981, %v2990, %v2989
      %vm2992 = vcmp.lt.s32.totalorder %v2784, 0
      %v2993 = vsub.s32 0, %v2784
      %v2994 = vsel %vm2992, %v2993, %v2784
      %v2995 = vmul.u32.u64.compose %v2994, 2863311531
      %v2996 = vextract.low.u32 %v2995
      %v2997 = vextract.high.u32 %v2995
      %v2998 = vshrl.u32 %v2997, 4
      %v2999 = vmul.u32 %v2998, 24
      %v3000 = vsub.s32 %v2994, %v2999
      %v3001 = vsub.s32 0, %v3000
      %v3002 = vsel %vm2992, %v3001, %v3000
      %vm3003 = vcmp.lt.s32.totalorder %v2785, 0
      %v3004 = vsub.s32 0, %v2785
      %v3005 = vsel %vm3003, %v3004, %v2785
      %v3006 = vmul.u32.u64.compose %v3005, 2863311531
      %v3007 = vextract.low.u32 %v3006
      %v3008 = vextract.high.u32 %v3006
      %v3009 = vshrl.u32 %v3008, 4
      %v3010 = vmul.u32 %v3009, 24
      %v3011 = vsub.s32 %v3005, %v3010
      %v3012 = vsub.s32 0, %v3011
      %v3013 = vsel %vm3003, %v3012, %v3011
      %vm3014 = vcmp.lt.s32.totalorder %v2786, 0
      %v3015 = vsub.s32 0, %v2786
      %v3016 = vsel %vm3014, %v3015, %v2786
      %v3017 = vmul.u32.u64.compose %v3016, 2863311531
      %v3018 = vextract.low.u32 %v3017
      %v3019 = vextract.high.u32 %v3017
      %v3020 = vshrl.u32 %v3019, 4
      %v3021 = vmul.u32 %v3020, 24
      %v3022 = vsub.s32 %v3016, %v3021
      %v3023 = vsub.s32 0, %v3022
      %v3024 = vsel %vm3014, %v3023, %v3022
      %vm3025 = vcmp.lt.s32.totalorder %v2787, 0
      %v3026 = vsub.s32 0, %v2787
      %v3027 = vsel %vm3025, %v3026, %v2787
      %v3028 = vmul.u32.u64.compose %v3027, 2863311531
      %v3029 = vextract.low.u32 %v3028
      %v3030 = vextract.high.u32 %v3028
      %v3031 = vshrl.u32 %v3030, 4
      %v3032 = vmul.u32 %v3031, 24
      %v3033 = vsub.s32 %v3027, %v3032
      %v3034 = vsub.s32 0, %v3033
      %v3035 = vsel %vm3025, %v3034, %v3033
      %vm3036 = vcmp.lt.s32.totalorder %v2788, 0
      %v3037 = vsub.s32 0, %v2788
      %v3038 = vsel %vm3036, %v3037, %v2788
      %v3039 = vmul.u32.u64.compose %v3038, 2863311531
      %v3040 = vextract.low.u32 %v3039
      %v3041 = vextract.high.u32 %v3039
      %v3042 = vshrl.u32 %v3041, 4
      %v3043 = vmul.u32 %v3042, 24
      %v3044 = vsub.s32 %v3038, %v3043
      %v3045 = vsub.s32 0, %v3044
      %v3046 = vsel %vm3036, %v3045, %v3044
      %vm3047 = vcmp.lt.s32.totalorder %v2789, 0
      %v3048 = vsub.s32 0, %v2789
      %v3049 = vsel %vm3047, %v3048, %v2789
      %v3050 = vmul.u32.u64.compose %v3049, 2863311531
      %v3051 = vextract.low.u32 %v3050
      %v3052 = vextract.high.u32 %v3050
      %v3053 = vshrl.u32 %v3052, 4
      %v3054 = vmul.u32 %v3053, 24
      %v3055 = vsub.s32 %v3049, %v3054
      %v3056 = vsub.s32 0, %v3055
      %v3057 = vsel %vm3047, %v3056, %v3055
      %vm3058 = vcmp.lt.s32.totalorder %v2790, 0
      %v3059 = vsub.s32 0, %v2790
      %v3060 = vsel %vm3058, %v3059, %v2790
      %v3061 = vmul.u32.u64.compose %v3060, 2863311531
      %v3062 = vextract.low.u32 %v3061
      %v3063 = vextract.high.u32 %v3061
      %v3064 = vshrl.u32 %v3063, 4
      %v3065 = vmul.u32 %v3064, 24
      %v3066 = vsub.s32 %v3060, %v3065
      %v3067 = vsub.s32 0, %v3066
      %v3068 = vsel %vm3058, %v3067, %v3066
      %vm3069 = vcmp.lt.s32.totalorder %v2791, 0
      %v3070 = vsub.s32 0, %v2791
      %v3071 = vsel %vm3069, %v3070, %v2791
      %v3072 = vmul.u32.u64.compose %v3071, 2863311531
      %v3073 = vextract.low.u32 %v3072
      %v3074 = vextract.high.u32 %v3072
      %v3075 = vshrl.u32 %v3074, 4
      %v3076 = vmul.u32 %v3075, 24
      %v3077 = vsub.s32 %v3071, %v3076
      %v3078 = vsub.s32 0, %v3077
      %v3079 = vsel %vm3069, %v3078, %v3077
      %vm3080 = vcmp.lt.s32.totalorder %v2792, 0
      %v3081 = vsub.s32 0, %v2792
      %v3082 = vsel %vm3080, %v3081, %v2792
      %v3083 = vmul.u32.u64.compose %v3082, 2863311531
      %v3084 = vextract.low.u32 %v3083
      %v3085 = vextract.high.u32 %v3083
      %v3086 = vshrl.u32 %v3085, 4
      %v3087 = vmul.u32 %v3086, 24
      %v3088 = vsub.s32 %v3082, %v3087
      %v3089 = vsub.s32 0, %v3088
      %v3090 = vsel %vm3080, %v3089, %v3088
      %vm3091 = vcmp.lt.s32.totalorder %v2793, 0
      %v3092 = vsub.s32 0, %v2793
      %v3093 = vsel %vm3091, %v3092, %v2793
      %v3094 = vmul.u32.u64.compose %v3093, 2863311531
      %v3095 = vextract.low.u32 %v3094
      %v3096 = vextract.high.u32 %v3094
      %v3097 = vshrl.u32 %v3096, 4
      %v3098 = vmul.u32 %v3097, 24
      %v3099 = vsub.s32 %v3093, %v3098
      %v3100 = vsub.s32 0, %v3099
      %v3101 = vsel %vm3091, %v3100, %v3099
      %vm3102 = vcmp.lt.s32.totalorder %v2794, 0
      %v3103 = vsub.s32 0, %v2794
      %v3104 = vsel %vm3102, %v3103, %v2794
      %v3105 = vmul.u32.u64.compose %v3104, 2863311531
      %v3106 = vextract.low.u32 %v3105
      %v3107 = vextract.high.u32 %v3105
      %v3108 = vshrl.u32 %v3107, 4
      %v3109 = vmul.u32 %v3108, 24
      %v3110 = vsub.s32 %v3104, %v3109
      %v3111 = vsub.s32 0, %v3110
      %v3112 = vsel %vm3102, %v3111, %v3110
      %vm3113 = vcmp.lt.s32.totalorder %v2795, 0
      %v3114 = vsub.s32 0, %v2795
      %v3115 = vsel %vm3113, %v3114, %v2795
      %v3116 = vmul.u32.u64.compose %v3115, 2863311531
      %v3117 = vextract.low.u32 %v3116
      %v3118 = vextract.high.u32 %v3116
      %v3119 = vshrl.u32 %v3118, 4
      %v3120 = vmul.u32 %v3119, 24
      %v3121 = vsub.s32 %v3115, %v3120
      %v3122 = vsub.s32 0, %v3121
      %v3123 = vsel %vm3113, %v3122, %v3121
      %vm3124 = vcmp.lt.s32.totalorder %v2796, 0
      %v3125 = vsub.s32 0, %v2796
      %v3126 = vsel %vm3124, %v3125, %v2796
      %v3127 = vmul.u32.u64.compose %v3126, 2863311531
      %v3128 = vextract.low.u32 %v3127
      %v3129 = vextract.high.u32 %v3127
      %v3130 = vshrl.u32 %v3129, 4
      %v3131 = vmul.u32 %v3130, 24
      %v3132 = vsub.s32 %v3126, %v3131
      %v3133 = vsub.s32 0, %v3132
      %v3134 = vsel %vm3124, %v3133, %v3132
      %vm3135 = vcmp.lt.s32.totalorder %v2797, 0
      %v3136 = vsub.s32 0, %v2797
      %v3137 = vsel %vm3135, %v3136, %v2797
      %v3138 = vmul.u32.u64.compose %v3137, 2863311531
      %v3139 = vextract.low.u32 %v3138
      %v3140 = vextract.high.u32 %v3138
      %v3141 = vshrl.u32 %v3140, 4
      %v3142 = vmul.u32 %v3141, 24
      %v3143 = vsub.s32 %v3137, %v3142
      %v3144 = vsub.s32 0, %v3143
      %v3145 = vsel %vm3135, %v3144, %v3143
      %vm3146 = vcmp.lt.s32.totalorder %v2798, 0
      %v3147 = vsub.s32 0, %v2798
      %v3148 = vsel %vm3146, %v3147, %v2798
      %v3149 = vmul.u32.u64.compose %v3148, 2863311531
      %v3150 = vextract.low.u32 %v3149
      %v3151 = vextract.high.u32 %v3149
      %v3152 = vshrl.u32 %v3151, 4
      %v3153 = vmul.u32 %v3152, 24
      %v3154 = vsub.s32 %v3148, %v3153
      %v3155 = vsub.s32 0, %v3154
      %v3156 = vsel %vm3146, %v3155, %v3154
      %vm3157 = vcmp.lt.s32.totalorder %v2799, 0
      %v3158 = vsub.s32 0, %v2799
      %v3159 = vsel %vm3157, %v3158, %v2799
      %v3160 = vmul.u32.u64.compose %v3159, 2863311531
      %v3161 = vextract.low.u32 %v3160
      %v3162 = vextract.high.u32 %v3160
      %v3163 = vshrl.u32 %v3162, 4
      %v3164 = vmul.u32 %v3163, 24
      %v3165 = vsub.s32 %v3159, %v3164
      %v3166 = vsub.s32 0, %v3165
      %v3167 = vsel %vm3157, %v3166, %v3165
      %vm3168 = vcmp.lt.s32.totalorder %v2800, 0
      %v3169 = vsub.s32 0, %v2800
      %v3170 = vsel %vm3168, %v3169, %v2800
      %v3171 = vmul.u32.u64.compose %v3170, 2863311531
      %v3172 = vextract.low.u32 %v3171
      %v3173 = vextract.high.u32 %v3171
      %v3174 = vshrl.u32 %v3173, 4
      %v3175 = vmul.u32 %v3174, 24
      %v3176 = vsub.s32 %v3170, %v3175
      %v3177 = vsub.s32 0, %v3176
      %v3178 = vsel %vm3168, %v3177, %v3176
      %vm3179 = vcmp.lt.s32.totalorder %v2801, 0
      %v3180 = vsub.s32 0, %v2801
      %v3181 = vsel %vm3179, %v3180, %v2801
      %v3182 = vmul.u32.u64.compose %v3181, 2863311531
      %v3183 = vextract.low.u32 %v3182
      %v3184 = vextract.high.u32 %v3182
      %v3185 = vshrl.u32 %v3184, 4
      %v3186 = vmul.u32 %v3185, 24
      %v3187 = vsub.s32 %v3181, %v3186
      %v3188 = vsub.s32 0, %v3187
      %v3189 = vsel %vm3179, %v3188, %v3187
      %vm3190 = vcmp.lt.s32.totalorder %v2802, 0
      %v3191 = vsub.s32 0, %v2802
      %v3192 = vsel %vm3190, %v3191, %v2802
      %v3193 = vmul.u32.u64.compose %v3192, 2863311531
      %v3194 = vextract.low.u32 %v3193
      %v3195 = vextract.high.u32 %v3193
      %v3196 = vshrl.u32 %v3195, 4
      %v3197 = vmul.u32 %v3196, 24
      %v3198 = vsub.s32 %v3192, %v3197
      %v3199 = vsub.s32 0, %v3198
      %v3200 = vsel %vm3190, %v3199, %v3198
      %vm3201 = vcmp.lt.s32.totalorder %v2803, 0
      %v3202 = vsub.s32 0, %v2803
      %v3203 = vsel %vm3201, %v3202, %v2803
      %v3204 = vmul.u32.u64.compose %v3203, 2863311531
      %v3205 = vextract.low.u32 %v3204
      %v3206 = vextract.high.u32 %v3204
      %v3207 = vshrl.u32 %v3206, 4
      %v3208 = vmul.u32 %v3207, 24
      %v3209 = vsub.s32 %v3203, %v3208
      %v3210 = vsub.s32 0, %v3209
      %v3211 = vsel %vm3201, %v3210, %v3209
      %vm3212 = vcmp.lt.s32.totalorder %v2804, 0
      %v3213 = vsub.s32 0, %v2804
      %v3214 = vsel %vm3212, %v3213, %v2804
      %v3215 = vmul.u32.u64.compose %v3214, 2863311531
      %v3216 = vextract.low.u32 %v3215
      %v3217 = vextract.high.u32 %v3215
      %v3218 = vshrl.u32 %v3217, 4
      %v3219 = vmul.u32 %v3218, 24
      %v3220 = vsub.s32 %v3214, %v3219
      %v3221 = vsub.s32 0, %v3220
      %v3222 = vsel %vm3212, %v3221, %v3220
      %vm3223 = vcmp.lt.s32.totalorder %v2805, 0
      %v3224 = vsub.s32 0, %v2805
      %v3225 = vsel %vm3223, %v3224, %v2805
      %v3226 = vmul.u32.u64.compose %v3225, 2863311531
      %v3227 = vextract.low.u32 %v3226
      %v3228 = vextract.high.u32 %v3226
      %v3229 = vshrl.u32 %v3228, 4
      %v3230 = vmul.u32 %v3229, 24
      %v3231 = vsub.s32 %v3225, %v3230
      %v3232 = vsub.s32 0, %v3231
      %v3233 = vsel %vm3223, %v3232, %v3231
      %vm3234 = vcmp.lt.s32.totalorder %v2806, 0
      %v3235 = vsub.s32 0, %v2806
      %v3236 = vsel %vm3234, %v3235, %v2806
      %v3237 = vmul.u32.u64.compose %v3236, 2863311531
      %v3238 = vextract.low.u32 %v3237
      %v3239 = vextract.high.u32 %v3237
      %v3240 = vshrl.u32 %v3239, 4
      %v3241 = vmul.u32 %v3240, 24
      %v3242 = vsub.s32 %v3236, %v3241
      %v3243 = vsub.s32 0, %v3242
      %v3244 = vsel %vm3234, %v3243, %v3242
      %vm3245 = vcmp.lt.s32.totalorder %v2807, 0
      %v3246 = vsub.s32 0, %v2807
      %v3247 = vsel %vm3245, %v3246, %v2807
      %v3248 = vmul.u32.u64.compose %v3247, 2863311531
      %v3249 = vextract.low.u32 %v3248
      %v3250 = vextract.high.u32 %v3248
      %v3251 = vshrl.u32 %v3250, 4
      %v3252 = vmul.u32 %v3251, 24
      %v3253 = vsub.s32 %v3247, %v3252
      %v3254 = vsub.s32 0, %v3253
      %v3255 = vsel %vm3245, %v3254, %v3253
      %vm3256 = vcmp.lt.s32.totalorder %v2808, 0
      %v3257 = vsub.s32 0, %v2808
      %v3258 = vsel %vm3256, %v3257, %v2808
      %v3259 = vmul.u32.u64.compose %v3258, 2863311531
      %v3260 = vextract.low.u32 %v3259
      %v3261 = vextract.high.u32 %v3259
      %v3262 = vshrl.u32 %v3261, 4
      %v3263 = vmul.u32 %v3262, 24
      %v3264 = vsub.s32 %v3258, %v3263
      %v3265 = vsub.s32 0, %v3264
      %v3266 = vsel %vm3256, %v3265, %v3264
      %vm3267 = vcmp.lt.s32.totalorder %v2809, 0
      %v3268 = vsub.s32 0, %v2809
      %v3269 = vsel %vm3267, %v3268, %v2809
      %v3270 = vmul.u32.u64.compose %v3269, 2863311531
      %v3271 = vextract.low.u32 %v3270
      %v3272 = vextract.high.u32 %v3270
      %v3273 = vshrl.u32 %v3272, 4
      %v3274 = vmul.u32 %v3273, 24
      %v3275 = vsub.s32 %v3269, %v3274
      %v3276 = vsub.s32 0, %v3275
      %v3277 = vsel %vm3267, %v3276, %v3275
      %vm3278 = vcmp.lt.s32.totalorder %v2810, 0
      %v3279 = vsub.s32 0, %v2810
      %v3280 = vsel %vm3278, %v3279, %v2810
      %v3281 = vmul.u32.u64.compose %v3280, 2863311531
      %v3282 = vextract.low.u32 %v3281
      %v3283 = vextract.high.u32 %v3281
      %v3284 = vshrl.u32 %v3283, 4
      %v3285 = vmul.u32 %v3284, 24
      %v3286 = vsub.s32 %v3280, %v3285
      %v3287 = vsub.s32 0, %v3286
      %v3288 = vsel %vm3278, %v3287, %v3286
      %vm3289 = vcmp.lt.s32.totalorder %v2811, 0
      %v3290 = vsub.s32 0, %v2811
      %v3291 = vsel %vm3289, %v3290, %v2811
      %v3292 = vmul.u32.u64.compose %v3291, 2863311531
      %v3293 = vextract.low.u32 %v3292
      %v3294 = vextract.high.u32 %v3292
      %v3295 = vshrl.u32 %v3294, 4
      %v3296 = vmul.u32 %v3295, 24
      %v3297 = vsub.s32 %v3291, %v3296
      %v3298 = vsub.s32 0, %v3297
      %v3299 = vsel %vm3289, %v3298, %v3297
      %vm3300 = vcmp.lt.s32.totalorder %v2812, 0
      %v3301 = vsub.s32 0, %v2812
      %v3302 = vsel %vm3300, %v3301, %v2812
      %v3303 = vmul.u32.u64.compose %v3302, 2863311531
      %v3304 = vextract.low.u32 %v3303
      %v3305 = vextract.high.u32 %v3303
      %v3306 = vshrl.u32 %v3305, 4
      %v3307 = vmul.u32 %v3306, 24
      %v3308 = vsub.s32 %v3302, %v3307
      %v3309 = vsub.s32 0, %v3308
      %v3310 = vsel %vm3300, %v3309, %v3308
      %vm3311 = vcmp.lt.s32.totalorder %v2813, 0
      %v3312 = vsub.s32 0, %v2813
      %v3313 = vsel %vm3311, %v3312, %v2813
      %v3314 = vmul.u32.u64.compose %v3313, 2863311531
      %v3315 = vextract.low.u32 %v3314
      %v3316 = vextract.high.u32 %v3314
      %v3317 = vshrl.u32 %v3316, 4
      %v3318 = vmul.u32 %v3317, 24
      %v3319 = vsub.s32 %v3313, %v3318
      %v3320 = vsub.s32 0, %v3319
      %v3321 = vsel %vm3311, %v3320, %v3319
      %vm3322 = vcmp.lt.s32.totalorder %v2814, 0
      %v3323 = vsub.s32 0, %v2814
      %v3324 = vsel %vm3322, %v3323, %v2814
      %v3325 = vmul.u32.u64.compose %v3324, 2863311531
      %v3326 = vextract.low.u32 %v3325
      %v3327 = vextract.high.u32 %v3325
      %v3328 = vshrl.u32 %v3327, 4
      %v3329 = vmul.u32 %v3328, 24
      %v3330 = vsub.s32 %v3324, %v3329
      %v3331 = vsub.s32 0, %v3330
      %v3332 = vsel %vm3322, %v3331, %v3330
      %vm3333 = vcmp.lt.s32.totalorder %v2815, 0
      %v3334 = vsub.s32 0, %v2815
      %v3335 = vsel %vm3333, %v3334, %v2815
      %v3336 = vmul.u32.u64.compose %v3335, 2863311531
      %v3337 = vextract.low.u32 %v3336
      %v3338 = vextract.high.u32 %v3336
      %v3339 = vshrl.u32 %v3338, 4
      %v3340 = vmul.u32 %v3339, 24
      %v3341 = vsub.s32 %v3335, %v3340
      %v3342 = vsub.s32 0, %v3341
      %v3343 = vsel %vm3333, %v3342, %v3341
      %vm3344 = vcmp.ne.s32.totalorder %v2826, 0
      %vm3345 = vcmp.ne.s32.totalorder %v2837, 0
      %vm3346 = vcmp.ne.s32.totalorder %v2848, 0
      %vm3347 = vcmp.ne.s32.totalorder %v2859, 0
      %vm3348 = vcmp.ne.s32.totalorder %v2870, 0
      %vm3349 = vcmp.ne.s32.totalorder %v2881, 0
      %vm3350 = vcmp.ne.s32.totalorder %v2892, 0
      %vm3351 = vcmp.ne.s32.totalorder %v2903, 0
      %vm3352 = vcmp.ne.s32.totalorder %v2914, 0
      %vm3353 = vcmp.ne.s32.totalorder %v2925, 0
      %vm3354 = vcmp.ne.s32.totalorder %v2936, 0
      %vm3355 = vcmp.ne.s32.totalorder %v2947, 0
      %vm3356 = vcmp.ne.s32.totalorder %v2958, 0
      %vm3357 = vcmp.ne.s32.totalorder %v2969, 0
      %vm3358 = vcmp.ne.s32.totalorder %v2980, 0
      %vm3359 = vcmp.ne.s32.totalorder %v2991, 0
      %vm3360 = vcmp.ne.s32.totalorder %v3002, 0
      %vm3361 = vcmp.ne.s32.totalorder %v3013, 0
      %vm3362 = vcmp.ne.s32.totalorder %v3024, 0
      %vm3363 = vcmp.ne.s32.totalorder %v3035, 0
      %vm3364 = vcmp.ne.s32.totalorder %v3046, 0
      %vm3365 = vcmp.ne.s32.totalorder %v3057, 0
      %vm3366 = vcmp.ne.s32.totalorder %v3068, 0
      %vm3367 = vcmp.ne.s32.totalorder %v3079, 0
      %vm3368 = vcmp.ne.s32.totalorder %v3090, 0
      %vm3369 = vcmp.ne.s32.totalorder %v3101, 0
      %vm3370 = vcmp.ne.s32.totalorder %v3112, 0
      %vm3371 = vcmp.ne.s32.totalorder %v3123, 0
      %vm3372 = vcmp.ne.s32.totalorder %v3134, 0
      %vm3373 = vcmp.ne.s32.totalorder %v3145, 0
      %vm3374 = vcmp.ne.s32.totalorder %v3156, 0
      %vm3375 = vcmp.ne.s32.totalorder %v3167, 0
      %vm3376 = vcmp.ne.s32.totalorder %v3178, 0
      %vm3377 = vcmp.ne.s32.totalorder %v3189, 0
      %vm3378 = vcmp.ne.s32.totalorder %v3200, 0
      %vm3379 = vcmp.ne.s32.totalorder %v3211, 0
      %vm3380 = vcmp.ne.s32.totalorder %v3222, 0
      %vm3381 = vcmp.ne.s32.totalorder %v3233, 0
      %vm3382 = vcmp.ne.s32.totalorder %v3244, 0
      %vm3383 = vcmp.ne.s32.totalorder %v3255, 0
      %vm3384 = vcmp.ne.s32.totalorder %v3266, 0
      %vm3385 = vcmp.ne.s32.totalorder %v3277, 0
      %vm3386 = vcmp.ne.s32.totalorder %v3288, 0
      %vm3387 = vcmp.ne.s32.totalorder %v3299, 0
      %vm3388 = vcmp.ne.s32.totalorder %v3310, 0
      %vm3389 = vcmp.ne.s32.totalorder %v3321, 0
      %vm3390 = vcmp.ne.s32.totalorder %v3332, 0
      %vm3391 = vcmp.ne.s32.totalorder %v3343, 0
      %vm3392 = vcmp.lt.s32.totalorder %v2826, 0
      %vm3393 = vcmp.lt.s32.totalorder %v2837, 0
      %vm3394 = vcmp.lt.s32.totalorder %v2848, 0
      %vm3395 = vcmp.lt.s32.totalorder %v2859, 0
      %vm3396 = vcmp.lt.s32.totalorder %v2870, 0
      %vm3397 = vcmp.lt.s32.totalorder %v2881, 0
      %vm3398 = vcmp.lt.s32.totalorder %v2892, 0
      %vm3399 = vcmp.lt.s32.totalorder %v2903, 0
      %vm3400 = vcmp.lt.s32.totalorder %v2914, 0
      %vm3401 = vcmp.lt.s32.totalorder %v2925, 0
      %vm3402 = vcmp.lt.s32.totalorder %v2936, 0
      %vm3403 = vcmp.lt.s32.totalorder %v2947, 0
      %vm3404 = vcmp.lt.s32.totalorder %v2958, 0
      %vm3405 = vcmp.lt.s32.totalorder %v2969, 0
      %vm3406 = vcmp.lt.s32.totalorder %v2980, 0
      %vm3407 = vcmp.lt.s32.totalorder %v2991, 0
      %vm3408 = vcmp.lt.s32.totalorder %v3002, 0
      %vm3409 = vcmp.lt.s32.totalorder %v3013, 0
      %vm3410 = vcmp.lt.s32.totalorder %v3024, 0
      %vm3411 = vcmp.lt.s32.totalorder %v3035, 0
      %vm3412 = vcmp.lt.s32.totalorder %v3046, 0
      %vm3413 = vcmp.lt.s32.totalorder %v3057, 0
      %vm3414 = vcmp.lt.s32.totalorder %v3068, 0
      %vm3415 = vcmp.lt.s32.totalorder %v3079, 0
      %vm3416 = vcmp.lt.s32.totalorder %v3090, 0
      %vm3417 = vcmp.lt.s32.totalorder %v3101, 0
      %vm3418 = vcmp.lt.s32.totalorder %v3112, 0
      %vm3419 = vcmp.lt.s32.totalorder %v3123, 0
      %vm3420 = vcmp.lt.s32.totalorder %v3134, 0
      %vm3421 = vcmp.lt.s32.totalorder %v3145, 0
      %vm3422 = vcmp.lt.s32.totalorder %v3156, 0
      %vm3423 = vcmp.lt.s32.totalorder %v3167, 0
      %vm3424 = vcmp.lt.s32.totalorder %v3178, 0
      %vm3425 = vcmp.lt.s32.totalorder %v3189, 0
      %vm3426 = vcmp.lt.s32.totalorder %v3200, 0
      %vm3427 = vcmp.lt.s32.totalorder %v3211, 0
      %vm3428 = vcmp.lt.s32.totalorder %v3222, 0
      %vm3429 = vcmp.lt.s32.totalorder %v3233, 0
      %vm3430 = vcmp.lt.s32.totalorder %v3244, 0
      %vm3431 = vcmp.lt.s32.totalorder %v3255, 0
      %vm3432 = vcmp.lt.s32.totalorder %v3266, 0
      %vm3433 = vcmp.lt.s32.totalorder %v3277, 0
      %vm3434 = vcmp.lt.s32.totalorder %v3288, 0
      %vm3435 = vcmp.lt.s32.totalorder %v3299, 0
      %vm3436 = vcmp.lt.s32.totalorder %v3310, 0
      %vm3437 = vcmp.lt.s32.totalorder %v3321, 0
      %vm3438 = vcmp.lt.s32.totalorder %v3332, 0
      %vm3439 = vcmp.lt.s32.totalorder %v3343, 0
      %vm3440 = vmand %vm3392, %vm3344
      %vm3441 = vmand %vm3393, %vm3345
      %vm3442 = vmand %vm3394, %vm3346
      %vm3443 = vmand %vm3395, %vm3347
      %vm3444 = vmand %vm3396, %vm3348
      %vm3445 = vmand %vm3397, %vm3349
      %vm3446 = vmand %vm3398, %vm3350
      %vm3447 = vmand %vm3399, %vm3351
      %vm3448 = vmand %vm3400, %vm3352
      %vm3449 = vmand %vm3401, %vm3353
      %vm3450 = vmand %vm3402, %vm3354
      %vm3451 = vmand %vm3403, %vm3355
      %vm3452 = vmand %vm3404, %vm3356
      %vm3453 = vmand %vm3405, %vm3357
      %vm3454 = vmand %vm3406, %vm3358
      %vm3455 = vmand %vm3407, %vm3359
      %vm3456 = vmand %vm3408, %vm3360
      %vm3457 = vmand %vm3409, %vm3361
      %vm3458 = vmand %vm3410, %vm3362
      %vm3459 = vmand %vm3411, %vm3363
      %vm3460 = vmand %vm3412, %vm3364
      %vm3461 = vmand %vm3413, %vm3365
      %vm3462 = vmand %vm3414, %vm3366
      %vm3463 = vmand %vm3415, %vm3367
      %vm3464 = vmand %vm3416, %vm3368
      %vm3465 = vmand %vm3417, %vm3369
      %vm3466 = vmand %vm3418, %vm3370
      %vm3467 = vmand %vm3419, %vm3371
      %vm3468 = vmand %vm3420, %vm3372
      %vm3469 = vmand %vm3421, %vm3373
      %vm3470 = vmand %vm3422, %vm3374
      %vm3471 = vmand %vm3423, %vm3375
      %vm3472 = vmand %vm3424, %vm3376
      %vm3473 = vmand %vm3425, %vm3377
      %vm3474 = vmand %vm3426, %vm3378
      %vm3475 = vmand %vm3427, %vm3379
      %vm3476 = vmand %vm3428, %vm3380
      %vm3477 = vmand %vm3429, %vm3381
      %vm3478 = vmand %vm3430, %vm3382
      %vm3479 = vmand %vm3431, %vm3383
      %vm3480 = vmand %vm3432, %vm3384
      %vm3481 = vmand %vm3433, %vm3385
      %vm3482 = vmand %vm3434, %vm3386
      %vm3483 = vmand %vm3435, %vm3387
      %vm3484 = vmand %vm3436, %vm3388
      %vm3485 = vmand %vm3437, %vm3389
      %vm3486 = vmand %vm3438, %vm3390
      %vm3487 = vmand %vm3439, %vm3391
      %v3488 = vadd.s32 %v2826, 24
      %v3489 = vadd.s32 %v2837, 24
      %v3490 = vadd.s32 %v2848, 24
      %v3491 = vadd.s32 %v2859, 24
      %v3492 = vadd.s32 %v2870, 24
      %v3493 = vadd.s32 %v2881, 24
      %v3494 = vadd.s32 %v2892, 24
      %v3495 = vadd.s32 %v2903, 24
      %v3496 = vadd.s32 %v2914, 24
      %v3497 = vadd.s32 %v2925, 24
      %v3498 = vadd.s32 %v2936, 24
      %v3499 = vadd.s32 %v2947, 24
      %v3500 = vadd.s32 %v2958, 24
      %v3501 = vadd.s32 %v2969, 24
      %v3502 = vadd.s32 %v2980, 24
      %v3503 = vadd.s32 %v2991, 24
      %v3504 = vadd.s32 %v3002, 24
      %v3505 = vadd.s32 %v3013, 24
      %v3506 = vadd.s32 %v3024, 24
      %v3507 = vadd.s32 %v3035, 24
      %v3508 = vadd.s32 %v3046, 24
      %v3509 = vadd.s32 %v3057, 24
      %v3510 = vadd.s32 %v3068, 24
      %v3511 = vadd.s32 %v3079, 24
      %v3512 = vadd.s32 %v3090, 24
      %v3513 = vadd.s32 %v3101, 24
      %v3514 = vadd.s32 %v3112, 24
      %v3515 = vadd.s32 %v3123, 24
      %v3516 = vadd.s32 %v3134, 24
      %v3517 = vadd.s32 %v3145, 24
      %v3518 = vadd.s32 %v3156, 24
      %v3519 = vadd.s32 %v3167, 24
      %v3520 = vadd.s32 %v3178, 24
      %v3521 = vadd.s32 %v3189, 24
      %v3522 = vadd.s32 %v3200, 24
      %v3523 = vadd.s32 %v3211, 24
      %v3524 = vadd.s32 %v3222, 24
      %v3525 = vadd.s32 %v3233, 24
      %v3526 = vadd.s32 %v3244, 24
      %v3527 = vadd.s32 %v3255, 24
      %v3528 = vadd.s32 %v3266, 24
      %v3529 = vadd.s32 %v3277, 24
      %v3530 = vadd.s32 %v3288, 24
      %v3531 = vadd.s32 %v3299, 24
      %v3532 = vadd.s32 %v3310, 24
      %v3533 = vadd.s32 %v3321, 24
      %v3534 = vadd.s32 %v3332, 24
      %v3535 = vadd.s32 %v3343, 24
      %v3536 = vsel %vm3440, %v3488, %v2826
      %v3537 = vsel %vm3441, %v3489, %v2837
      %v3538 = vsel %vm3442, %v3490, %v2848
      %v3539 = vsel %vm3443, %v3491, %v2859
      %v3540 = vsel %vm3444, %v3492, %v2870
      %v3541 = vsel %vm3445, %v3493, %v2881
      %v3542 = vsel %vm3446, %v3494, %v2892
      %v3543 = vsel %vm3447, %v3495, %v2903
      %v3544 = vsel %vm3448, %v3496, %v2914
      %v3545 = vsel %vm3449, %v3497, %v2925
      %v3546 = vsel %vm3450, %v3498, %v2936
      %v3547 = vsel %vm3451, %v3499, %v2947
      %v3548 = vsel %vm3452, %v3500, %v2958
      %v3549 = vsel %vm3453, %v3501, %v2969
      %v3550 = vsel %vm3454, %v3502, %v2980
      %v3551 = vsel %vm3455, %v3503, %v2991
      %v3552 = vsel %vm3456, %v3504, %v3002
      %v3553 = vsel %vm3457, %v3505, %v3013
      %v3554 = vsel %vm3458, %v3506, %v3024
      %v3555 = vsel %vm3459, %v3507, %v3035
      %v3556 = vsel %vm3460, %v3508, %v3046
      %v3557 = vsel %vm3461, %v3509, %v3057
      %v3558 = vsel %vm3462, %v3510, %v3068
      %v3559 = vsel %vm3463, %v3511, %v3079
      %v3560 = vsel %vm3464, %v3512, %v3090
      %v3561 = vsel %vm3465, %v3513, %v3101
      %v3562 = vsel %vm3466, %v3514, %v3112
      %v3563 = vsel %vm3467, %v3515, %v3123
      %v3564 = vsel %vm3468, %v3516, %v3134
      %v3565 = vsel %vm3469, %v3517, %v3145
      %v3566 = vsel %vm3470, %v3518, %v3156
      %v3567 = vsel %vm3471, %v3519, %v3167
      %v3568 = vsel %vm3472, %v3520, %v3178
      %v3569 = vsel %vm3473, %v3521, %v3189
      %v3570 = vsel %vm3474, %v3522, %v3200
      %v3571 = vsel %vm3475, %v3523, %v3211
      %v3572 = vsel %vm3476, %v3524, %v3222
      %v3573 = vsel %vm3477, %v3525, %v3233
      %v3574 = vsel %vm3478, %v3526, %v3244
      %v3575 = vsel %vm3479, %v3527, %v3255
      %v3576 = vsel %vm3480, %v3528, %v3266
      %v3577 = vsel %vm3481, %v3529, %v3277
      %v3578 = vsel %vm3482, %v3530, %v3288
      %v3579 = vsel %vm3483, %v3531, %v3299
      %v3580 = vsel %vm3484, %v3532, %v3310
      %v3581 = vsel %vm3485, %v3533, %v3321
      %v3582 = vsel %vm3486, %v3534, %v3332
      %v3583 = vsel %vm3487, %v3535, %v3343
      %vm3584 = vcmp.lt.s32.totalorder %v3536, 16
      %vm3585 = vcmp.lt.s32.totalorder %v3537, 16
      %vm3586 = vcmp.lt.s32.totalorder %v3538, 16
      %vm3587 = vcmp.lt.s32.totalorder %v3539, 16
      %vm3588 = vcmp.lt.s32.totalorder %v3540, 16
      %vm3589 = vcmp.lt.s32.totalorder %v3541, 16
      %vm3590 = vcmp.lt.s32.totalorder %v3542, 16
      %vm3591 = vcmp.lt.s32.totalorder %v3543, 16
      %vm3592 = vcmp.lt.s32.totalorder %v3544, 16
      %vm3593 = vcmp.lt.s32.totalorder %v3545, 16
      %vm3594 = vcmp.lt.s32.totalorder %v3546, 16
      %vm3595 = vcmp.lt.s32.totalorder %v3547, 16
      %vm3596 = vcmp.lt.s32.totalorder %v3548, 16
      %vm3597 = vcmp.lt.s32.totalorder %v3549, 16
      %vm3598 = vcmp.lt.s32.totalorder %v3550, 16
      %vm3599 = vcmp.lt.s32.totalorder %v3551, 16
      %vm3600 = vcmp.lt.s32.totalorder %v3552, 16
      %vm3601 = vcmp.lt.s32.totalorder %v3553, 16
      %vm3602 = vcmp.lt.s32.totalorder %v3554, 16
      %vm3603 = vcmp.lt.s32.totalorder %v3555, 16
      %vm3604 = vcmp.lt.s32.totalorder %v3556, 16
      %vm3605 = vcmp.lt.s32.totalorder %v3557, 16
      %vm3606 = vcmp.lt.s32.totalorder %v3558, 16
      %vm3607 = vcmp.lt.s32.totalorder %v3559, 16
      %vm3608 = vcmp.lt.s32.totalorder %v3560, 16
      %vm3609 = vcmp.lt.s32.totalorder %v3561, 16
      %vm3610 = vcmp.lt.s32.totalorder %v3562, 16
      %vm3611 = vcmp.lt.s32.totalorder %v3563, 16
      %vm3612 = vcmp.lt.s32.totalorder %v3564, 16
      %vm3613 = vcmp.lt.s32.totalorder %v3565, 16
      %vm3614 = vcmp.lt.s32.totalorder %v3566, 16
      %vm3615 = vcmp.lt.s32.totalorder %v3567, 16
      %vm3616 = vcmp.lt.s32.totalorder %v3568, 16
      %vm3617 = vcmp.lt.s32.totalorder %v3569, 16
      %vm3618 = vcmp.lt.s32.totalorder %v3570, 16
      %vm3619 = vcmp.lt.s32.totalorder %v3571, 16
      %vm3620 = vcmp.lt.s32.totalorder %v3572, 16
      %vm3621 = vcmp.lt.s32.totalorder %v3573, 16
      %vm3622 = vcmp.lt.s32.totalorder %v3574, 16
      %vm3623 = vcmp.lt.s32.totalorder %v3575, 16
      %vm3624 = vcmp.lt.s32.totalorder %v3576, 16
      %vm3625 = vcmp.lt.s32.totalorder %v3577, 16
      %vm3626 = vcmp.lt.s32.totalorder %v3578, 16
      %vm3627 = vcmp.lt.s32.totalorder %v3579, 16
      %vm3628 = vcmp.lt.s32.totalorder %v3580, 16
      %vm3629 = vcmp.lt.s32.totalorder %v3581, 16
      %vm3630 = vcmp.lt.s32.totalorder %v3582, 16
      %vm3631 = vcmp.lt.s32.totalorder %v3583, 16
      %v3632 = vsel %vm3584, 1, 0
      %v3633 = vsel %vm3585, 1, 0
      %v3634 = vsel %vm3586, 1, 0
      %v3635 = vsel %vm3587, 1, 0
      %v3636 = vsel %vm3588, 1, 0
      %v3637 = vsel %vm3589, 1, 0
      %v3638 = vsel %vm3590, 1, 0
      %v3639 = vsel %vm3591, 1, 0
      %v3640 = vsel %vm3592, 1, 0
      %v3641 = vsel %vm3593, 1, 0
      %v3642 = vsel %vm3594, 1, 0
      %v3643 = vsel %vm3595, 1, 0
      %v3644 = vsel %vm3596, 1, 0
      %v3645 = vsel %vm3597, 1, 0
      %v3646 = vsel %vm3598, 1, 0
      %v3647 = vsel %vm3599, 1, 0
      %v3648 = vsel %vm3600, 1, 0
      %v3649 = vsel %vm3601, 1, 0
      %v3650 = vsel %vm3602, 1, 0
      %v3651 = vsel %vm3603, 1, 0
      %v3652 = vsel %vm3604, 1, 0
      %v3653 = vsel %vm3605, 1, 0
      %v3654 = vsel %vm3606, 1, 0
      %v3655 = vsel %vm3607, 1, 0
      %v3656 = vsel %vm3608, 1, 0
      %v3657 = vsel %vm3609, 1, 0
      %v3658 = vsel %vm3610, 1, 0
      %v3659 = vsel %vm3611, 1, 0
      %v3660 = vsel %vm3612, 1, 0
      %v3661 = vsel %vm3613, 1, 0
      %v3662 = vsel %vm3614, 1, 0
      %v3663 = vsel %vm3615, 1, 0
      %v3664 = vsel %vm3616, 1, 0
      %v3665 = vsel %vm3617, 1, 0
      %v3666 = vsel %vm3618, 1, 0
      %v3667 = vsel %vm3619, 1, 0
      %v3668 = vsel %vm3620, 1, 0
      %v3669 = vsel %vm3621, 1, 0
      %v3670 = vsel %vm3622, 1, 0
      %v3671 = vsel %vm3623, 1, 0
      %v3672 = vsel %vm3624, 1, 0
      %v3673 = vsel %vm3625, 1, 0
      %v3674 = vsel %vm3626, 1, 0
      %v3675 = vsel %vm3627, 1, 0
      %v3676 = vsel %vm3628, 1, 0
      %v3677 = vsel %vm3629, 1, 0
      %v3678 = vsel %vm3630, 1, 0
      %v3679 = vsel %vm3631, 1, 0
      %vm3680 = vcmp.eq.s32.totalorder %v3632, 1
      %vm3681 = vcmp.eq.s32.totalorder %v3633, 1
      %vm3682 = vcmp.eq.s32.totalorder %v3634, 1
      %vm3683 = vcmp.eq.s32.totalorder %v3635, 1
      %vm3684 = vcmp.eq.s32.totalorder %v3636, 1
      %vm3685 = vcmp.eq.s32.totalorder %v3637, 1
      %vm3686 = vcmp.eq.s32.totalorder %v3638, 1
      %vm3687 = vcmp.eq.s32.totalorder %v3639, 1
      %vm3688 = vcmp.eq.s32.totalorder %v3640, 1
      %vm3689 = vcmp.eq.s32.totalorder %v3641, 1
      %vm3690 = vcmp.eq.s32.totalorder %v3642, 1
      %vm3691 = vcmp.eq.s32.totalorder %v3643, 1
      %vm3692 = vcmp.eq.s32.totalorder %v3644, 1
      %vm3693 = vcmp.eq.s32.totalorder %v3645, 1
      %vm3694 = vcmp.eq.s32.totalorder %v3646, 1
      %vm3695 = vcmp.eq.s32.totalorder %v3647, 1
      %vm3696 = vcmp.eq.s32.totalorder %v3648, 1
      %vm3697 = vcmp.eq.s32.totalorder %v3649, 1
      %vm3698 = vcmp.eq.s32.totalorder %v3650, 1
      %vm3699 = vcmp.eq.s32.totalorder %v3651, 1
      %vm3700 = vcmp.eq.s32.totalorder %v3652, 1
      %vm3701 = vcmp.eq.s32.totalorder %v3653, 1
      %vm3702 = vcmp.eq.s32.totalorder %v3654, 1
      %vm3703 = vcmp.eq.s32.totalorder %v3655, 1
      %vm3704 = vcmp.eq.s32.totalorder %v3656, 1
      %vm3705 = vcmp.eq.s32.totalorder %v3657, 1
      %vm3706 = vcmp.eq.s32.totalorder %v3658, 1
      %vm3707 = vcmp.eq.s32.totalorder %v3659, 1
      %vm3708 = vcmp.eq.s32.totalorder %v3660, 1
      %vm3709 = vcmp.eq.s32.totalorder %v3661, 1
      %vm3710 = vcmp.eq.s32.totalorder %v3662, 1
      %vm3711 = vcmp.eq.s32.totalorder %v3663, 1
      %vm3712 = vcmp.eq.s32.totalorder %v3664, 1
      %vm3713 = vcmp.eq.s32.totalorder %v3665, 1
      %vm3714 = vcmp.eq.s32.totalorder %v3666, 1
      %vm3715 = vcmp.eq.s32.totalorder %v3667, 1
      %vm3716 = vcmp.eq.s32.totalorder %v3668, 1
      %vm3717 = vcmp.eq.s32.totalorder %v3669, 1
      %vm3718 = vcmp.eq.s32.totalorder %v3670, 1
      %vm3719 = vcmp.eq.s32.totalorder %v3671, 1
      %vm3720 = vcmp.eq.s32.totalorder %v3672, 1
      %vm3721 = vcmp.eq.s32.totalorder %v3673, 1
      %vm3722 = vcmp.eq.s32.totalorder %v3674, 1
      %vm3723 = vcmp.eq.s32.totalorder %v3675, 1
      %vm3724 = vcmp.eq.s32.totalorder %v3676, 1
      %vm3725 = vcmp.eq.s32.totalorder %v3677, 1
      %vm3726 = vcmp.eq.s32.totalorder %v3678, 1
      %vm3727 = vcmp.eq.s32.totalorder %v3679, 1
      %v3728 = vsel %vm3680, %v2719, 0.0
      %v3729 = vsel %vm3681, %v2720, 0.0
      %v3730 = vsel %vm3682, %v2721, 0.0
      %v3731 = vsel %vm3683, %v2722, 0.0
      %v3732 = vsel %vm3684, %v2723, 0.0
      %v3733 = vsel %vm3685, %v2724, 0.0
      %v3734 = vsel %vm3686, %v2725, 0.0
      %v3735 = vsel %vm3687, %v2726, 0.0
      %v3736 = vsel %vm3688, %v2727, 0.0
      %v3737 = vsel %vm3689, %v2728, 0.0
      %v3738 = vsel %vm3690, %v2729, 0.0
      %v3739 = vsel %vm3691, %v2730, 0.0
      %v3740 = vsel %vm3692, %v2731, 0.0
      %v3741 = vsel %vm3693, %v2732, 0.0
      %v3742 = vsel %vm3694, %v2733, 0.0
      %v3743 = vsel %vm3695, %v2734, 0.0
      %v3744 = vsel %vm3696, %v2735, 0.0
      %v3745 = vsel %vm3697, %v2736, 0.0
      %v3746 = vsel %vm3698, %v2737, 0.0
      %v3747 = vsel %vm3699, %v2738, 0.0
      %v3748 = vsel %vm3700, %v2739, 0.0
      %v3749 = vsel %vm3701, %v2740, 0.0
      %v3750 = vsel %vm3702, %v2741, 0.0
      %v3751 = vsel %vm3703, %v2742, 0.0
      %v3752 = vsel %vm3704, %v2743, 0.0
      %v3753 = vsel %vm3705, %v2744, 0.0
      %v3754 = vsel %vm3706, %v2745, 0.0
      %v3755 = vsel %vm3707, %v2746, 0.0
      %v3756 = vsel %vm3708, %v2747, 0.0
      %v3757 = vsel %vm3709, %v2748, 0.0
      %v3758 = vsel %vm3710, %v2749, 0.0
      %v3759 = vsel %vm3711, %v2750, 0.0
      %v3760 = vsel %vm3712, %v2751, 0.0
      %v3761 = vsel %vm3713, %v2752, 0.0
      %v3762 = vsel %vm3714, %v2753, 0.0
      %v3763 = vsel %vm3715, %v2754, 0.0
      %v3764 = vsel %vm3716, %v2755, 0.0
      %v3765 = vsel %vm3717, %v2756, 0.0
      %v3766 = vsel %vm3718, %v2757, 0.0
      %v3767 = vsel %vm3719, %v2758, 0.0
      %v3768 = vsel %vm3720, %v2759, 0.0
      %v3769 = vsel %vm3721, %v2760, 0.0
      %v3770 = vsel %vm3722, %v2761, 0.0
      %v3771 = vsel %vm3723, %v2762, 0.0
      %v3772 = vsel %vm3724, %v2763, 0.0
      %v3773 = vsel %vm3725, %v2764, 0.0
      %v3774 = vsel %vm3726, %v2765, 0.0
      %v3775 = vsel %vm3727, %v2766, 0.0
      %3776 = vst.msk [vmem:[#allocation2] sm:$0xff] %vm1815, 0.0
      %3777 = vst.msk [vmem:[#allocation2 + $0x8] sm:$0xff] %vm1815, 0.0
      %3778 = vst.msk [vmem:[#allocation2 + $0x10] sm:$0xff] %vm1815, 0.0
      %3779 = vst.msk [vmem:[#allocation2 + $0x18] sm:$0xff] %vm1815, 0.0
      %3780 = vst.msk [vmem:[#allocation2 + $0x20] sm:$0xff] %vm1815, 0.0
      %3781 = vst.msk [vmem:[#allocation2 + $0x28] sm:$0xff] %vm1815, 0.0
      %3782 = vst.msk [vmem:[#allocation2 + $0x198] sm:$0xff] %vm1815, 0.0
      %3783 = vst.msk [vmem:[#allocation2 + $0x1a0] sm:$0xff] %vm1815, 0.0
      %3784 = vst.msk [vmem:[#allocation2 + $0x1a8] sm:$0xff] %vm1815, 0.0
      %3785 = vst.msk [vmem:[#allocation2 + $0x1b0] sm:$0xff] %vm1815, 0.0
      %3786 = vst.msk [vmem:[#allocation2 + $0x1b8] sm:$0xff] %vm1815, 0.0
      %3787 = vst.msk [vmem:[#allocation2 + $0x1c0] sm:$0xff] %vm1815, 0.0
      %3788 = vst.msk [vmem:[#allocation2 + $0x19] sm:$0xff] %vm1815, %v3728
      %3789 = vst.msk [vmem:[#allocation2 + $0x21] sm:$0xff] %vm1815, %v3729
      %3790 = vst.msk [vmem:[#allocation2 + $0x29] sm:$0xff] %vm1815, %v3730
      %3791 = vst.msk [vmem:[#allocation2 + $0x31] sm:$0xff] %vm1815, %v3731
      %3792 = vst.msk [vmem:[#allocation2 + $0x39] sm:$0xff] %vm1815, %v3732
      %3793 = vst.msk [vmem:[#allocation2 + $0x41] sm:$0xff] %vm1815, %v3733
      %3794 = vst.msk [vmem:[#allocation2 + $0x49] sm:$0xff] %vm1815, %v3734
      %3795 = vst.msk [vmem:[#allocation2 + $0x51] sm:$0xff] %vm1815, %v3735
      %3796 = vst.msk [vmem:[#allocation2 + $0x59] sm:$0xff] %vm1815, %v3736
      %3797 = vst.msk [vmem:[#allocation2 + $0x61] sm:$0xff] %vm1815, %v3737
      %3798 = vst.msk [vmem:[#allocation2 + $0x69] sm:$0xff] %vm1815, %v3738
      %3799 = vst.msk [vmem:[#allocation2 + $0x71] sm:$0xff] %vm1815, %v3739
      %3800 = vst.msk [vmem:[#allocation2 + $0x79] sm:$0xff] %vm1815, %v3740
      %3801 = vst.msk [vmem:[#allocation2 + $0x81] sm:$0xff] %vm1815, %v3741
      %3802 = vst.msk [vmem:[#allocation2 + $0x89] sm:$0xff] %vm1815, %v3742
      %3803 = vst.msk [vmem:[#allocation2 + $0x91] sm:$0xff] %vm1815, %v3743
      %3804 = vst.msk [vmem:[#allocation2 + $0x99] sm:$0xff] %vm1815, %v3744
      %3805 = vst.msk [vmem:[#allocation2 + $0xa1] sm:$0xff] %vm1815, %v3745
      %3806 = vst.msk [vmem:[#allocation2 + $0xa9] sm:$0xff] %vm1815, %v3746
      %3807 = vst.msk [vmem:[#allocation2 + $0xb1] sm:$0xff] %vm1815, %v3747
      %3808 = vst.msk [vmem:[#allocation2 + $0xb9] sm:$0xff] %vm1815, %v3748
      %3809 = vst.msk [vmem:[#allocation2 + $0xc1] sm:$0xff] %vm1815, %v3749
      %3810 = vst.msk [vmem:[#allocation2 + $0xc9] sm:$0xff] %vm1815, %v3750
      %3811 = vst.msk [vmem:[#allocation2 + $0xd1] sm:$0xff] %vm1815, %v3751
      %3812 = vst.msk [vmem:[#allocation2 + $0xd9] sm:$0xff] %vm1815, %v3752
      %3813 = vst.msk [vmem:[#allocation2 + $0xe1] sm:$0xff] %vm1815, %v3753
      %3814 = vst.msk [vmem:[#allocation2 + $0xe9] sm:$0xff] %vm1815, %v3754
      %3815 = vst.msk [vmem:[#allocation2 + $0xf1] sm:$0xff] %vm1815, %v3755
      %3816 = vst.msk [vmem:[#allocation2 + $0xf9] sm:$0xff] %vm1815, %v3756
      %3817 = vst.msk [vmem:[#allocation2 + $0x101] sm:$0xff] %vm1815, %v3757
      %3818 = vst.msk [vmem:[#allocation2 + $0x109] sm:$0xff] %vm1815, %v3758
      %3819 = vst.msk [vmem:[#allocation2 + $0x111] sm:$0xff] %vm1815, %v3759
      %3820 = vst.msk [vmem:[#allocation2 + $0x119] sm:$0xff] %vm1815, %v3760
      %3821 = vst.msk [vmem:[#allocation2 + $0x121] sm:$0xff] %vm1815, %v3761
      %3822 = vst.msk [vmem:[#allocation2 + $0x129] sm:$0xff] %vm1815, %v3762
      %3823 = vst.msk [vmem:[#allocation2 + $0x131] sm:$0xff] %vm1815, %v3763
      %3824 = vst.msk [vmem:[#allocation2 + $0x139] sm:$0xff] %vm1815, %v3764
      %3825 = vst.msk [vmem:[#allocation2 + $0x141] sm:$0xff] %vm1815, %v3765
      %3826 = vst.msk [vmem:[#allocation2 + $0x149] sm:$0xff] %vm1815, %v3766
      %3827 = vst.msk [vmem:[#allocation2 + $0x151] sm:$0xff] %vm1815, %v3767
      %3828 = vst.msk [vmem:[#allocation2 + $0x159] sm:$0xff] %vm1815, %v3768
      %3829 = vst.msk [vmem:[#allocation2 + $0x161] sm:$0xff] %vm1815, %v3769
      %3830 = vst.msk [vmem:[#allocation2 + $0x169] sm:$0xff] %vm1815, %v3770
      %3831 = vst.msk [vmem:[#allocation2 + $0x171] sm:$0xff] %vm1815, %v3771
      %3832 = vst.msk [vmem:[#allocation2 + $0x179] sm:$0xff] %vm1815, %v3772
      %3833 = vst.msk [vmem:[#allocation2 + $0x181] sm:$0xff] %vm1815, %v3773
      %3834 = vst.msk [vmem:[#allocation2 + $0x189] sm:$0xff] %vm1815, %v3774
      %3835 = vst.msk [vmem:[#allocation2 + $0x191] sm:$0xff] %vm1815, %v3775
      %v3836 = vld [vmem:[%s4] sm:$0x1]
      %v3837 = vld [vmem:[#allocation2] sm:$0xff]
      %v3838 = vld [vmem:[#allocation2 + $0x8] sm:$0xff]
      %v3839 = vld [vmem:[#allocation2 + $0x10] sm:$0xff]
      %v3840 = vld [vmem:[#allocation2 + $0x18] sm:$0xff]
      %v3841 = vld [vmem:[#allocation2 + $0x20] sm:$0xff]
      %v3842 = vld [vmem:[#allocation2 + $0x28] sm:$0xff]
      %v3843 = vld [vmem:[#allocation2 + $0x30] sm:$0xff]
      %v3844 = vld [vmem:[#allocation2 + $0x38] sm:$0xff]
      %v3845 = vld [vmem:[#allocation2 + $0x40] sm:$0xff]
      %v3846 = vld [vmem:[#allocation2 + $0x48] sm:$0xff]
      %v3847 = vld [vmem:[#allocation2 + $0x50] sm:$0xff]
      %v3848 = vld [vmem:[#allocation2 + $0x58] sm:$0xff]
      %v3849 = vld [vmem:[#allocation2 + $0x60] sm:$0xff]
      %v3850 = vld [vmem:[#allocation2 + $0x68] sm:$0xff]
      %v3851 = vld [vmem:[#allocation2 + $0x70] sm:$0xff]
      %v3852 = vld [vmem:[#allocation2 + $0x78] sm:$0xff]
      %v3853 = vld [vmem:[#allocation2 + $0x80] sm:$0xff]
      %v3854 = vld [vmem:[#allocation2 + $0x88] sm:$0xff]
      %v3855 = vld [vmem:[#allocation2 + $0x90] sm:$0xff]
      %v3856 = vld [vmem:[#allocation2 + $0x98] sm:$0xff]
      %v3857 = vld [vmem:[#allocation2 + $0xa0] sm:$0xff]
      %v3858 = vld [vmem:[#allocation2 + $0xa8] sm:$0xff]
      %v3859 = vld [vmem:[#allocation2 + $0xb0] sm:$0xff]
      %v3860 = vld [vmem:[#allocation2 + $0xb8] sm:$0xff]
      %v3861 = vld [vmem:[#allocation2 + $0xc0] sm:$0xff]
      %v3862 = vld [vmem:[#allocation2 + $0xc8] sm:$0xff]
      %v3863 = vld [vmem:[#allocation2 + $0xd0] sm:$0xff]
      %v3864 = vld [vmem:[#allocation2 + $0xd8] sm:$0xff]
      %v3865 = vld [vmem:[#allocation2 + $0xe0] sm:$0xff]
      %v3866 = vld [vmem:[#allocation2 + $0xe8] sm:$0xff]
      %v3867 = vld [vmem:[#allocation2 + $0xf0] sm:$0xff]
      %v3868 = vld [vmem:[#allocation2 + $0xf8] sm:$0xff]
      %v3869 = vld [vmem:[#allocation2 + $0x100] sm:$0xff]
      %v3870 = vld [vmem:[#allocation2 + $0x108] sm:$0xff]
      %v3871 = vld [vmem:[#allocation2 + $0x110] sm:$0xff]
      %v3872 = vld [vmem:[#allocation2 + $0x118] sm:$0xff]
      %v3873 = vld [vmem:[#allocation2 + $0x120] sm:$0xff]
      %v3874 = vld [vmem:[#allocation2 + $0x128] sm:$0xff]
      %v3875 = vld [vmem:[#allocation2 + $0x130] sm:$0xff]
      %v3876 = vld [vmem:[#allocation2 + $0x138] sm:$0xff]
      %v3877 = vld [vmem:[#allocation2 + $0x140] sm:$0xff]
      %v3878 = vld [vmem:[#allocation2 + $0x148] sm:$0xff]
      %v3879 = vld [vmem:[#allocation2 + $0x150] sm:$0xff]
      %v3880 = vld [vmem:[#allocation2 + $0x158] sm:$0xff]
      %v3881 = vld [vmem:[#allocation2 + $0x160] sm:$0xff]
      %v3882 = vld [vmem:[#allocation2 + $0x168] sm:$0xff]
      %v3883 = vld [vmem:[#allocation2 + $0x170] sm:$0xff]
      %v3884 = vld [vmem:[#allocation2 + $0x178] sm:$0xff]
      %v3885 = vld [vmem:[#allocation2 + $0x1] sm:$0xff]
      %v3886 = vld [vmem:[#allocation2 + $0x9] sm:$0xff]
      %v3887 = vld [vmem:[#allocation2 + $0x11] sm:$0xff]
      %v3888 = vld [vmem:[#allocation2 + $0x19] sm:$0xff]
      %v3889 = vld [vmem:[#allocation2 + $0x21] sm:$0xff]
      %v3890 = vld [vmem:[#allocation2 + $0x29] sm:$0xff]
      %v3891 = vld [vmem:[#allocation2 + $0x31] sm:$0xff]
      %v3892 = vld [vmem:[#allocation2 + $0x39] sm:$0xff]
      %v3893 = vld [vmem:[#allocation2 + $0x41] sm:$0xff]
      %v3894 = vld [vmem:[#allocation2 + $0x49] sm:$0xff]
      %v3895 = vld [vmem:[#allocation2 + $0x51] sm:$0xff]
      %v3896 = vld [vmem:[#allocation2 + $0x59] sm:$0xff]
      %v3897 = vld [vmem:[#allocation2 + $0x61] sm:$0xff]
      %v3898 = vld [vmem:[#allocation2 + $0x69] sm:$0xff]
      %v3899 = vld [vmem:[#allocation2 + $0x71] sm:$0xff]
      %v3900 = vld [vmem:[#allocation2 + $0x79] sm:$0xff]
      %v3901 = vld [vmem:[#allocation2 + $0x81] sm:$0xff]
      %v3902 = vld [vmem:[#allocation2 + $0x89] sm:$0xff]
      %v3903 = vld [vmem:[#allocation2 + $0x91] sm:$0xff]
      %v3904 = vld [vmem:[#allocation2 + $0x99] sm:$0xff]
      %v3905 = vld [vmem:[#allocation2 + $0xa1] sm:$0xff]
      %v3906 = vld [vmem:[#allocation2 + $0xa9] sm:$0xff]
      %v3907 = vld [vmem:[#allocation2 + $0xb1] sm:$0xff]
      %v3908 = vld [vmem:[#allocation2 + $0xb9] sm:$0xff]
      %v3909 = vld [vmem:[#allocation2 + $0xc1] sm:$0xff]
      %v3910 = vld [vmem:[#allocation2 + $0xc9] sm:$0xff]
      %v3911 = vld [vmem:[#allocation2 + $0xd1] sm:$0xff]
      %v3912 = vld [vmem:[#allocation2 + $0xd9] sm:$0xff]
      %v3913 = vld [vmem:[#allocation2 + $0xe1] sm:$0xff]
      %v3914 = vld [vmem:[#allocation2 + $0xe9] sm:$0xff]
      %v3915 = vld [vmem:[#allocation2 + $0xf1] sm:$0xff]
      %v3916 = vld [vmem:[#allocation2 + $0xf9] sm:$0xff]
      %v3917 = vld [vmem:[#allocation2 + $0x101] sm:$0xff]
      %v3918 = vld [vmem:[#allocation2 + $0x109] sm:$0xff]
      %v3919 = vld [vmem:[#allocation2 + $0x111] sm:$0xff]
      %v3920 = vld [vmem:[#allocation2 + $0x119] sm:$0xff]
      %v3921 = vld [vmem:[#allocation2 + $0x121] sm:$0xff]
      %v3922 = vld [vmem:[#allocation2 + $0x129] sm:$0xff]
      %v3923 = vld [vmem:[#allocation2 + $0x131] sm:$0xff]
      %v3924 = vld [vmem:[#allocation2 + $0x139] sm:$0xff]
      %v3925 = vld [vmem:[#allocation2 + $0x141] sm:$0xff]
      %v3926 = vld [vmem:[#allocation2 + $0x149] sm:$0xff]
      %v3927 = vld [vmem:[#allocation2 + $0x151] sm:$0xff]
      %v3928 = vld [vmem:[#allocation2 + $0x159] sm:$0xff]
      %v3929 = vld [vmem:[#allocation2 + $0x161] sm:$0xff]
      %v3930 = vld [vmem:[#allocation2 + $0x169] sm:$0xff]
      %v3931 = vld [vmem:[#allocation2 + $0x171] sm:$0xff]
      %v3932 = vld [vmem:[#allocation2 + $0x179] sm:$0xff]
      %v3933 = vld [vmem:[#allocation2 + $0x2] sm:$0xff]
      %v3934 = vld [vmem:[#allocation2 + $0xa] sm:$0xff]
      %v3935 = vld [vmem:[#allocation2 + $0x12] sm:$0xff]
      %v3936 = vld [vmem:[#allocation2 + $0x1a] sm:$0xff]
      %v3937 = vld [vmem:[#allocation2 + $0x22] sm:$0xff]
      %v3938 = vld [vmem:[#allocation2 + $0x2a] sm:$0xff]
      %v3939 = vld [vmem:[#allocation2 + $0x32] sm:$0xff]
      %v3940 = vld [vmem:[#allocation2 + $0x3a] sm:$0xff]
      %v3941 = vld [vmem:[#allocation2 + $0x42] sm:$0xff]
      %v3942 = vld [vmem:[#allocation2 + $0x4a] sm:$0xff]
      %v3943 = vld [vmem:[#allocation2 + $0x52] sm:$0xff]
      %v3944 = vld [vmem:[#allocation2 + $0x5a] sm:$0xff]
      %v3945 = vld [vmem:[#allocation2 + $0x62] sm:$0xff]
      %v3946 = vld [vmem:[#allocation2 + $0x6a] sm:$0xff]
      %v3947 = vld [vmem:[#allocation2 + $0x72] sm:$0xff]
      %v3948 = vld [vmem:[#allocation2 + $0x7a] sm:$0xff]
      %v3949 = vld [vmem:[#allocation2 + $0x82] sm:$0xff]
      %v3950 = vld [vmem:[#allocation2 + $0x8a] sm:$0xff]
      %v3951 = vld [vmem:[#allocation2 + $0x92] sm:$0xff]
      %v3952 = vld [vmem:[#allocation2 + $0x9a] sm:$0xff]
      %v3953 = vld [vmem:[#allocation2 + $0xa2] sm:$0xff]
      %v3954 = vld [vmem:[#allocation2 + $0xaa] sm:$0xff]
      %v3955 = vld [vmem:[#allocation2 + $0xb2] sm:$0xff]
      %v3956 = vld [vmem:[#allocation2 + $0xba] sm:$0xff]
      %v3957 = vld [vmem:[#allocation2 + $0xc2] sm:$0xff]
      %v3958 = vld [vmem:[#allocation2 + $0xca] sm:$0xff]
      %v3959 = vld [vmem:[#allocation2 + $0xd2] sm:$0xff]
      %v3960 = vld [vmem:[#allocation2 + $0xda] sm:$0xff]
      %v3961 = vld [vmem:[#allocation2 + $0xe2] sm:$0xff]
      %v3962 = vld [vmem:[#allocation2 + $0xea] sm:$0xff]
      %v3963 = vld [vmem:[#allocation2 + $0xf2] sm:$0xff]
      %v3964 = vld [vmem:[#allocation2 + $0xfa] sm:$0xff]
      %v3965 = vld [vmem:[#allocation2 + $0x102] sm:$0xff]
      %v3966 = vld [vmem:[#allocation2 + $0x10a] sm:$0xff]
      %v3967 = vld [vmem:[#allocation2 + $0x112] sm:$0xff]
      %v3968 = vld [vmem:[#allocation2 + $0x11a] sm:$0xff]
      %v3969 = vld [vmem:[#allocation2 + $0x122] sm:$0xff]
      %v3970 = vld [vmem:[#allocation2 + $0x12a] sm:$0xff]
      %v3971 = vld [vmem:[#allocation2 + $0x132] sm:$0xff]
      %v3972 = vld [vmem:[#allocation2 + $0x13a] sm:$0xff]
      %v3973 = vld [vmem:[#allocation2 + $0x142] sm:$0xff]
      %v3974 = vld [vmem:[#allocation2 + $0x14a] sm:$0xff]
      %v3975 = vld [vmem:[#allocation2 + $0x152] sm:$0xff]
      %v3976 = vld [vmem:[#allocation2 + $0x15a] sm:$0xff]
      %v3977 = vld [vmem:[#allocation2 + $0x162] sm:$0xff]
      %v3978 = vld [vmem:[#allocation2 + $0x16a] sm:$0xff]
      %v3979 = vld [vmem:[#allocation2 + $0x172] sm:$0xff]
      %v3980 = vld [vmem:[#allocation2 + $0x17a] sm:$0xff]
      %v3981 = vld [vmem:[#allocation2 + $0x180] sm:$0xff]
      %v3982 = vld [vmem:[#allocation2 + $0x188] sm:$0xff]
      %v3983 = vld [vmem:[#allocation2 + $0x190] sm:$0xff]
      %v3984 = vld [vmem:[#allocation2 + $0x181] sm:$0xff]
      %v3985 = vld [vmem:[#allocation2 + $0x189] sm:$0xff]
      %v3986 = vld [vmem:[#allocation2 + $0x191] sm:$0xff]
      %v3987 = vld [vmem:[#allocation2 + $0x182] sm:$0xff]
      %v3988 = vld [vmem:[#allocation2 + $0x18a] sm:$0xff]
      %v3989 = vld [vmem:[#allocation2 + $0x192] sm:$0xff]
      %v3990 = vld [vmem:[#allocation2 + $0x198] sm:$0xff]
      %v3991 = vld [vmem:[#allocation2 + $0x1a0] sm:$0xff]
      %v3992 = vld [vmem:[#allocation2 + $0x1a8] sm:$0xff]
      %v3993 = vld [vmem:[#allocation2 + $0x199] sm:$0xff]
      %v3994 = vld [vmem:[#allocation2 + $0x1a1] sm:$0xff]
      %v3995 = vld [vmem:[#allocation2 + $0x1a9] sm:$0xff]
      %v3996 = vld [vmem:[#allocation2 + $0x19a] sm:$0xff]
      %v3997 = vld [vmem:[#allocation2 + $0x1a2] sm:$0xff]
      %v3998 = vld [vmem:[#allocation2 + $0x1aa] sm:$0xff]
      %4047 = vrot.lane.b32.xlu0 %v3885, 16
      %v4048 = vpop.permute.xlu0 %4047
      %4049 = vrot.lane.b32.xlu0 %v3886, 16
      %v4050 = vpop.permute.xlu0 %4049
      %4051 = vrot.lane.b32.xlu0 %v3887, 16
      %v4052 = vpop.permute.xlu0 %4051
      %4053 = vrot.lane.b32.xlu0 %v3888, 16
      %v4054 = vpop.permute.xlu0 %4053
      %4055 = vrot.lane.b32.xlu0 %v3889, 16
      %v4056 = vpop.permute.xlu0 %4055
      %4057 = vrot.lane.b32.xlu0 %v3890, 16
      %v4058 = vpop.permute.xlu0 %4057
      %4059 = vrot.lane.b32.xlu0 %v3891, 16
      %v4060 = vpop.permute.xlu0 %4059
      %4061 = vrot.lane.b32.xlu0 %v3892, 16
      %v4062 = vpop.permute.xlu0 %4061
      %4063 = vrot.lane.b32.xlu0 %v3893, 16
      %v4064 = vpop.permute.xlu0 %4063
      %4065 = vrot.lane.b32.xlu0 %v3894, 16
      %v4066 = vpop.permute.xlu0 %4065
      %4067 = vrot.lane.b32.xlu0 %v3895, 16
      %v4068 = vpop.permute.xlu0 %4067
      %4069 = vrot.lane.b32.xlu0 %v3896, 16
      %v4070 = vpop.permute.xlu0 %4069
      %4071 = vrot.lane.b32.xlu0 %v3897, 16
      %v4072 = vpop.permute.xlu0 %4071
      %4073 = vrot.lane.b32.xlu0 %v3898, 16
      %v4074 = vpop.permute.xlu0 %4073
      %4075 = vrot.lane.b32.xlu0 %v3899, 16
      %v4076 = vpop.permute.xlu0 %4075
      %4077 = vrot.lane.b32.xlu0 %v3900, 16
      %v4078 = vpop.permute.xlu0 %4077
      %4079 = vrot.lane.b32.xlu0 %v3901, 16
      %v4080 = vpop.permute.xlu0 %4079
      %4081 = vrot.lane.b32.xlu0 %v3902, 16
      %v4082 = vpop.permute.xlu0 %4081
      %4083 = vrot.lane.b32.xlu0 %v3903, 16
      %v4084 = vpop.permute.xlu0 %4083
      %4085 = vrot.lane.b32.xlu0 %v3904, 16
      %v4086 = vpop.permute.xlu0 %4085
      %4087 = vrot.lane.b32.xlu0 %v3905, 16
      %v4088 = vpop.permute.xlu0 %4087
      %4089 = vrot.lane.b32.xlu0 %v3906, 16
      %v4090 = vpop.permute.xlu0 %4089
      %4091 = vrot.lane.b32.xlu0 %v3907, 16
      %v4092 = vpop.permute.xlu0 %4091
      %4093 = vrot.lane.b32.xlu0 %v3908, 16
      %v4094 = vpop.permute.xlu0 %4093
      %4095 = vrot.lane.b32.xlu0 %v3909, 16
      %v4096 = vpop.permute.xlu0 %4095
      %4097 = vrot.lane.b32.xlu0 %v3910, 16
      %v4098 = vpop.permute.xlu0 %4097
      %4099 = vrot.lane.b32.xlu0 %v3911, 16
      %v4100 = vpop.permute.xlu0 %4099
      %4101 = vrot.lane.b32.xlu0 %v3912, 16
      %v4102 = vpop.permute.xlu0 %4101
      %4103 = vrot.lane.b32.xlu0 %v3913, 16
      %v4104 = vpop.permute.xlu0 %4103
      %4105 = vrot.lane.b32.xlu0 %v3914, 16
      %v4106 = vpop.permute.xlu0 %4105
      %4107 = vrot.lane.b32.xlu0 %v3915, 16
      %v4108 = vpop.permute.xlu0 %4107
      %4109 = vrot.lane.b32.xlu0 %v3916, 16
      %v4110 = vpop.permute.xlu0 %4109
      %4111 = vrot.lane.b32.xlu0 %v3917, 16
      %v4112 = vpop.permute.xlu0 %4111
      %4113 = vrot.lane.b32.xlu0 %v3918, 16
      %v4114 = vpop.permute.xlu0 %4113
      %4115 = vrot.lane.b32.xlu0 %v3919, 16
      %v4116 = vpop.permute.xlu0 %4115
      %4117 = vrot.lane.b32.xlu0 %v3920, 16
      %v4118 = vpop.permute.xlu0 %4117
      %4119 = vrot.lane.b32.xlu0 %v3921, 16
      %v4120 = vpop.permute.xlu0 %4119
      %4121 = vrot.lane.b32.xlu0 %v3922, 16
      %v4122 = vpop.permute.xlu0 %4121
      %4123 = vrot.lane.b32.xlu0 %v3923, 16
      %v4124 = vpop.permute.xlu0 %4123
      %4125 = vrot.lane.b32.xlu0 %v3924, 16
      %v4126 = vpop.permute.xlu0 %4125
      %4127 = vrot.lane.b32.xlu0 %v3925, 16
      %v4128 = vpop.permute.xlu0 %4127
      %4129 = vrot.lane.b32.xlu0 %v3926, 16
      %v4130 = vpop.permute.xlu0 %4129
      %4131 = vrot.lane.b32.xlu0 %v3927, 16
      %v4132 = vpop.permute.xlu0 %4131
      %4133 = vrot.lane.b32.xlu0 %v3928, 16
      %v4134 = vpop.permute.xlu0 %4133
      %4135 = vrot.lane.b32.xlu0 %v3929, 16
      %v4136 = vpop.permute.xlu0 %4135
      %4137 = vrot.lane.b32.xlu0 %v3930, 16
      %v4138 = vpop.permute.xlu0 %4137
      %4139 = vrot.lane.b32.xlu0 %v3931, 16
      %v4140 = vpop.permute.xlu0 %4139
      %4141 = vrot.lane.b32.xlu0 %v3932, 16
      %v4142 = vpop.permute.xlu0 %4141
      %4239 = vrot.lane.b32.xlu0 %v3933, 32
      %v4240 = vpop.permute.xlu0 %4239
      %4241 = vrot.lane.b32.xlu0 %v3934, 32
      %v4242 = vpop.permute.xlu0 %4241
      %4243 = vrot.lane.b32.xlu0 %v3935, 32
      %v4244 = vpop.permute.xlu0 %4243
      %4245 = vrot.lane.b32.xlu0 %v3936, 32
      %v4246 = vpop.permute.xlu0 %4245
      %4247 = vrot.lane.b32.xlu0 %v3937, 32
      %v4248 = vpop.permute.xlu0 %4247
      %4249 = vrot.lane.b32.xlu0 %v3938, 32
      %v4250 = vpop.permute.xlu0 %4249
      %4251 = vrot.lane.b32.xlu0 %v3939, 32
      %v4252 = vpop.permute.xlu0 %4251
      %4253 = vrot.lane.b32.xlu0 %v3940, 32
      %v4254 = vpop.permute.xlu0 %4253
      %4255 = vrot.lane.b32.xlu0 %v3941, 32
      %v4256 = vpop.permute.xlu0 %4255
      %4257 = vrot.lane.b32.xlu0 %v3942, 32
      %v4258 = vpop.permute.xlu0 %4257
      %4259 = vrot.lane.b32.xlu0 %v3943, 32
      %v4260 = vpop.permute.xlu0 %4259
      %4261 = vrot.lane.b32.xlu0 %v3944, 32
      %v4262 = vpop.permute.xlu0 %4261
      %4263 = vrot.lane.b32.xlu0 %v3945, 32
      %v4264 = vpop.permute.xlu0 %4263
      %4265 = vrot.lane.b32.xlu0 %v3946, 32
      %v4266 = vpop.permute.xlu0 %4265
      %4267 = vrot.lane.b32.xlu0 %v3947, 32
      %v4268 = vpop.permute.xlu0 %4267
      %4269 = vrot.lane.b32.xlu0 %v3948, 32
      %v4270 = vpop.permute.xlu0 %4269
      %4271 = vrot.lane.b32.xlu0 %v3949, 32
      %v4272 = vpop.permute.xlu0 %4271
      %4273 = vrot.lane.b32.xlu0 %v3950, 32
      %v4274 = vpop.permute.xlu0 %4273
      %4275 = vrot.lane.b32.xlu0 %v3951, 32
      %v4276 = vpop.permute.xlu0 %4275
      %4277 = vrot.lane.b32.xlu0 %v3952, 32
      %v4278 = vpop.permute.xlu0 %4277
      %4279 = vrot.lane.b32.xlu0 %v3953, 32
      %v4280 = vpop.permute.xlu0 %4279
      %4281 = vrot.lane.b32.xlu0 %v3954, 32
      %v4282 = vpop.permute.xlu0 %4281
      %4283 = vrot.lane.b32.xlu0 %v3955, 32
      %v4284 = vpop.permute.xlu0 %4283
      %4285 = vrot.lane.b32.xlu0 %v3956, 32
      %v4286 = vpop.permute.xlu0 %4285
      %4287 = vrot.lane.b32.xlu0 %v3957, 32
      %v4288 = vpop.permute.xlu0 %4287
      %4289 = vrot.lane.b32.xlu0 %v3958, 32
      %v4290 = vpop.permute.xlu0 %4289
      %4291 = vrot.lane.b32.xlu0 %v3959, 32
      %v4292 = vpop.permute.xlu0 %4291
      %4293 = vrot.lane.b32.xlu0 %v3960, 32
      %v4294 = vpop.permute.xlu0 %4293
      %4295 = vrot.lane.b32.xlu0 %v3961, 32
      %v4296 = vpop.permute.xlu0 %4295
      %4297 = vrot.lane.b32.xlu0 %v3962, 32
      %v4298 = vpop.permute.xlu0 %4297
      %4299 = vrot.lane.b32.xlu0 %v3963, 32
      %v4300 = vpop.permute.xlu0 %4299
      %4301 = vrot.lane.b32.xlu0 %v3964, 32
      %v4302 = vpop.permute.xlu0 %4301
      %4303 = vrot.lane.b32.xlu0 %v3965, 32
      %v4304 = vpop.permute.xlu0 %4303
      %4305 = vrot.lane.b32.xlu0 %v3966, 32
      %v4306 = vpop.permute.xlu0 %4305
      %4307 = vrot.lane.b32.xlu0 %v3967, 32
      %v4308 = vpop.permute.xlu0 %4307
      %4309 = vrot.lane.b32.xlu0 %v3968, 32
      %v4310 = vpop.permute.xlu0 %4309
      %4311 = vrot.lane.b32.xlu0 %v3969, 32
      %v4312 = vpop.permute.xlu0 %4311
      %4313 = vrot.lane.b32.xlu0 %v3970, 32
      %v4314 = vpop.permute.xlu0 %4313
      %4315 = vrot.lane.b32.xlu0 %v3971, 32
      %v4316 = vpop.permute.xlu0 %4315
      %4317 = vrot.lane.b32.xlu0 %v3972, 32
      %v4318 = vpop.permute.xlu0 %4317
      %4319 = vrot.lane.b32.xlu0 %v3973, 32
      %v4320 = vpop.permute.xlu0 %4319
      %4321 = vrot.lane.b32.xlu0 %v3974, 32
      %v4322 = vpop.permute.xlu0 %4321
      %4323 = vrot.lane.b32.xlu0 %v3975, 32
      %v4324 = vpop.permute.xlu0 %4323
      %4325 = vrot.lane.b32.xlu0 %v3976, 32
      %v4326 = vpop.permute.xlu0 %4325
      %4327 = vrot.lane.b32.xlu0 %v3977, 32
      %v4328 = vpop.permute.xlu0 %4327
      %4329 = vrot.lane.b32.xlu0 %v3978, 32
      %v4330 = vpop.permute.xlu0 %4329
      %4331 = vrot.lane.b32.xlu0 %v3979, 32
      %v4332 = vpop.permute.xlu0 %4331
      %4333 = vrot.lane.b32.xlu0 %v3980, 32
      %v4334 = vpop.permute.xlu0 %4333
      %4431 = vrot.lane.b32.xlu0 %v3840, 48
      %v4432 = vpop.permute.xlu0 %4431
      %4433 = vrot.lane.b32.xlu0 %v3841, 48
      %v4434 = vpop.permute.xlu0 %4433
      %4435 = vrot.lane.b32.xlu0 %v3842, 48
      %v4436 = vpop.permute.xlu0 %4435
      %4437 = vrot.lane.b32.xlu0 %v3843, 48
      %v4438 = vpop.permute.xlu0 %4437
      %4439 = vrot.lane.b32.xlu0 %v3844, 48
      %v4440 = vpop.permute.xlu0 %4439
      %4441 = vrot.lane.b32.xlu0 %v3845, 48
      %v4442 = vpop.permute.xlu0 %4441
      %4443 = vrot.lane.b32.xlu0 %v3846, 48
      %v4444 = vpop.permute.xlu0 %4443
      %4445 = vrot.lane.b32.xlu0 %v3847, 48
      %v4446 = vpop.permute.xlu0 %4445
      %4447 = vrot.lane.b32.xlu0 %v3848, 48
      %v4448 = vpop.permute.xlu0 %4447
      %4449 = vrot.lane.b32.xlu0 %v3849, 48
      %v4450 = vpop.permute.xlu0 %4449
      %4451 = vrot.lane.b32.xlu0 %v3850, 48
      %v4452 = vpop.permute.xlu0 %4451
      %4453 = vrot.lane.b32.xlu0 %v3851, 48
      %v4454 = vpop.permute.xlu0 %4453
      %4455 = vrot.lane.b32.xlu0 %v3852, 48
      %v4456 = vpop.permute.xlu0 %4455
      %4457 = vrot.lane.b32.xlu0 %v3853, 48
      %v4458 = vpop.permute.xlu0 %4457
      %4459 = vrot.lane.b32.xlu0 %v3854, 48
      %v4460 = vpop.permute.xlu0 %4459
      %4461 = vrot.lane.b32.xlu0 %v3855, 48
      %v4462 = vpop.permute.xlu0 %4461
      %4463 = vrot.lane.b32.xlu0 %v3856, 48
      %v4464 = vpop.permute.xlu0 %4463
      %4465 = vrot.lane.b32.xlu0 %v3857, 48
      %v4466 = vpop.permute.xlu0 %4465
      %4467 = vrot.lane.b32.xlu0 %v3858, 48
      %v4468 = vpop.permute.xlu0 %4467
      %4469 = vrot.lane.b32.xlu0 %v3859, 48
      %v4470 = vpop.permute.xlu0 %4469
      %4471 = vrot.lane.b32.xlu0 %v3860, 48
      %v4472 = vpop.permute.xlu0 %4471
      %4473 = vrot.lane.b32.xlu0 %v3861, 48
      %v4474 = vpop.permute.xlu0 %4473
      %4475 = vrot.lane.b32.xlu0 %v3862, 48
      %v4476 = vpop.permute.xlu0 %4475
      %4477 = vrot.lane.b32.xlu0 %v3863, 48
      %v4478 = vpop.permute.xlu0 %4477
      %4479 = vrot.lane.b32.xlu0 %v3864, 48
      %v4480 = vpop.permute.xlu0 %4479
      %4481 = vrot.lane.b32.xlu0 %v3865, 48
      %v4482 = vpop.permute.xlu0 %4481
      %4483 = vrot.lane.b32.xlu0 %v3866, 48
      %v4484 = vpop.permute.xlu0 %4483
      %4485 = vrot.lane.b32.xlu0 %v3867, 48
      %v4486 = vpop.permute.xlu0 %4485
      %4487 = vrot.lane.b32.xlu0 %v3868, 48
      %v4488 = vpop.permute.xlu0 %4487
      %4489 = vrot.lane.b32.xlu0 %v3869, 48
      %v4490 = vpop.permute.xlu0 %4489
      %4491 = vrot.lane.b32.xlu0 %v3870, 48
      %v4492 = vpop.permute.xlu0 %4491
      %4493 = vrot.lane.b32.xlu0 %v3871, 48
      %v4494 = vpop.permute.xlu0 %4493
      %4495 = vrot.lane.b32.xlu0 %v3872, 48
      %v4496 = vpop.permute.xlu0 %4495
      %4497 = vrot.lane.b32.xlu0 %v3873, 48
      %v4498 = vpop.permute.xlu0 %4497
      %4499 = vrot.lane.b32.xlu0 %v3874, 48
      %v4500 = vpop.permute.xlu0 %4499
      %4501 = vrot.lane.b32.xlu0 %v3875, 48
      %v4502 = vpop.permute.xlu0 %4501
      %4503 = vrot.lane.b32.xlu0 %v3876, 48
      %v4504 = vpop.permute.xlu0 %4503
      %4505 = vrot.lane.b32.xlu0 %v3877, 48
      %v4506 = vpop.permute.xlu0 %4505
      %4507 = vrot.lane.b32.xlu0 %v3878, 48
      %v4508 = vpop.permute.xlu0 %4507
      %4509 = vrot.lane.b32.xlu0 %v3879, 48
      %v4510 = vpop.permute.xlu0 %4509
      %4511 = vrot.lane.b32.xlu0 %v3880, 48
      %v4512 = vpop.permute.xlu0 %4511
      %4513 = vrot.lane.b32.xlu0 %v3881, 48
      %v4514 = vpop.permute.xlu0 %4513
      %4515 = vrot.lane.b32.xlu0 %v3882, 48
      %v4516 = vpop.permute.xlu0 %4515
      %4517 = vrot.lane.b32.xlu0 %v3883, 48
      %v4518 = vpop.permute.xlu0 %4517
      %4519 = vrot.lane.b32.xlu0 %v3884, 48
      %v4520 = vpop.permute.xlu0 %4519
      %4521 = vrot.lane.b32.xlu0 %v3981, 48
      %v4522 = vpop.permute.xlu0 %4521
      %4523 = vrot.lane.b32.xlu0 %v3982, 48
      %v4524 = vpop.permute.xlu0 %4523
      %4525 = vrot.lane.b32.xlu0 %v3983, 48
      %v4526 = vpop.permute.xlu0 %4525
      %4578 = vrot.lane.b32.xlu0 %v3888, 64
      %v4579 = vpop.permute.xlu0 %4578
      %4580 = vrot.lane.b32.xlu0 %v3889, 64
      %v4581 = vpop.permute.xlu0 %4580
      %4582 = vrot.lane.b32.xlu0 %v3890, 64
      %v4583 = vpop.permute.xlu0 %4582
      %4584 = vrot.lane.b32.xlu0 %v3891, 64
      %v4585 = vpop.permute.xlu0 %4584
      %4586 = vrot.lane.b32.xlu0 %v3892, 64
      %v4587 = vpop.permute.xlu0 %4586
      %4588 = vrot.lane.b32.xlu0 %v3893, 64
      %v4589 = vpop.permute.xlu0 %4588
      %4590 = vrot.lane.b32.xlu0 %v3894, 64
      %v4591 = vpop.permute.xlu0 %4590
      %4592 = vrot.lane.b32.xlu0 %v3895, 64
      %v4593 = vpop.permute.xlu0 %4592
      %4594 = vrot.lane.b32.xlu0 %v3896, 64
      %v4595 = vpop.permute.xlu0 %4594
      %4596 = vrot.lane.b32.xlu0 %v3897, 64
      %v4597 = vpop.permute.xlu0 %4596
      %4598 = vrot.lane.b32.xlu0 %v3898, 64
      %v4599 = vpop.permute.xlu0 %4598
      %4600 = vrot.lane.b32.xlu0 %v3899, 64
      %v4601 = vpop.permute.xlu0 %4600
      %4602 = vrot.lane.b32.xlu0 %v3900, 64
      %v4603 = vpop.permute.xlu0 %4602
      %4604 = vrot.lane.b32.xlu0 %v3901, 64
      %v4605 = vpop.permute.xlu0 %4604
      %4606 = vrot.lane.b32.xlu0 %v3902, 64
      %v4607 = vpop.permute.xlu0 %4606
      %4608 = vrot.lane.b32.xlu0 %v3903, 64
      %v4609 = vpop.permute.xlu0 %4608
      %4610 = vrot.lane.b32.xlu0 %v3904, 64
      %v4611 = vpop.permute.xlu0 %4610
      %4612 = vrot.lane.b32.xlu0 %v3905, 64
      %v4613 = vpop.permute.xlu0 %4612
      %4614 = vrot.lane.b32.xlu0 %v3906, 64
      %v4615 = vpop.permute.xlu0 %4614
      %4616 = vrot.lane.b32.xlu0 %v3907, 64
      %v4617 = vpop.permute.xlu0 %4616
      %4618 = vrot.lane.b32.xlu0 %v3908, 64
      %v4619 = vpop.permute.xlu0 %4618
      %4620 = vrot.lane.b32.xlu0 %v3909, 64
      %v4621 = vpop.permute.xlu0 %4620
      %4622 = vrot.lane.b32.xlu0 %v3910, 64
      %v4623 = vpop.permute.xlu0 %4622
      %4624 = vrot.lane.b32.xlu0 %v3911, 64
      %v4625 = vpop.permute.xlu0 %4624
      %4626 = vrot.lane.b32.xlu0 %v3912, 64
      %v4627 = vpop.permute.xlu0 %4626
      %4628 = vrot.lane.b32.xlu0 %v3913, 64
      %v4629 = vpop.permute.xlu0 %4628
      %4630 = vrot.lane.b32.xlu0 %v3914, 64
      %v4631 = vpop.permute.xlu0 %4630
      %4632 = vrot.lane.b32.xlu0 %v3915, 64
      %v4633 = vpop.permute.xlu0 %4632
      %4634 = vrot.lane.b32.xlu0 %v3916, 64
      %v4635 = vpop.permute.xlu0 %4634
      %4636 = vrot.lane.b32.xlu0 %v3917, 64
      %v4637 = vpop.permute.xlu0 %4636
      %4638 = vrot.lane.b32.xlu0 %v3918, 64
      %v4639 = vpop.permute.xlu0 %4638
      %4640 = vrot.lane.b32.xlu0 %v3919, 64
      %v4641 = vpop.permute.xlu0 %4640
      %4642 = vrot.lane.b32.xlu0 %v3920, 64
      %v4643 = vpop.permute.xlu0 %4642
      %4644 = vrot.lane.b32.xlu0 %v3921, 64
      %v4645 = vpop.permute.xlu0 %4644
      %4646 = vrot.lane.b32.xlu0 %v3922, 64
      %v4647 = vpop.permute.xlu0 %4646
      %4648 = vrot.lane.b32.xlu0 %v3923, 64
      %v4649 = vpop.permute.xlu0 %4648
      %4650 = vrot.lane.b32.xlu0 %v3924, 64
      %v4651 = vpop.permute.xlu0 %4650
      %4652 = vrot.lane.b32.xlu0 %v3925, 64
      %v4653 = vpop.permute.xlu0 %4652
      %4654 = vrot.lane.b32.xlu0 %v3926, 64
      %v4655 = vpop.permute.xlu0 %4654
      %4656 = vrot.lane.b32.xlu0 %v3927, 64
      %v4657 = vpop.permute.xlu0 %4656
      %4658 = vrot.lane.b32.xlu0 %v3928, 64
      %v4659 = vpop.permute.xlu0 %4658
      %4660 = vrot.lane.b32.xlu0 %v3929, 64
      %v4661 = vpop.permute.xlu0 %4660
      %4662 = vrot.lane.b32.xlu0 %v3930, 64
      %v4663 = vpop.permute.xlu0 %4662
      %4664 = vrot.lane.b32.xlu0 %v3931, 64
      %v4665 = vpop.permute.xlu0 %4664
      %4666 = vrot.lane.b32.xlu0 %v3932, 64
      %v4667 = vpop.permute.xlu0 %4666
      %4668 = vrot.lane.b32.xlu0 %v3984, 64
      %v4669 = vpop.permute.xlu0 %4668
      %4670 = vrot.lane.b32.xlu0 %v3985, 64
      %v4671 = vpop.permute.xlu0 %4670
      %4672 = vrot.lane.b32.xlu0 %v3986, 64
      %v4673 = vpop.permute.xlu0 %4672
      %4725 = vrot.lane.b32.xlu0 %v3936, 80
      %v4726 = vpop.permute.xlu0 %4725
      %4727 = vrot.lane.b32.xlu0 %v3937, 80
      %v4728 = vpop.permute.xlu0 %4727
      %4729 = vrot.lane.b32.xlu0 %v3938, 80
      %v4730 = vpop.permute.xlu0 %4729
      %4731 = vrot.lane.b32.xlu0 %v3939, 80
      %v4732 = vpop.permute.xlu0 %4731
      %4733 = vrot.lane.b32.xlu0 %v3940, 80
      %v4734 = vpop.permute.xlu0 %4733
      %4735 = vrot.lane.b32.xlu0 %v3941, 80
      %v4736 = vpop.permute.xlu0 %4735
      %4737 = vrot.lane.b32.xlu0 %v3942, 80
      %v4738 = vpop.permute.xlu0 %4737
      %4739 = vrot.lane.b32.xlu0 %v3943, 80
      %v4740 = vpop.permute.xlu0 %4739
      %4741 = vrot.lane.b32.xlu0 %v3944, 80
      %v4742 = vpop.permute.xlu0 %4741
      %4743 = vrot.lane.b32.xlu0 %v3945, 80
      %v4744 = vpop.permute.xlu0 %4743
      %4745 = vrot.lane.b32.xlu0 %v3946, 80
      %v4746 = vpop.permute.xlu0 %4745
      %4747 = vrot.lane.b32.xlu0 %v3947, 80
      %v4748 = vpop.permute.xlu0 %4747
      %4749 = vrot.lane.b32.xlu0 %v3948, 80
      %v4750 = vpop.permute.xlu0 %4749
      %4751 = vrot.lane.b32.xlu0 %v3949, 80
      %v4752 = vpop.permute.xlu0 %4751
      %4753 = vrot.lane.b32.xlu0 %v3950, 80
      %v4754 = vpop.permute.xlu0 %4753
      %4755 = vrot.lane.b32.xlu0 %v3951, 80
      %v4756 = vpop.permute.xlu0 %4755
      %4757 = vrot.lane.b32.xlu0 %v3952, 80
      %v4758 = vpop.permute.xlu0 %4757
      %4759 = vrot.lane.b32.xlu0 %v3953, 80
      %v4760 = vpop.permute.xlu0 %4759
      %4761 = vrot.lane.b32.xlu0 %v3954, 80
      %v4762 = vpop.permute.xlu0 %4761
      %4763 = vrot.lane.b32.xlu0 %v3955, 80
      %v4764 = vpop.permute.xlu0 %4763
      %4765 = vrot.lane.b32.xlu0 %v3956, 80
      %v4766 = vpop.permute.xlu0 %4765
      %4767 = vrot.lane.b32.xlu0 %v3957, 80
      %v4768 = vpop.permute.xlu0 %4767
      %4769 = vrot.lane.b32.xlu0 %v3958, 80
      %v4770 = vpop.permute.xlu0 %4769
      %4771 = vrot.lane.b32.xlu0 %v3959, 80
      %v4772 = vpop.permute.xlu0 %4771
      %4773 = vrot.lane.b32.xlu0 %v3960, 80
      %v4774 = vpop.permute.xlu0 %4773
      %4775 = vrot.lane.b32.xlu0 %v3961, 80
      %v4776 = vpop.permute.xlu0 %4775
      %4777 = vrot.lane.b32.xlu0 %v3962, 80
      %v4778 = vpop.permute.xlu0 %4777
      %4779 = vrot.lane.b32.xlu0 %v3963, 80
      %v4780 = vpop.permute.xlu0 %4779
      %4781 = vrot.lane.b32.xlu0 %v3964, 80
      %v4782 = vpop.permute.xlu0 %4781
      %4783 = vrot.lane.b32.xlu0 %v3965, 80
      %v4784 = vpop.permute.xlu0 %4783
      %4785 = vrot.lane.b32.xlu0 %v3966, 80
      %v4786 = vpop.permute.xlu0 %4785
      %4787 = vrot.lane.b32.xlu0 %v3967, 80
      %v4788 = vpop.permute.xlu0 %4787
      %4789 = vrot.lane.b32.xlu0 %v3968, 80
      %v4790 = vpop.permute.xlu0 %4789
      %4791 = vrot.lane.b32.xlu0 %v3969, 80
      %v4792 = vpop.permute.xlu0 %4791
      %4793 = vrot.lane.b32.xlu0 %v3970, 80
      %v4794 = vpop.permute.xlu0 %4793
      %4795 = vrot.lane.b32.xlu0 %v3971, 80
      %v4796 = vpop.permute.xlu0 %4795
      %4797 = vrot.lane.b32.xlu0 %v3972, 80
      %v4798 = vpop.permute.xlu0 %4797
      %4799 = vrot.lane.b32.xlu0 %v3973, 80
      %v4800 = vpop.permute.xlu0 %4799
      %4801 = vrot.lane.b32.xlu0 %v3974, 80
      %v4802 = vpop.permute.xlu0 %4801
      %4803 = vrot.lane.b32.xlu0 %v3975, 80
      %v4804 = vpop.permute.xlu0 %4803
      %4805 = vrot.lane.b32.xlu0 %v3976, 80
      %v4806 = vpop.permute.xlu0 %4805
      %4807 = vrot.lane.b32.xlu0 %v3977, 80
      %v4808 = vpop.permute.xlu0 %4807
      %4809 = vrot.lane.b32.xlu0 %v3978, 80
      %v4810 = vpop.permute.xlu0 %4809
      %4811 = vrot.lane.b32.xlu0 %v3979, 80
      %v4812 = vpop.permute.xlu0 %4811
      %4813 = vrot.lane.b32.xlu0 %v3980, 80
      %v4814 = vpop.permute.xlu0 %4813
      %4815 = vrot.lane.b32.xlu0 %v3987, 80
      %v4816 = vpop.permute.xlu0 %4815
      %4817 = vrot.lane.b32.xlu0 %v3988, 80
      %v4818 = vpop.permute.xlu0 %4817
      %4819 = vrot.lane.b32.xlu0 %v3989, 80
      %v4820 = vpop.permute.xlu0 %4819
      %4872 = vrot.lane.b32.xlu0 %v3843, 96
      %v4873 = vpop.permute.xlu0 %4872
      %4874 = vrot.lane.b32.xlu0 %v3844, 96
      %v4875 = vpop.permute.xlu0 %4874
      %4876 = vrot.lane.b32.xlu0 %v3845, 96
      %v4877 = vpop.permute.xlu0 %4876
      %4878 = vrot.lane.b32.xlu0 %v3846, 96
      %v4879 = vpop.permute.xlu0 %4878
      %4880 = vrot.lane.b32.xlu0 %v3847, 96
      %v4881 = vpop.permute.xlu0 %4880
      %4882 = vrot.lane.b32.xlu0 %v3848, 96
      %v4883 = vpop.permute.xlu0 %4882
      %4884 = vrot.lane.b32.xlu0 %v3849, 96
      %v4885 = vpop.permute.xlu0 %4884
      %4886 = vrot.lane.b32.xlu0 %v3850, 96
      %v4887 = vpop.permute.xlu0 %4886
      %4888 = vrot.lane.b32.xlu0 %v3851, 96
      %v4889 = vpop.permute.xlu0 %4888
      %4890 = vrot.lane.b32.xlu0 %v3852, 96
      %v4891 = vpop.permute.xlu0 %4890
      %4892 = vrot.lane.b32.xlu0 %v3853, 96
      %v4893 = vpop.permute.xlu0 %4892
      %4894 = vrot.lane.b32.xlu0 %v3854, 96
      %v4895 = vpop.permute.xlu0 %4894
      %4896 = vrot.lane.b32.xlu0 %v3855, 96
      %v4897 = vpop.permute.xlu0 %4896
      %4898 = vrot.lane.b32.xlu0 %v3856, 96
      %v4899 = vpop.permute.xlu0 %4898
      %4900 = vrot.lane.b32.xlu0 %v3857, 96
      %v4901 = vpop.permute.xlu0 %4900
      %4902 = vrot.lane.b32.xlu0 %v3858, 96
      %v4903 = vpop.permute.xlu0 %4902
      %4904 = vrot.lane.b32.xlu0 %v3859, 96
      %v4905 = vpop.permute.xlu0 %4904
      %4906 = vrot.lane.b32.xlu0 %v3860, 96
      %v4907 = vpop.permute.xlu0 %4906
      %4908 = vrot.lane.b32.xlu0 %v3861, 96
      %v4909 = vpop.permute.xlu0 %4908
      %4910 = vrot.lane.b32.xlu0 %v3862, 96
      %v4911 = vpop.permute.xlu0 %4910
      %4912 = vrot.lane.b32.xlu0 %v3863, 96
      %v4913 = vpop.permute.xlu0 %4912
      %4914 = vrot.lane.b32.xlu0 %v3864, 96
      %v4915 = vpop.permute.xlu0 %4914
      %4916 = vrot.lane.b32.xlu0 %v3865, 96
      %v4917 = vpop.permute.xlu0 %4916
      %4918 = vrot.lane.b32.xlu0 %v3866, 96
      %v4919 = vpop.permute.xlu0 %4918
      %4920 = vrot.lane.b32.xlu0 %v3867, 96
      %v4921 = vpop.permute.xlu0 %4920
      %4922 = vrot.lane.b32.xlu0 %v3868, 96
      %v4923 = vpop.permute.xlu0 %4922
      %4924 = vrot.lane.b32.xlu0 %v3869, 96
      %v4925 = vpop.permute.xlu0 %4924
      %4926 = vrot.lane.b32.xlu0 %v3870, 96
      %v4927 = vpop.permute.xlu0 %4926
      %4928 = vrot.lane.b32.xlu0 %v3871, 96
      %v4929 = vpop.permute.xlu0 %4928
      %4930 = vrot.lane.b32.xlu0 %v3872, 96
      %v4931 = vpop.permute.xlu0 %4930
      %4932 = vrot.lane.b32.xlu0 %v3873, 96
      %v4933 = vpop.permute.xlu0 %4932
      %4934 = vrot.lane.b32.xlu0 %v3874, 96
      %v4935 = vpop.permute.xlu0 %4934
      %4936 = vrot.lane.b32.xlu0 %v3875, 96
      %v4937 = vpop.permute.xlu0 %4936
      %4938 = vrot.lane.b32.xlu0 %v3876, 96
      %v4939 = vpop.permute.xlu0 %4938
      %4940 = vrot.lane.b32.xlu0 %v3877, 96
      %v4941 = vpop.permute.xlu0 %4940
      %4942 = vrot.lane.b32.xlu0 %v3878, 96
      %v4943 = vpop.permute.xlu0 %4942
      %4944 = vrot.lane.b32.xlu0 %v3879, 96
      %v4945 = vpop.permute.xlu0 %4944
      %4946 = vrot.lane.b32.xlu0 %v3880, 96
      %v4947 = vpop.permute.xlu0 %4946
      %4948 = vrot.lane.b32.xlu0 %v3881, 96
      %v4949 = vpop.permute.xlu0 %4948
      %4950 = vrot.lane.b32.xlu0 %v3882, 96
      %v4951 = vpop.permute.xlu0 %4950
      %4952 = vrot.lane.b32.xlu0 %v3883, 96
      %v4953 = vpop.permute.xlu0 %4952
      %4954 = vrot.lane.b32.xlu0 %v3884, 96
      %v4955 = vpop.permute.xlu0 %4954
      %4956 = vrot.lane.b32.xlu0 %v3981, 96
      %v4957 = vpop.permute.xlu0 %4956
      %4958 = vrot.lane.b32.xlu0 %v3982, 96
      %v4959 = vpop.permute.xlu0 %4958
      %4960 = vrot.lane.b32.xlu0 %v3983, 96
      %v4961 = vpop.permute.xlu0 %4960
      %4962 = vrot.lane.b32.xlu0 %v3990, 96
      %v4963 = vpop.permute.xlu0 %4962
      %4964 = vrot.lane.b32.xlu0 %v3991, 96
      %v4965 = vpop.permute.xlu0 %4964
      %4966 = vrot.lane.b32.xlu0 %v3992, 96
      %v4967 = vpop.permute.xlu0 %4966
      %5019 = vrot.lane.b32.xlu0 %v3891, 112
      %v5020 = vpop.permute.xlu0 %5019
      %5021 = vrot.lane.b32.xlu0 %v3892, 112
      %v5022 = vpop.permute.xlu0 %5021
      %5023 = vrot.lane.b32.xlu0 %v3893, 112
      %v5024 = vpop.permute.xlu0 %5023
      %5025 = vrot.lane.b32.xlu0 %v3894, 112
      %v5026 = vpop.permute.xlu0 %5025
      %5027 = vrot.lane.b32.xlu0 %v3895, 112
      %v5028 = vpop.permute.xlu0 %5027
      %5029 = vrot.lane.b32.xlu0 %v3896, 112
      %v5030 = vpop.permute.xlu0 %5029
      %5031 = vrot.lane.b32.xlu0 %v3897, 112
      %v5032 = vpop.permute.xlu0 %5031
      %5033 = vrot.lane.b32.xlu0 %v3898, 112
      %v5034 = vpop.permute.xlu0 %5033
      %5035 = vrot.lane.b32.xlu0 %v3899, 112
      %v5036 = vpop.permute.xlu0 %5035
      %5037 = vrot.lane.b32.xlu0 %v3900, 112
      %v5038 = vpop.permute.xlu0 %5037
      %5039 = vrot.lane.b32.xlu0 %v3901, 112
      %v5040 = vpop.permute.xlu0 %5039
      %5041 = vrot.lane.b32.xlu0 %v3902, 112
      %v5042 = vpop.permute.xlu0 %5041
      %5043 = vrot.lane.b32.xlu0 %v3903, 112
      %v5044 = vpop.permute.xlu0 %5043
      %5045 = vrot.lane.b32.xlu0 %v3904, 112
      %v5046 = vpop.permute.xlu0 %5045
      %5047 = vrot.lane.b32.xlu0 %v3905, 112
      %v5048 = vpop.permute.xlu0 %5047
      %5049 = vrot.lane.b32.xlu0 %v3906, 112
      %v5050 = vpop.permute.xlu0 %5049
      %5051 = vrot.lane.b32.xlu0 %v3907, 112
      %v5052 = vpop.permute.xlu0 %5051
      %5053 = vrot.lane.b32.xlu0 %v3908, 112
      %v5054 = vpop.permute.xlu0 %5053
      %5055 = vrot.lane.b32.xlu0 %v3909, 112
      %v5056 = vpop.permute.xlu0 %5055
      %5057 = vrot.lane.b32.xlu0 %v3910, 112
      %v5058 = vpop.permute.xlu0 %5057
      %5059 = vrot.lane.b32.xlu0 %v3911, 112
      %v5060 = vpop.permute.xlu0 %5059
      %5061 = vrot.lane.b32.xlu0 %v3912, 112
      %v5062 = vpop.permute.xlu0 %5061
      %5063 = vrot.lane.b32.xlu0 %v3913, 112
      %v5064 = vpop.permute.xlu0 %5063
      %5065 = vrot.lane.b32.xlu0 %v3914, 112
      %v5066 = vpop.permute.xlu0 %5065
      %5067 = vrot.lane.b32.xlu0 %v3915, 112
      %v5068 = vpop.permute.xlu0 %5067
      %5069 = vrot.lane.b32.xlu0 %v3916, 112
      %v5070 = vpop.permute.xlu0 %5069
      %5071 = vrot.lane.b32.xlu0 %v3917, 112
      %v5072 = vpop.permute.xlu0 %5071
      %5073 = vrot.lane.b32.xlu0 %v3918, 112
      %v5074 = vpop.permute.xlu0 %5073
      %5075 = vrot.lane.b32.xlu0 %v3919, 112
      %v5076 = vpop.permute.xlu0 %5075
      %5077 = vrot.lane.b32.xlu0 %v3920, 112
      %v5078 = vpop.permute.xlu0 %5077
      %5079 = vrot.lane.b32.xlu0 %v3921, 112
      %v5080 = vpop.permute.xlu0 %5079
      %5081 = vrot.lane.b32.xlu0 %v3922, 112
      %v5082 = vpop.permute.xlu0 %5081
      %5083 = vrot.lane.b32.xlu0 %v3923, 112
      %v5084 = vpop.permute.xlu0 %5083
      %5085 = vrot.lane.b32.xlu0 %v3924, 112
      %v5086 = vpop.permute.xlu0 %5085
      %5087 = vrot.lane.b32.xlu0 %v3925, 112
      %v5088 = vpop.permute.xlu0 %5087
      %5089 = vrot.lane.b32.xlu0 %v3926, 112
      %v5090 = vpop.permute.xlu0 %5089
      %5091 = vrot.lane.b32.xlu0 %v3927, 112
      %v5092 = vpop.permute.xlu0 %5091
      %5093 = vrot.lane.b32.xlu0 %v3928, 112
      %v5094 = vpop.permute.xlu0 %5093
      %5095 = vrot.lane.b32.xlu0 %v3929, 112
      %v5096 = vpop.permute.xlu0 %5095
      %5097 = vrot.lane.b32.xlu0 %v3930, 112
      %v5098 = vpop.permute.xlu0 %5097
      %5099 = vrot.lane.b32.xlu0 %v3931, 112
      %v5100 = vpop.permute.xlu0 %5099
      %5101 = vrot.lane.b32.xlu0 %v3932, 112
      %v5102 = vpop.permute.xlu0 %5101
      %5103 = vrot.lane.b32.xlu0 %v3984, 112
      %v5104 = vpop.permute.xlu0 %5103
      %5105 = vrot.lane.b32.xlu0 %v3985, 112
      %v5106 = vpop.permute.xlu0 %5105
      %5107 = vrot.lane.b32.xlu0 %v3986, 112
      %v5108 = vpop.permute.xlu0 %5107
      %5109 = vrot.lane.b32.xlu0 %v3993, 112
      %v5110 = vpop.permute.xlu0 %5109
      %5111 = vrot.lane.b32.xlu0 %v3994, 112
      %v5112 = vpop.permute.xlu0 %5111
      %5113 = vrot.lane.b32.xlu0 %v3995, 112
      %v5114 = vpop.permute.xlu0 %5113
      %v5163 = vsel %vm1815, %v3837, %v4048
      %v5164 = vsel %vm1815, %v3838, %v4050
      %v5165 = vsel %vm1815, %v3839, %v4052
      %v5166 = vsel %vm1815, %v3840, %v4054
      %v5167 = vsel %vm1815, %v3841, %v4056
      %v5168 = vsel %vm1815, %v3842, %v4058
      %v5169 = vsel %vm1815, %v3843, %v4060
      %v5170 = vsel %vm1815, %v3844, %v4062
      %v5171 = vsel %vm1815, %v3845, %v4064
      %v5172 = vsel %vm1815, %v3846, %v4066
      %v5173 = vsel %vm1815, %v3847, %v4068
      %v5174 = vsel %vm1815, %v3848, %v4070
      %v5175 = vsel %vm1815, %v3849, %v4072
      %v5176 = vsel %vm1815, %v3850, %v4074
      %v5177 = vsel %vm1815, %v3851, %v4076
      %v5178 = vsel %vm1815, %v3852, %v4078
      %v5179 = vsel %vm1815, %v3853, %v4080
      %v5180 = vsel %vm1815, %v3854, %v4082
      %v5181 = vsel %vm1815, %v3855, %v4084
      %v5182 = vsel %vm1815, %v3856, %v4086
      %v5183 = vsel %vm1815, %v3857, %v4088
      %v5184 = vsel %vm1815, %v3858, %v4090
      %v5185 = vsel %vm1815, %v3859, %v4092
      %v5186 = vsel %vm1815, %v3860, %v4094
      %v5187 = vsel %vm1815, %v3861, %v4096
      %v5188 = vsel %vm1815, %v3862, %v4098
      %v5189 = vsel %vm1815, %v3863, %v4100
      %v5190 = vsel %vm1815, %v3864, %v4102
      %v5191 = vsel %vm1815, %v3865, %v4104
      %v5192 = vsel %vm1815, %v3866, %v4106
      %v5193 = vsel %vm1815, %v3867, %v4108
      %v5194 = vsel %vm1815, %v3868, %v4110
      %v5195 = vsel %vm1815, %v3869, %v4112
      %v5196 = vsel %vm1815, %v3870, %v4114
      %v5197 = vsel %vm1815, %v3871, %v4116
      %v5198 = vsel %vm1815, %v3872, %v4118
      %v5199 = vsel %vm1815, %v3873, %v4120
      %v5200 = vsel %vm1815, %v3874, %v4122
      %v5201 = vsel %vm1815, %v3875, %v4124
      %v5202 = vsel %vm1815, %v3876, %v4126
      %v5203 = vsel %vm1815, %v3877, %v4128
      %v5204 = vsel %vm1815, %v3878, %v4130
      %v5205 = vsel %vm1815, %v3879, %v4132
      %v5206 = vsel %vm1815, %v3880, %v4134
      %v5207 = vsel %vm1815, %v3881, %v4136
      %v5208 = vsel %vm1815, %v3882, %v4138
      %v5209 = vsel %vm1815, %v3883, %v4140
      %v5210 = vsel %vm1815, %v3884, %v4142
      %v5211 = vsel %vm1913, %v5163, %v4240
      %v5212 = vsel %vm1913, %v5164, %v4242
      %v5213 = vsel %vm1913, %v5165, %v4244
      %v5214 = vsel %vm1913, %v5166, %v4246
      %v5215 = vsel %vm1913, %v5167, %v4248
      %v5216 = vsel %vm1913, %v5168, %v4250
      %v5217 = vsel %vm1913, %v5169, %v4252
      %v5218 = vsel %vm1913, %v5170, %v4254
      %v5219 = vsel %vm1913, %v5171, %v4256
      %v5220 = vsel %vm1913, %v5172, %v4258
      %v5221 = vsel %vm1913, %v5173, %v4260
      %v5222 = vsel %vm1913, %v5174, %v4262
      %v5223 = vsel %vm1913, %v5175, %v4264
      %v5224 = vsel %vm1913, %v5176, %v4266
      %v5225 = vsel %vm1913, %v5177, %v4268
      %v5226 = vsel %vm1913, %v5178, %v4270
      %v5227 = vsel %vm1913, %v5179, %v4272
      %v5228 = vsel %vm1913, %v5180, %v4274
      %v5229 = vsel %vm1913, %v5181, %v4276
      %v5230 = vsel %vm1913, %v5182, %v4278
      %v5231 = vsel %vm1913, %v5183, %v4280
      %v5232 = vsel %vm1913, %v5184, %v4282
      %v5233 = vsel %vm1913, %v5185, %v4284
      %v5234 = vsel %vm1913, %v5186, %v4286
      %v5235 = vsel %vm1913, %v5187, %v4288
      %v5236 = vsel %vm1913, %v5188, %v4290
      %v5237 = vsel %vm1913, %v5189, %v4292
      %v5238 = vsel %vm1913, %v5190, %v4294
      %v5239 = vsel %vm1913, %v5191, %v4296
      %v5240 = vsel %vm1913, %v5192, %v4298
      %v5241 = vsel %vm1913, %v5193, %v4300
      %v5242 = vsel %vm1913, %v5194, %v4302
      %v5243 = vsel %vm1913, %v5195, %v4304
      %v5244 = vsel %vm1913, %v5196, %v4306
      %v5245 = vsel %vm1913, %v5197, %v4308
      %v5246 = vsel %vm1913, %v5198, %v4310
      %v5247 = vsel %vm1913, %v5199, %v4312
      %v5248 = vsel %vm1913, %v5200, %v4314
      %v5249 = vsel %vm1913, %v5201, %v4316
      %v5250 = vsel %vm1913, %v5202, %v4318
      %v5251 = vsel %vm1913, %v5203, %v4320
      %v5252 = vsel %vm1913, %v5204, %v4322
      %v5253 = vsel %vm1913, %v5205, %v4324
      %v5254 = vsel %vm1913, %v5206, %v4326
      %v5255 = vsel %vm1913, %v5207, %v4328
      %v5256 = vsel %vm1913, %v5208, %v4330
      %v5257 = vsel %vm1913, %v5209, %v4332
      %v5258 = vsel %vm1913, %v5210, %v4334
      %v5259 = vsel %vm2011, %v5211, %v4432
      %v5260 = vsel %vm2011, %v5212, %v4434
      %v5261 = vsel %vm2011, %v5213, %v4436
      %v5262 = vsel %vm2011, %v5214, %v4438
      %v5263 = vsel %vm2011, %v5215, %v4440
      %v5264 = vsel %vm2011, %v5216, %v4442
      %v5265 = vsel %vm2011, %v5217, %v4444
      %v5266 = vsel %vm2011, %v5218, %v4446
      %v5267 = vsel %vm2011, %v5219, %v4448
      %v5268 = vsel %vm2011, %v5220, %v4450
      %v5269 = vsel %vm2011, %v5221, %v4452
      %v5270 = vsel %vm2011, %v5222, %v4454
      %v5271 = vsel %vm2011, %v5223, %v4456
      %v5272 = vsel %vm2011, %v5224, %v4458
      %v5273 = vsel %vm2011, %v5225, %v4460
      %v5274 = vsel %vm2011, %v5226, %v4462
      %v5275 = vsel %vm2011, %v5227, %v4464
      %v5276 = vsel %vm2011, %v5228, %v4466
      %v5277 = vsel %vm2011, %v5229, %v4468
      %v5278 = vsel %vm2011, %v5230, %v4470
      %v5279 = vsel %vm2011, %v5231, %v4472
      %v5280 = vsel %vm2011, %v5232, %v4474
      %v5281 = vsel %vm2011, %v5233, %v4476
      %v5282 = vsel %vm2011, %v5234, %v4478
      %v5283 = vsel %vm2011, %v5235, %v4480
      %v5284 = vsel %vm2011, %v5236, %v4482
      %v5285 = vsel %vm2011, %v5237, %v4484
      %v5286 = vsel %vm2011, %v5238, %v4486
      %v5287 = vsel %vm2011, %v5239, %v4488
      %v5288 = vsel %vm2011, %v5240, %v4490
      %v5289 = vsel %vm2011, %v5241, %v4492
      %v5290 = vsel %vm2011, %v5242, %v4494
      %v5291 = vsel %vm2011, %v5243, %v4496
      %v5292 = vsel %vm2011, %v5244, %v4498
      %v5293 = vsel %vm2011, %v5245, %v4500
      %v5294 = vsel %vm2011, %v5246, %v4502
      %v5295 = vsel %vm2011, %v5247, %v4504
      %v5296 = vsel %vm2011, %v5248, %v4506
      %v5297 = vsel %vm2011, %v5249, %v4508
      %v5298 = vsel %vm2011, %v5250, %v4510
      %v5299 = vsel %vm2011, %v5251, %v4512
      %v5300 = vsel %vm2011, %v5252, %v4514
      %v5301 = vsel %vm2011, %v5253, %v4516
      %v5302 = vsel %vm2011, %v5254, %v4518
      %v5303 = vsel %vm2011, %v5255, %v4520
      %v5304 = vsel %vm2011, %v5256, %v4522
      %v5305 = vsel %vm2011, %v5257, %v4524
      %v5306 = vsel %vm2011, %v5258, %v4526
      %v5307 = vsel %vm2109, %v5259, %v4579
      %v5308 = vsel %vm2109, %v5260, %v4581
      %v5309 = vsel %vm2109, %v5261, %v4583
      %v5310 = vsel %vm2109, %v5262, %v4585
      %v5311 = vsel %vm2109, %v5263, %v4587
      %v5312 = vsel %vm2109, %v5264, %v4589
      %v5313 = vsel %vm2109, %v5265, %v4591
      %v5314 = vsel %vm2109, %v5266, %v4593
      %v5315 = vsel %vm2109, %v5267, %v4595
      %v5316 = vsel %vm2109, %v5268, %v4597
      %v5317 = vsel %vm2109, %v5269, %v4599
      %v5318 = vsel %vm2109, %v5270, %v4601
      %v5319 = vsel %vm2109, %v5271, %v4603
      %v5320 = vsel %vm2109, %v5272, %v4605
      %v5321 = vsel %vm2109, %v5273, %v4607
      %v5322 = vsel %vm2109, %v5274, %v4609
      %v5323 = vsel %vm2109, %v5275, %v4611
      %v5324 = vsel %vm2109, %v5276, %v4613
      %v5325 = vsel %vm2109, %v5277, %v4615
      %v5326 = vsel %vm2109, %v5278, %v4617
      %v5327 = vsel %vm2109, %v5279, %v4619
      %v5328 = vsel %vm2109, %v5280, %v4621
      %v5329 = vsel %vm2109, %v5281, %v4623
      %v5330 = vsel %vm2109, %v5282, %v4625
      %v5331 = vsel %vm2109, %v5283, %v4627
      %v5332 = vsel %vm2109, %v5284, %v4629
      %v5333 = vsel %vm2109, %v5285, %v4631
      %v5334 = vsel %vm2109, %v5286, %v4633
      %v5335 = vsel %vm2109, %v5287, %v4635
      %v5336 = vsel %vm2109, %v5288, %v4637
      %v5337 = vsel %vm2109, %v5289, %v4639
      %v5338 = vsel %vm2109, %v5290, %v4641
      %v5339 = vsel %vm2109, %v5291, %v4643
      %v5340 = vsel %vm2109, %v5292, %v4645
      %v5341 = vsel %vm2109, %v5293, %v4647
      %v5342 = vsel %vm2109, %v5294, %v4649
      %v5343 = vsel %vm2109, %v5295, %v4651
      %v5344 = vsel %vm2109, %v5296, %v4653
      %v5345 = vsel %vm2109, %v5297, %v4655
      %v5346 = vsel %vm2109, %v5298, %v4657
      %v5347 = vsel %vm2109, %v5299, %v4659
      %v5348 = vsel %vm2109, %v5300, %v4661
      %v5349 = vsel %vm2109, %v5301, %v4663
      %v5350 = vsel %vm2109, %v5302, %v4665
      %v5351 = vsel %vm2109, %v5303, %v4667
      %v5352 = vsel %vm2109, %v5304, %v4669
      %v5353 = vsel %vm2109, %v5305, %v4671
      %v5354 = vsel %vm2109, %v5306, %v4673
      %vm5355 = vcmask 654336
      %v5356 = vsel %vm5355, %v5307, %v4726
      %v5357 = vsel %vm5355, %v5308, %v4728
      %v5358 = vsel %vm5355, %v5309, %v4730
      %v5359 = vsel %vm5355, %v5310, %v4732
      %v5360 = vsel %vm5355, %v5311, %v4734
      %v5361 = vsel %vm5355, %v5312, %v4736
      %v5362 = vsel %vm5355, %v5313, %v4738
      %v5363 = vsel %vm5355, %v5314, %v4740
      %v5364 = vsel %vm5355, %v5315, %v4742
      %v5365 = vsel %vm5355, %v5316, %v4744
      %v5366 = vsel %vm5355, %v5317, %v4746
      %v5367 = vsel %vm5355, %v5318, %v4748
      %v5368 = vsel %vm5355, %v5319, %v4750
      %v5369 = vsel %vm5355, %v5320, %v4752
      %v5370 = vsel %vm5355, %v5321, %v4754
      %v5371 = vsel %vm5355, %v5322, %v4756
      %v5372 = vsel %vm5355, %v5323, %v4758
      %v5373 = vsel %vm5355, %v5324, %v4760
      %v5374 = vsel %vm5355, %v5325, %v4762
      %v5375 = vsel %vm5355, %v5326, %v4764
      %v5376 = vsel %vm5355, %v5327, %v4766
      %v5377 = vsel %vm5355, %v5328, %v4768
      %v5378 = vsel %vm5355, %v5329, %v4770
      %v5379 = vsel %vm5355, %v5330, %v4772
      %v5380 = vsel %vm5355, %v5331, %v4774
      %v5381 = vsel %vm5355, %v5332, %v4776
      %v5382 = vsel %vm5355, %v5333, %v4778
      %v5383 = vsel %vm5355, %v5334, %v4780
      %v5384 = vsel %vm5355, %v5335, %v4782
      %v5385 = vsel %vm5355, %v5336, %v4784
      %v5386 = vsel %vm5355, %v5337, %v4786
      %v5387 = vsel %vm5355, %v5338, %v4788
      %v5388 = vsel %vm5355, %v5339, %v4790
      %v5389 = vsel %vm5355, %v5340, %v4792
      %v5390 = vsel %vm5355, %v5341, %v4794
      %v5391 = vsel %vm5355, %v5342, %v4796
      %v5392 = vsel %vm5355, %v5343, %v4798
      %v5393 = vsel %vm5355, %v5344, %v4800
      %v5394 = vsel %vm5355, %v5345, %v4802
      %v5395 = vsel %vm5355, %v5346, %v4804
      %v5396 = vsel %vm5355, %v5347, %v4806
      %v5397 = vsel %vm5355, %v5348, %v4808
      %v5398 = vsel %vm5355, %v5349, %v4810
      %v5399 = vsel %vm5355, %v5350, %v4812
      %v5400 = vsel %vm5355, %v5351, %v4814
      %v5401 = vsel %vm5355, %v5352, %v4816
      %v5402 = vsel %vm5355, %v5353, %v4818
      %v5403 = vsel %vm5355, %v5354, %v4820
      %vm5404 = vcmask 785408
      %v5405 = vsel %vm5404, %v5356, %v4873
      %v5406 = vsel %vm5404, %v5357, %v4875
      %v5407 = vsel %vm5404, %v5358, %v4877
      %v5408 = vsel %vm5404, %v5359, %v4879
      %v5409 = vsel %vm5404, %v5360, %v4881
      %v5410 = vsel %vm5404, %v5361, %v4883
      %v5411 = vsel %vm5404, %v5362, %v4885
      %v5412 = vsel %vm5404, %v5363, %v4887
      %v5413 = vsel %vm5404, %v5364, %v4889
      %v5414 = vsel %vm5404, %v5365, %v4891
      %v5415 = vsel %vm5404, %v5366, %v4893
      %v5416 = vsel %vm5404, %v5367, %v4895
      %v5417 = vsel %vm5404, %v5368, %v4897
      %v5418 = vsel %vm5404, %v5369, %v4899
      %v5419 = vsel %vm5404, %v5370, %v4901
      %v5420 = vsel %vm5404, %v5371, %v4903
      %v5421 = vsel %vm5404, %v5372, %v4905
      %v5422 = vsel %vm5404, %v5373, %v4907
      %v5423 = vsel %vm5404, %v5374, %v4909
      %v5424 = vsel %vm5404, %v5375, %v4911
      %v5425 = vsel %vm5404, %v5376, %v4913
      %v5426 = vsel %vm5404, %v5377, %v4915
      %v5427 = vsel %vm5404, %v5378, %v4917
      %v5428 = vsel %vm5404, %v5379, %v4919
      %v5429 = vsel %vm5404, %v5380, %v4921
      %v5430 = vsel %vm5404, %v5381, %v4923
      %v5431 = vsel %vm5404, %v5382, %v4925
      %v5432 = vsel %vm5404, %v5383, %v4927
      %v5433 = vsel %vm5404, %v5384, %v4929
      %v5434 = vsel %vm5404, %v5385, %v4931
      %v5435 = vsel %vm5404, %v5386, %v4933
      %v5436 = vsel %vm5404, %v5387, %v4935
      %v5437 = vsel %vm5404, %v5388, %v4937
      %v5438 = vsel %vm5404, %v5389, %v4939
      %v5439 = vsel %vm5404, %v5390, %v4941
      %v5440 = vsel %vm5404, %v5391, %v4943
      %v5441 = vsel %vm5404, %v5392, %v4945
      %v5442 = vsel %vm5404, %v5393, %v4947
      %v5443 = vsel %vm5404, %v5394, %v4949
      %v5444 = vsel %vm5404, %v5395, %v4951
      %v5445 = vsel %vm5404, %v5396, %v4953
      %v5446 = vsel %vm5404, %v5397, %v4955
      %v5447 = vsel %vm5404, %v5398, %v4957
      %v5448 = vsel %vm5404, %v5399, %v4959
      %v5449 = vsel %vm5404, %v5400, %v4961
      %v5450 = vsel %vm5404, %v5401, %v4963
      %v5451 = vsel %vm5404, %v5402, %v4965
      %v5452 = vsel %vm5404, %v5403, %v4967
      %vm5453 = vcmask 916480
      %v5454 = vsel %vm5453, %v5405, %v5020
      %v5455 = vsel %vm5453, %v5406, %v5022
      %v5456 = vsel %vm5453, %v5407, %v5024
      %v5457 = vsel %vm5453, %v5408, %v5026
      %v5458 = vsel %vm5453, %v5409, %v5028
      %v5459 = vsel %vm5453, %v5410, %v5030
      %v5460 = vsel %vm5453, %v5411, %v5032
      %v5461 = vsel %vm5453, %v5412, %v5034
      %v5462 = vsel %vm5453, %v5413, %v5036
      %v5463 = vsel %vm5453, %v5414, %v5038
      %v5464 = vsel %vm5453, %v5415, %v5040
      %v5465 = vsel %vm5453, %v5416, %v5042
      %v5466 = vsel %vm5453, %v5417, %v5044
      %v5467 = vsel %vm5453, %v5418, %v5046
      %v5468 = vsel %vm5453, %v5419, %v5048
      %v5469 = vsel %vm5453, %v5420, %v5050
      %v5470 = vsel %vm5453, %v5421, %v5052
      %v5471 = vsel %vm5453, %v5422, %v5054
      %v5472 = vsel %vm5453, %v5423, %v5056
      %v5473 = vsel %vm5453, %v5424, %v5058
      %v5474 = vsel %vm5453, %v5425, %v5060
      %v5475 = vsel %vm5453, %v5426, %v5062
      %v5476 = vsel %vm5453, %v5427, %v5064
      %v5477 = vsel %vm5453, %v5428, %v5066
      %v5478 = vsel %vm5453, %v5429, %v5068
      %v5479 = vsel %vm5453, %v5430, %v5070
      %v5480 = vsel %vm5453, %v5431, %v5072
      %v5481 = vsel %vm5453, %v5432, %v5074
      %v5482 = vsel %vm5453, %v5433, %v5076
      %v5483 = vsel %vm5453, %v5434, %v5078
      %v5484 = vsel %vm5453, %v5435, %v5080
      %v5485 = vsel %vm5453, %v5436, %v5082
      %v5486 = vsel %vm5453, %v5437, %v5084
      %v5487 = vsel %vm5453, %v5438, %v5086
      %v5488 = vsel %vm5453, %v5439, %v5088
      %v5489 = vsel %vm5453, %v5440, %v5090
      %v5490 = vsel %vm5453, %v5441, %v5092
      %v5491 = vsel %vm5453, %v5442, %v5094
      %v5492 = vsel %vm5453, %v5443, %v5096
      %v5493 = vsel %vm5453, %v5444, %v5098
      %v5494 = vsel %vm5453, %v5445, %v5100
      %v5495 = vsel %vm5453, %v5446, %v5102
      %v5496 = vsel %vm5453, %v5447, %v5104
      %v5497 = vsel %vm5453, %v5448, %v5106
      %v5498 = vsel %vm5453, %v5449, %v5108
      %v5499 = vsel %vm5453, %v5450, %v5110
      %v5500 = vsel %vm5453, %v5451, %v5112
      %v5501 = vsel %vm5453, %v5452, %v5114
      %v5502 = vld [vmem:[%s3] sm:$0xff]
      %v5503 = vld [vmem:[%s3 + $0x8] sm:$0xff]
      %v5504 = vld [vmem:[%s3 + $0x10] sm:$0xff]
      %v5505 = vld [vmem:[%s3 + $0x18] sm:$0xff]
      %v5506 = vld [vmem:[%s3 + $0x20] sm:$0xff]
      %v5507 = vld [vmem:[%s3 + $0x28] sm:$0xff]
      %v5508 = vld [vmem:[%s3 + $0x30] sm:$0xff]
      %v5509 = vld [vmem:[%s3 + $0x38] sm:$0xff]
      %v5510 = vld [vmem:[%s3 + $0x40] sm:$0xff]
      %v5511 = vld [vmem:[%s3 + $0x48] sm:$0xff]
      %v5512 = vld [vmem:[%s3 + $0x50] sm:$0xff]
      %v5513 = vld [vmem:[%s3 + $0x58] sm:$0xff]
      %v5514 = vld [vmem:[%s3 + $0x60] sm:$0xff]
      %v5515 = vld [vmem:[%s3 + $0x68] sm:$0xff]
      %v5516 = vld [vmem:[%s3 + $0x70] sm:$0xff]
      %v5517 = vld [vmem:[%s3 + $0x78] sm:$0xff]
      %v5518 = vld [vmem:[%s3 + $0x80] sm:$0xff]
      %v5519 = vld [vmem:[%s3 + $0x88] sm:$0xff]
      %v5521 = vlaneseq
      %v5522 = vshrl.u32 %v5521, 7
      %v5523 = vsub.s32 0, %v5522
      %v5524 = vrot.slane %v3836, %v5523
      %v5526 = vsel %vm1815, %v3939, 0
      %v5528 = vsel %vm1815, %v3940, 0
      %v5530 = vsel %vm1815, %v3941, 0
      %v5532 = vsel %vm1815, %v3942, 0
      %v5534 = vsel %vm1815, %v3943, 0
      %v5536 = vsel %vm1815, %v3944, 0
      %v5538 = vsel %vm1815, %v3945, 0
      %v5540 = vsel %vm1815, %v3946, 0
      %v5542 = vsel %vm1815, %v3947, 0
      %v5544 = vsel %vm1815, %v3948, 0
      %v5546 = vsel %vm1815, %v3949, 0
      %v5548 = vsel %vm1815, %v3950, 0
      %v5550 = vsel %vm1815, %v3951, 0
      %v5552 = vsel %vm1815, %v3952, 0
      %v5554 = vsel %vm1815, %v3953, 0
      %v5556 = vsel %vm1815, %v3954, 0
      %v5558 = vsel %vm1815, %v3955, 0
      %v5560 = vsel %vm1815, %v3956, 0
      %v5562 = vsel %vm1815, %v3957, 0
      %v5564 = vsel %vm1815, %v3958, 0
      %v5566 = vsel %vm1815, %v3959, 0
      %v5568 = vsel %vm1815, %v3960, 0
      %v5570 = vsel %vm1815, %v3961, 0
      %v5572 = vsel %vm1815, %v3962, 0
      %v5574 = vsel %vm1815, %v3963, 0
      %v5576 = vsel %vm1815, %v3964, 0
      %v5578 = vsel %vm1815, %v3965, 0
      %v5580 = vsel %vm1815, %v3966, 0
      %v5582 = vsel %vm1815, %v3967, 0
      %v5584 = vsel %vm1815, %v3968, 0
      %v5586 = vsel %vm1815, %v3969, 0
      %v5588 = vsel %vm1815, %v3970, 0
      %v5590 = vsel %vm1815, %v3971, 0
      %v5592 = vsel %vm1815, %v3972, 0
      %v5594 = vsel %vm1815, %v3973, 0
      %v5596 = vsel %vm1815, %v3974, 0
      %v5598 = vsel %vm1815, %v3975, 0
      %v5600 = vsel %vm1815, %v3976, 0
      %v5602 = vsel %vm1815, %v3977, 0
      %v5604 = vsel %vm1815, %v3978, 0
      %v5606 = vsel %vm1815, %v3979, 0
      %v5608 = vsel %vm1815, %v3980, 0
      %v5610 = vsel %vm1815, %v3987, 0
      %v5612 = vsel %vm1815, %v3988, 0
      %v5614 = vsel %vm1815, %v3989, 0
      %v5617 = vsel %vm1815, %v3996, 0
      %v5620 = vsel %vm1815, %v3997, 0
      %v5623 = vsel %vm1815, %v3998, 0
      %5625 = vmatprep.subr.mxu0 0.0
      %5626 = vmatpush1.msra.mxu0 %v5502
      %5627 = vmatprep.subr.mxu0 0.0
      %5628 = vmatpush1.msra.mxu0 %v5503
      %5629 = vmatprep.subr.mxu0 0.0
      %5630 = vmatpush1.msra.mxu0 %v5504
      %5631 = vmatprep.subr.mxu0 0.0
      %5632 = vmatpush1.msra.mxu0 %v5505
      %5633 = vmatprep.subr.mxu0 0.0
      %5634 = vmatpush1.msra.mxu0 %v5506
      %5635 = vmatprep.subr.mxu0 0.0
      %5636 = vmatpush1.msra.mxu0 %v5507
      %5637 = vmatprep.subr.mxu0 0.0
      %5638 = vmatpush1.msra.mxu0 %v5508
      %5639 = vmatprep.subr.mxu0 0.0
      %5640 = vmatpush1.msra.mxu0 %v5509
      %5641 = vmatprep.subr.mxu0 0.0
      %5642 = vmatpush1.msra.mxu0 %v5510
      %5643 = vmatprep.subr.mxu0 0.0
      %5644 = vmatpush1.msra.mxu0 %v5511
      %5645 = vmatprep.subr.mxu0 0.0
      %5646 = vmatpush1.msra.mxu0 %v5512
      %5647 = vmatprep.subr.mxu0 0.0
      %5648 = vmatpush1.msra.mxu0 %v5513
      %5649 = vmatprep.subr.mxu0 0.0
      %5650 = vmatpush1.msra.mxu0 %v5514
      %5651 = vmatprep.subr.mxu0 0.0
      %5652 = vmatpush1.msra.mxu0 %v5515
      %5653 = vmatprep.subr.mxu0 0.0
      %5654 = vmatpush1.msra.mxu0 %v5516
      %5655 = vmatprep.subr.mxu0 0.0
      %5656 = vmatpush1.msra.mxu0 %v5517
      %5657 = vmatprep.subr.mxu0 0.0
      %5658 = vmatpush1.msra.mxu0 %v5518
      %5659 = vmatprep.subr.mxu0 0.0
      %5660 = vmatpush1.msra.mxu0 %v5519
      %5661 = vmatprep.subr.mxu0 0.0
      %5662 = vmatpush1.msra.mxu0 0.0
      %5663 = vmatprep.subr.mxu0 0.0
      %5664 = vmatpush1.msra.mxu0 0.0
      %5665 = vmatprep.subr.mxu0 0.0
      %5666 = vmatpush1.msra.mxu0 0.0
      %5667 = vmatprep.subr.mxu0 0.0
      %5668 = vmatpush1.msra.mxu0 0.0
      %5669 = vmatprep.subr.mxu0 0.0
      %5670 = vmatpush1.msra.mxu0 0.0
      %5671 = vmatprep.subr.mxu0 0.0
      %5672 = vmatpush1.msra.mxu0 0.0
      %5673 = vmatprep.subr.mxu0 0.0
      %5674 = vmatpush1.msra.mxu0 0.0
      %5675 = vmatprep.subr.mxu0 0.0
      %5676 = vmatpush1.msra.mxu0 0.0
      %5677 = vmatprep.subr.mxu0 0.0
      %5678 = vmatpush1.msra.mxu0 0.0
      %5679 = vmatprep.subr.mxu0 0.0
      %5680 = vmatpush1.msra.mxu0 0.0
      %5681 = vmatprep.subr.mxu0 0.0
      %5682 = vmatpush1.msra.mxu0 0.0
      %5683 = vmatprep.subr.mxu0 0.0
      %5684 = vmatpush1.msra.mxu0 0.0
      %5685 = vmatprep.subr.mxu0 0.0
      %5686 = vmatpush1.msra.mxu0 0.0
      %5687 = vmatprep.subr.mxu0 0.0
      %5688 = vmatpush1.msra.mxu0 0.0
      %5689 = vmatprep.mubr.f32.mxu0 %v5526
      %5690 = vmatmul.mubr.f32.gmra.mrb[0].mxu0 %v5454
      %v5691 = vpop.f32.mrb[0].mxu0
      %v5692 = vadd.f32 %v5524, %v5691
      %v5693 = vpop.f32.mrb[0].mxu0
      %5694 = vmatprep.mubr.f32.mxu0 %v5528
      %5695 = vmatmul.mubr.f32.gmra.mrb[0].mxu0 %v5455
      %v5696 = vpop.f32.mrb[0].mxu0
      %v5697 = vadd.f32 %v5524, %v5696
      %v5698 = vpop.f32.mrb[0].mxu0
      %5699 = vmatprep.mubr.f32.mxu0 %v5530
      %5700 = vmatmul.mubr.f32.gmra.mrb[0].mxu0 %v5456
      %v5701 = vpop.f32.mrb[0].mxu0
      %v5702 = vadd.f32 %v5524, %v5701
      %v5703 = vpop.f32.mrb[0].mxu0
      %5704 = vmatprep.mubr.f32.mxu0 %v5532
      %5705 = vmatmul.mubr.f32.gmra.mrb[0].mxu0 %v5457
      %v5706 = vpop.f32.mrb[0].mxu0
      %v5707 = vadd.f32 %v5524, %v5706
      %v5708 = vpop.f32.mrb[0].mxu0
      %5709 = vmatprep.mubr.f32.mxu0 %v5534
      %5710 = vmatmul.mubr.f32.gmra.mrb[0].mxu0 %v5458
      %v5711 = vpop.f32.mrb[0].mxu0
      %v5712 = vadd.f32 %v5524, %v5711
      %v5713 = vpop.f32.mrb[0].mxu0
      %5714 = vmatprep.mubr.f32.mxu0 %v5536
      %5715 = vmatmul.mubr.f32.gmra.mrb[0].mxu0 %v5459
      %v5716 = vpop.f32.mrb[0].mxu0
      %v5717 = vadd.f32 %v5524, %v5716
      %v5718 = vpop.f32.mrb[0].mxu0
      %5719 = vmatprep.mubr.f32.mxu0 %v5538
      %5720 = vmatmul.mubr.f32.gmra.mrb[0].mxu0 %v5460
      %v5721 = vpop.f32.mrb[0].mxu0
      %v5722 = vadd.f32 %v5524, %v5721
      %v5723 = vpop.f32.mrb[0].mxu0
      %5724 = vmatprep.mubr.f32.mxu0 %v5540
      %5725 = vmatmul.mubr.f32.gmra.mrb[0].mxu0 %v5461
      %v5726 = vpop.f32.mrb[0].mxu0
      %v5727 = vadd.f32 %v5524, %v5726
      %v5728 = vpop.f32.mrb[0].mxu0
      %5729 = vmatprep.mubr.f32.mxu0 %v5542
      %5730 = vmatmul.mubr.f32.gmra.mrb[0].mxu0 %v5462
      %v5731 = vpop.f32.mrb[0].mxu0
      %v5732 = vadd.f32 %v5524, %v5731
      %v5733 = vpop.f32.mrb[0].mxu0
      %5734 = vmatprep.mubr.f32.mxu0 %v5544
      %5735 = vmatmul.mubr.f32.gmra.mrb[0].mxu0 %v5463
      %v5736 = vpop.f32.mrb[0].mxu0
      %v5737 = vadd.f32 %v5524, %v5736
      %v5738 = vpop.f32.mrb[0].mxu0
      %5739 = vmatprep.mubr.f32.mxu0 %v5546
      %5740 = vmatmul.mubr.f32.gmra.mrb[0].mxu0 %v5464
      %v5741 = vpop.f32.mrb[0].mxu0
      %v5742 = vadd.f32 %v5524, %v5741
      %v5743 = vpop.f32.mrb[0].mxu0
      %5744 = vmatprep.mubr.f32.mxu0 %v5548
      %5745 = vmatmul.mubr.f32.gmra.mrb[0].mxu0 %v5465
      %v5746 = vpop.f32.mrb[0].mxu0
      %v5747 = vadd.f32 %v5524, %v5746
      %v5748 = vpop.f32.mrb[0].mxu0
      %5749 = vmatprep.mubr.f32.mxu0 %v5550
      %5750 = vmatmul.mubr.f32.gmra.mrb[0].mxu0 %v5466
      %v5751 = vpop.f32.mrb[0].mxu0
      %v5752 = vadd.f32 %v5524, %v5751
      %v5753 = vpop.f32.mrb[0].mxu0
      %5754 = vmatprep.mubr.f32.mxu0 %v5552
      %5755 = vmatmul.mubr.f32.gmra.mrb[0].mxu0 %v5467
      %v5756 = vpop.f32.mrb[0].mxu0
      %v5757 = vadd.f32 %v5524, %v5756
      %v5758 = vpop.f32.mrb[0].mxu0
      %5759 = vmatprep.mubr.f32.mxu0 %v5554
      %5760 = vmatmul.mubr.f32.gmra.mrb[0].mxu0 %v5468
      %v5761 = vpop.f32.mrb[0].mxu0
      %v5762 = vadd.f32 %v5524, %v5761
      %v5763 = vpop.f32.mrb[0].mxu0
      %5764 = vmatprep.mubr.f32.mxu0 %v5556
      %5765 = vmatmul.mubr.f32.gmra.mrb[0].mxu0 %v5469
      %v5766 = vpop.f32.mrb[0].mxu0
      %v5767 = vadd.f32 %v5524, %v5766
      %v5768 = vpop.f32.mrb[0].mxu0
      %5769 = vmatprep.mubr.f32.mxu0 %v5558
      %5770 = vmatmul.mubr.f32.gmra.mrb[0].mxu0 %v5470
      %v5771 = vpop.f32.mrb[0].mxu0
      %v5772 = vadd.f32 %v5524, %v5771
      %v5773 = vpop.f32.mrb[0].mxu0
      %5774 = vmatprep.mubr.f32.mxu0 %v5560
      %5775 = vmatmul.mubr.f32.gmra.mrb[0].mxu0 %v5471
      %v5776 = vpop.f32.mrb[0].mxu0
      %v5777 = vadd.f32 %v5524, %v5776
      %v5778 = vpop.f32.mrb[0].mxu0
      %5779 = vmatprep.mubr.f32.mxu0 %v5562
      %5780 = vmatmul.mubr.f32.gmra.mrb[0].mxu0 %v5472
      %v5781 = vpop.f32.mrb[0].mxu0
      %v5782 = vadd.f32 %v5524, %v5781
      %v5783 = vpop.f32.mrb[0].mxu0
      %5784 = vmatprep.mubr.f32.mxu0 %v5564
      %5785 = vmatmul.mubr.f32.gmra.mrb[0].mxu0 %v5473
      %v5786 = vpop.f32.mrb[0].mxu0
      %v5787 = vadd.f32 %v5524, %v5786
      %v5788 = vpop.f32.mrb[0].mxu0
      %5789 = vmatprep.mubr.f32.mxu0 %v5566
      %5790 = vmatmul.mubr.f32.gmra.mrb[0].mxu0 %v5474
      %v5791 = vpop.f32.mrb[0].mxu0
      %v5792 = vadd.f32 %v5524, %v5791
      %v5793 = vpop.f32.mrb[0].mxu0
      %5794 = vmatprep.mubr.f32.mxu0 %v5568
      %5795 = vmatmul.mubr.f32.gmra.mrb[0].mxu0 %v5475
      %v5796 = vpop.f32.mrb[0].mxu0
      %v5797 = vadd.f32 %v5524, %v5796
      %v5798 = vpop.f32.mrb[0].mxu0
      %5799 = vmatprep.mubr.f32.mxu0 %v5570
      %5800 = vmatmul.mubr.f32.gmra.mrb[0].mxu0 %v5476
      %v5801 = vpop.f32.mrb[0].mxu0
      %v5802 = vadd.f32 %v5524, %v5801
      %v5803 = vpop.f32.mrb[0].mxu0
      %5804 = vmatprep.mubr.f32.mxu0 %v5572
      %5805 = vmatmul.mubr.f32.gmra.mrb[0].mxu0 %v5477
      %v5806 = vpop.f32.mrb[0].mxu0
      %v5807 = vadd.f32 %v5524, %v5806
      %v5808 = vpop.f32.mrb[0].mxu0
      %5809 = vmatprep.mubr.f32.mxu0 %v5574
      %5810 = vmatmul.mubr.f32.gmra.mrb[0].mxu0 %v5478
      %v5811 = vpop.f32.mrb[0].mxu0
      %v5812 = vadd.f32 %v5524, %v5811
      %v5813 = vpop.f32.mrb[0].mxu0
      %5814 = vmatprep.mubr.f32.mxu0 %v5576
      %5815 = vmatmul.mubr.f32.gmra.mrb[0].mxu0 %v5479
      %v5816 = vpop.f32.mrb[0].mxu0
      %v5817 = vadd.f32 %v5524, %v5816
      %v5818 = vpop.f32.mrb[0].mxu0
      %5819 = vmatprep.mubr.f32.mxu0 %v5578
      %5820 = vmatmul.mubr.f32.gmra.mrb[0].mxu0 %v5480
      %v5821 = vpop.f32.mrb[0].mxu0
      %v5822 = vadd.f32 %v5524, %v5821
      %v5823 = vpop.f32.mrb[0].mxu0
      %5824 = vmatprep.mubr.f32.mxu0 %v5580
      %5825 = vmatmul.mubr.f32.gmra.mrb[0].mxu0 %v5481
      %v5826 = vpop.f32.mrb[0].mxu0
      %v5827 = vadd.f32 %v5524, %v5826
      %v5828 = vpop.f32.mrb[0].mxu0
      %5829 = vmatprep.mubr.f32.mxu0 %v5582
      %5830 = vmatmul.mubr.f32.gmra.mrb[0].mxu0 %v5482
      %v5831 = vpop.f32.mrb[0].mxu0
      %v5832 = vadd.f32 %v5524, %v5831
      %v5833 = vpop.f32.mrb[0].mxu0
      %5834 = vmatprep.mubr.f32.mxu0 %v5584
      %5835 = vmatmul.mubr.f32.gmra.mrb[0].mxu0 %v5483
      %v5836 = vpop.f32.mrb[0].mxu0
      %v5837 = vadd.f32 %v5524, %v5836
      %v5838 = vpop.f32.mrb[0].mxu0
      %5839 = vmatprep.mubr.f32.mxu0 %v5586
      %5840 = vmatmul.mubr.f32.gmra.mrb[0].mxu0 %v5484
      %v5841 = vpop.f32.mrb[0].mxu0
      %v5842 = vadd.f32 %v5524, %v5841
      %v5843 = vpop.f32.mrb[0].mxu0
      %5844 = vmatprep.mubr.f32.mxu0 %v5588
      %5845 = vmatmul.mubr.f32.gmra.mrb[0].mxu0 %v5485
      %v5846 = vpop.f32.mrb[0].mxu0
      %v5847 = vadd.f32 %v5524, %v5846
      %v5848 = vpop.f32.mrb[0].mxu0
      %5849 = vmatprep.mubr.f32.mxu0 %v5590
      %5850 = vmatmul.mubr.f32.gmra.mrb[0].mxu0 %v5486
      %v5851 = vpop.f32.mrb[0].mxu0
      %v5852 = vadd.f32 %v5524, %v5851
      %v5853 = vpop.f32.mrb[0].mxu0
      %5854 = vmatprep.mubr.f32.mxu0 %v5592
      %5855 = vmatmul.mubr.f32.gmra.mrb[0].mxu0 %v5487
      %v5856 = vpop.f32.mrb[0].mxu0
      %v5857 = vadd.f32 %v5524, %v5856
      %v5858 = vpop.f32.mrb[0].mxu0
      %5859 = vmatprep.mubr.f32.mxu0 %v5594
      %5860 = vmatmul.mubr.f32.gmra.mrb[0].mxu0 %v5488
      %v5861 = vpop.f32.mrb[0].mxu0
      %v5862 = vadd.f32 %v5524, %v5861
      %v5863 = vpop.f32.mrb[0].mxu0
      %5864 = vmatprep.mubr.f32.mxu0 %v5596
      %5865 = vmatmul.mubr.f32.gmra.mrb[0].mxu0 %v5489
      %v5866 = vpop.f32.mrb[0].mxu0
      %v5867 = vadd.f32 %v5524, %v5866
      %v5868 = vpop.f32.mrb[0].mxu0
      %5869 = vmatprep.mubr.f32.mxu0 %v5598
      %5870 = vmatmul.mubr.f32.gmra.mrb[0].mxu0 %v5490
      %v5871 = vpop.f32.mrb[0].mxu0
      %v5872 = vadd.f32 %v5524, %v5871
      %v5873 = vpop.f32.mrb[0].mxu0
      %5874 = vmatprep.mubr.f32.mxu0 %v5600
      %5875 = vmatmul.mubr.f32.gmra.mrb[0].mxu0 %v5491
      %v5876 = vpop.f32.mrb[0].mxu0
      %v5877 = vadd.f32 %v5524, %v5876
      %v5878 = vpop.f32.mrb[0].mxu0
      %5879 = vmatprep.mubr.f32.mxu0 %v5602
      %5880 = vmatmul.mubr.f32.gmra.mrb[0].mxu0 %v5492
      %v5881 = vpop.f32.mrb[0].mxu0
      %v5882 = vadd.f32 %v5524, %v5881
      %v5883 = vpop.f32.mrb[0].mxu0
      %5884 = vmatprep.mubr.f32.mxu0 %v5604
      %5885 = vmatmul.mubr.f32.gmra.mrb[0].mxu0 %v5493
      %v5886 = vpop.f32.mrb[0].mxu0
      %v5887 = vadd.f32 %v5524, %v5886
      %v5888 = vpop.f32.mrb[0].mxu0
      %5889 = vmatprep.mubr.f32.mxu0 %v5606
      %5890 = vmatmul.mubr.f32.gmra.mrb[0].mxu0 %v5494
      %v5891 = vpop.f32.mrb[0].mxu0
      %v5892 = vadd.f32 %v5524, %v5891
      %v5893 = vpop.f32.mrb[0].mxu0
      %5894 = vmatprep.mubr.f32.mxu0 %v5608
      %5895 = vmatmul.mubr.f32.gmra.mrb[0].mxu0 %v5495
      %v5896 = vpop.f32.mrb[0].mxu0
      %v5897 = vadd.f32 %v5524, %v5896
      %v5898 = vpop.f32.mrb[0].mxu0
      %5899 = vmatprep.mubr.f32.mxu0 %v5610
      %5900 = vmatmul.mubr.f32.gmra.mrb[0].mxu0 %v5496
      %v5901 = vpop.f32.mrb[0].mxu0
      %v5902 = vadd.f32 %v5524, %v5901
      %v5903 = vpop.f32.mrb[0].mxu0
      %5904 = vmatprep.mubr.f32.mxu0 %v5612
      %5905 = vmatmul.mubr.f32.gmra.mrb[0].mxu0 %v5497
      %v5906 = vpop.f32.mrb[0].mxu0
      %v5907 = vadd.f32 %v5524, %v5906
      %v5908 = vpop.f32.mrb[0].mxu0
      %5909 = vmatprep.mubr.f32.mxu0 %v5614
      %5910 = vmatmul.mubr.f32.gmra.mrb[0].mxu0 %v5498
      %v5911 = vpop.f32.mrb[0].mxu0
      %v5912 = vadd.f32 %v5524, %v5911
      %v5913 = vpop.f32.mrb[0].mxu0
      %5914 = vmatprep.mubr.f32.mxu0 %v5617
      %5915 = vmatmul.mubr.f32.gmra.mrb[0].mxu0 %v5499
      %v5916 = vpop.f32.mrb[0].mxu0
      %v5917 = vadd.f32 %v5524, %v5916
      %v5918 = vpop.f32.mrb[0].mxu0
      %5919 = vmatprep.mubr.f32.mxu0 %v5620
      %5920 = vmatmul.mubr.f32.gmra.mrb[0].mxu0 %v5500
      %v5921 = vpop.f32.mrb[0].mxu0
      %v5922 = vadd.f32 %v5524, %v5921
      %v5923 = vpop.f32.mrb[0].mxu0
      %5924 = vmatprep.mubr.f32.mxu0 %v5623
      %5925 = vmatmul.mubr.f32.gmra.mrb[0].mxu0 %v5501
      %v5926 = vpop.f32.mrb[0].mxu0
      %v5927 = vadd.f32 %v5524, %v5926
      %v5928 = vpop.f32.mrb[0].mxu0
      %5929 = vdwg.mxu0
      %vm5930 = vcmp.ge.f32.partialorder %v5692, 0.0
      %vm5931 = vcmp.ge.f32.partialorder %v5697, 0.0
      %vm5932 = vcmp.ge.f32.partialorder %v5702, 0.0
      %vm5933 = vcmp.ge.f32.partialorder %v5707, 0.0
      %vm5934 = vcmp.ge.f32.partialorder %v5712, 0.0
      %vm5935 = vcmp.ge.f32.partialorder %v5717, 0.0
      %vm5936 = vcmp.ge.f32.partialorder %v5722, 0.0
      %vm5937 = vcmp.ge.f32.partialorder %v5727, 0.0
      %vm5938 = vcmp.ge.f32.partialorder %v5732, 0.0
      %vm5939 = vcmp.ge.f32.partialorder %v5737, 0.0
      %vm5940 = vcmp.ge.f32.partialorder %v5742, 0.0
      %vm5941 = vcmp.ge.f32.partialorder %v5747, 0.0
      %vm5942 = vcmp.ge.f32.partialorder %v5752, 0.0
      %vm5943 = vcmp.ge.f32.partialorder %v5757, 0.0
      %vm5944 = vcmp.ge.f32.partialorder %v5762, 0.0
      %vm5945 = vcmp.ge.f32.partialorder %v5767, 0.0
      %vm5946 = vcmp.ge.f32.partialorder %v5772, 0.0
      %vm5947 = vcmp.ge.f32.partialorder %v5777, 0.0
      %vm5948 = vcmp.ge.f32.partialorder %v5782, 0.0
      %vm5949 = vcmp.ge.f32.partialorder %v5787, 0.0
      %vm5950 = vcmp.ge.f32.partialorder %v5792, 0.0
      %vm5951 = vcmp.ge.f32.partialorder %v5797, 0.0
      %vm5952 = vcmp.ge.f32.partialorder %v5802, 0.0
      %vm5953 = vcmp.ge.f32.partialorder %v5807, 0.0
      %vm5954 = vcmp.ge.f32.partialorder %v5812, 0.0
      %vm5955 = vcmp.ge.f32.partialorder %v5817, 0.0
      %vm5956 = vcmp.ge.f32.partialorder %v5822, 0.0
      %vm5957 = vcmp.ge.f32.partialorder %v5827, 0.0
      %vm5958 = vcmp.ge.f32.partialorder %v5832, 0.0
      %vm5959 = vcmp.ge.f32.partialorder %v5837, 0.0
      %vm5960 = vcmp.ge.f32.partialorder %v5842, 0.0
      %vm5961 = vcmp.ge.f32.partialorder %v5847, 0.0
      %vm5962 = vcmp.ge.f32.partialorder %v5852, 0.0
      %vm5963 = vcmp.ge.f32.partialorder %v5857, 0.0
      %vm5964 = vcmp.ge.f32.partialorder %v5862, 0.0
      %vm5965 = vcmp.ge.f32.partialorder %v5867, 0.0
      %vm5966 = vcmp.ge.f32.partialorder %v5872, 0.0
      %vm5967 = vcmp.ge.f32.partialorder %v5877, 0.0
      %vm5968 = vcmp.ge.f32.partialorder %v5882, 0.0
      %vm5969 = vcmp.ge.f32.partialorder %v5887, 0.0
      %vm5970 = vcmp.ge.f32.partialorder %v5892, 0.0
      %vm5971 = vcmp.ge.f32.partialorder %v5897, 0.0
      %vm5972 = vcmp.ge.f32.partialorder %v5902, 0.0
      %vm5973 = vcmp.ge.f32.partialorder %v5907, 0.0
      %vm5974 = vcmp.ge.f32.partialorder %v5912, 0.0
      %vm5975 = vcmp.ge.f32.partialorder %v5917, 0.0
      %vm5976 = vcmp.ge.f32.partialorder %v5922, 0.0
      %vm5977 = vcmp.ge.f32.partialorder %v5927, 0.0
      %v5978 = vmul.f32 %v5692, 0.2
      %v5979 = vmul.f32 %v5697, 0.2
      %v5980 = vmul.f32 %v5702, 0.2
      %v5981 = vmul.f32 %v5707, 0.2
      %v5982 = vmul.f32 %v5712, 0.2
      %v5983 = vmul.f32 %v5717, 0.2
      %v5984 = vmul.f32 %v5722, 0.2
      %v5985 = vmul.f32 %v5727, 0.2
      %v5986 = vmul.f32 %v5732, 0.2
      %v5987 = vmul.f32 %v5737, 0.2
      %v5988 = vmul.f32 %v5742, 0.2
      %v5989 = vmul.f32 %v5747, 0.2
      %v5990 = vmul.f32 %v5752, 0.2
      %v5991 = vmul.f32 %v5757, 0.2
      %v5992 = vmul.f32 %v5762, 0.2
      %v5993 = vmul.f32 %v5767, 0.2
      %v5994 = vmul.f32 %v5772, 0.2
      %v5995 = vmul.f32 %v5777, 0.2
      %v5996 = vmul.f32 %v5782, 0.2
      %v5997 = vmul.f32 %v5787, 0.2
      %v5998 = vmul.f32 %v5792, 0.2
      %v5999 = vmul.f32 %v5797, 0.2
      %v6000 = vmul.f32 %v5802, 0.2
      %v6001 = vmul.f32 %v5807, 0.2
      %v6002 = vmul.f32 %v5812, 0.2
      %v6003 = vmul.f32 %v5817, 0.2
      %v6004 = vmul.f32 %v5822, 0.2
      %v6005 = vmul.f32 %v5827, 0.2
      %v6006 = vmul.f32 %v5832, 0.2
      %v6007 = vmul.f32 %v5837, 0.2
      %v6008 = vmul.f32 %v5842, 0.2
      %v6009 = vmul.f32 %v5847, 0.2
      %v6010 = vmul.f32 %v5852, 0.2
      %v6011 = vmul.f32 %v5857, 0.2
      %v6012 = vmul.f32 %v5862, 0.2
      %v6013 = vmul.f32 %v5867, 0.2
      %v6014 = vmul.f32 %v5872, 0.2
      %v6015 = vmul.f32 %v5877, 0.2
      %v6016 = vmul.f32 %v5882, 0.2
      %v6017 = vmul.f32 %v5887, 0.2
      %v6018 = vmul.f32 %v5892, 0.2
      %v6019 = vmul.f32 %v5897, 0.2
      %v6020 = vmul.f32 %v5902, 0.2
      %v6021 = vmul.f32 %v5907, 0.2
      %v6022 = vmul.f32 %v5912, 0.2
      %v6023 = vmul.f32 %v5917, 0.2
      %v6024 = vmul.f32 %v5922, 0.2
      %v6025 = vmul.f32 %v5927, 0.2
      %v6026 = vsel %vm5930, %v5692, %v5978
      %v6027 = vsel %vm5931, %v5697, %v5979
      %v6028 = vsel %vm5932, %v5702, %v5980
      %v6029 = vsel %vm5933, %v5707, %v5981
      %v6030 = vsel %vm5934, %v5712, %v5982
      %v6031 = vsel %vm5935, %v5717, %v5983
      %v6032 = vsel %vm5936, %v5722, %v5984
      %v6033 = vsel %vm5937, %v5727, %v5985
      %v6034 = vsel %vm5938, %v5732, %v5986
      %v6035 = vsel %vm5939, %v5737, %v5987
      %v6036 = vsel %vm5940, %v5742, %v5988
      %v6037 = vsel %vm5941, %v5747, %v5989
      %v6038 = vsel %vm5942, %v5752, %v5990
      %v6039 = vsel %vm5943, %v5757, %v5991
      %v6040 = vsel %vm5944, %v5762, %v5992
      %v6041 = vsel %vm5945, %v5767, %v5993
      %v6042 = vsel %vm5946, %v5772, %v5994
      %v6043 = vsel %vm5947, %v5777, %v5995
      %v6044 = vsel %vm5948, %v5782, %v5996
      %v6045 = vsel %vm5949, %v5787, %v5997
      %v6046 = vsel %vm5950, %v5792, %v5998
      %v6047 = vsel %vm5951, %v5797, %v5999
      %v6048 = vsel %vm5952, %v5802, %v6000
      %v6049 = vsel %vm5953, %v5807, %v6001
      %v6050 = vsel %vm5954, %v5812, %v6002
      %v6051 = vsel %vm5955, %v5817, %v6003
      %v6052 = vsel %vm5956, %v5822, %v6004
      %v6053 = vsel %vm5957, %v5827, %v6005
      %v6054 = vsel %vm5958, %v5832, %v6006
      %v6055 = vsel %vm5959, %v5837, %v6007
      %v6056 = vsel %vm5960, %v5842, %v6008
      %v6057 = vsel %vm5961, %v5847, %v6009
      %v6058 = vsel %vm5962, %v5852, %v6010
      %v6059 = vsel %vm5963, %v5857, %v6011
      %v6060 = vsel %vm5964, %v5862, %v6012
      %v6061 = vsel %vm5965, %v5867, %v6013
      %v6062 = vsel %vm5966, %v5872, %v6014
      %v6063 = vsel %vm5967, %v5877, %v6015
      %v6064 = vsel %vm5968, %v5882, %v6016
      %v6065 = vsel %vm5969, %v5887, %v6017
      %v6066 = vsel %vm5970, %v5892, %v6018
      %v6067 = vsel %vm5971, %v5897, %v6019
      %v6068 = vsel %vm5972, %v5902, %v6020
      %v6069 = vsel %vm5973, %v5907, %v6021
      %v6070 = vsel %vm5974, %v5912, %v6022
      %v6071 = vsel %vm5975, %v5917, %v6023
      %v6072 = vsel %vm5976, %v5922, %v6024
      %v6073 = vsel %vm5977, %v5927, %v6025
      %6074 = vst.msk [vmem:[%s286] sm:$0xff] %vm1815, %v6026
      %6075 = vst.msk [vmem:[%s286 + $0x8] sm:$0xff] %vm1815, %v6027
      %6076 = vst.msk [vmem:[%s286 + $0x10] sm:$0xff] %vm1815, %v6028
      %6077 = vst.msk [vmem:[%s286 + $0x18] sm:$0xff] %vm1815, %v6029
      %6078 = vst.msk [vmem:[%s286 + $0x20] sm:$0xff] %vm1815, %v6030
      %6079 = vst.msk [vmem:[%s286 + $0x28] sm:$0xff] %vm1815, %v6031
      %6080 = vst.msk [vmem:[%s286 + $0x30] sm:$0xff] %vm1815, %v6032
      %6081 = vst.msk [vmem:[%s286 + $0x38] sm:$0xff] %vm1815, %v6033
      %6082 = vst.msk [vmem:[%s286 + $0x40] sm:$0xff] %vm1815, %v6034
      %6083 = vst.msk [vmem:[%s286 + $0x48] sm:$0xff] %vm1815, %v6035
      %6084 = vst.msk [vmem:[%s286 + $0x50] sm:$0xff] %vm1815, %v6036
      %6085 = vst.msk [vmem:[%s286 + $0x58] sm:$0xff] %vm1815, %v6037
      %6086 = vst.msk [vmem:[%s286 + $0x60] sm:$0xff] %vm1815, %v6038
      %6087 = vst.msk [vmem:[%s286 + $0x68] sm:$0xff] %vm1815, %v6039
      %6088 = vst.msk [vmem:[%s286 + $0x70] sm:$0xff] %vm1815, %v6040
      %6089 = vst.msk [vmem:[%s286 + $0x78] sm:$0xff] %vm1815, %v6041
      %6090 = vst.msk [vmem:[%s286 + $0x80] sm:$0xff] %vm1815, %v6042
      %6091 = vst.msk [vmem:[%s286 + $0x88] sm:$0xff] %vm1815, %v6043
      %6092 = vst.msk [vmem:[%s286 + $0x90] sm:$0xff] %vm1815, %v6044
      %6093 = vst.msk [vmem:[%s286 + $0x98] sm:$0xff] %vm1815, %v6045
      %6094 = vst.msk [vmem:[%s286 + $0xa0] sm:$0xff] %vm1815, %v6046
      %6095 = vst.msk [vmem:[%s286 + $0xa8] sm:$0xff] %vm1815, %v6047
      %6096 = vst.msk [vmem:[%s286 + $0xb0] sm:$0xff] %vm1815, %v6048
      %6097 = vst.msk [vmem:[%s286 + $0xb8] sm:$0xff] %vm1815, %v6049
      %6098 = vst.msk [vmem:[%s286 + $0xc0] sm:$0xff] %vm1815, %v6050
      %6099 = vst.msk [vmem:[%s286 + $0xc8] sm:$0xff] %vm1815, %v6051
      %6100 = vst.msk [vmem:[%s286 + $0xd0] sm:$0xff] %vm1815, %v6052
      %6101 = vst.msk [vmem:[%s286 + $0xd8] sm:$0xff] %vm1815, %v6053
      %6102 = vst.msk [vmem:[%s286 + $0xe0] sm:$0xff] %vm1815, %v6054
      %6103 = vst.msk [vmem:[%s286 + $0xe8] sm:$0xff] %vm1815, %v6055
      %6104 = vst.msk [vmem:[%s286 + $0xf0] sm:$0xff] %vm1815, %v6056
      %6105 = vst.msk [vmem:[%s286 + $0xf8] sm:$0xff] %vm1815, %v6057
      %6106 = vst.msk [vmem:[%s286 + $0x100] sm:$0xff] %vm1815, %v6058
      %6107 = vst.msk [vmem:[%s286 + $0x108] sm:$0xff] %vm1815, %v6059
      %6108 = vst.msk [vmem:[%s286 + $0x110] sm:$0xff] %vm1815, %v6060
      %6109 = vst.msk [vmem:[%s286 + $0x118] sm:$0xff] %vm1815, %v6061
      %6110 = vst.msk [vmem:[%s286 + $0x120] sm:$0xff] %vm1815, %v6062
      %6111 = vst.msk [vmem:[%s286 + $0x128] sm:$0xff] %vm1815, %v6063
      %6112 = vst.msk [vmem:[%s286 + $0x130] sm:$0xff] %vm1815, %v6064
      %6113 = vst.msk [vmem:[%s286 + $0x138] sm:$0xff] %vm1815, %v6065
      %6114 = vst.msk [vmem:[%s286 + $0x140] sm:$0xff] %vm1815, %v6066
      %6115 = vst.msk [vmem:[%s286 + $0x148] sm:$0xff] %vm1815, %v6067
      %6116 = vst.msk [vmem:[%s286 + $0x150] sm:$0xff] %vm1815, %v6068
      %6117 = vst.msk [vmem:[%s286 + $0x158] sm:$0xff] %vm1815, %v6069
      %6118 = vst.msk [vmem:[%s286 + $0x160] sm:$0xff] %vm1815, %v6070
      %6119 = vst.msk [vmem:[%s286 + $0x168] sm:$0xff] %vm1815, %v6071
      %6120 = vst.msk [vmem:[%s286 + $0x170] sm:$0xff] %vm1815, %v6072
      %6121 = vst.msk [vmem:[%s286 + $0x178] sm:$0xff] %vm1815, %v6073
      %v6122 = vld [vmem:[%s5] sm:$0xff]
      %v6123 = vld [vmem:[%s5 + $0x8] sm:$0xff]
      %v6124 = vld [vmem:[%s5 + $0x10] sm:$0xff]
      %v6125 = vld [vmem:[%s5 + $0x18] sm:$0xff]
      %v6126 = vld [vmem:[%s5 + $0x20] sm:$0xff]
      %v6127 = vld [vmem:[%s5 + $0x28] sm:$0xff]
      %v6128 = vld [vmem:[%s5 + $0x30] sm:$0xff]
      %v6129 = vld [vmem:[%s5 + $0x38] sm:$0xff]
      %v6130 = vld [vmem:[%s5 + $0x40] sm:$0xff]
      %v6131 = vld [vmem:[%s5 + $0x48] sm:$0xff]
      %v6132 = vld [vmem:[%s5 + $0x50] sm:$0xff]
      %v6133 = vld [vmem:[%s5 + $0x58] sm:$0xff]
      %v6134 = vld [vmem:[%s5 + $0x60] sm:$0xff]
      %v6135 = vld [vmem:[%s5 + $0x68] sm:$0xff]
      %v6136 = vld [vmem:[%s5 + $0x70] sm:$0xff]
      %v6137 = vld [vmem:[%s5 + $0x78] sm:$0xff]
      %v6138 = vld [vmem:[%s5 + $0x80] sm:$0xff]
      %v6139 = vld [vmem:[%s5 + $0x88] sm:$0xff]
      %v6140 = vld [vmem:[%s5 + $0x90] sm:$0xff]
      %v6141 = vld [vmem:[%s5 + $0x98] sm:$0xff]
      %v6142 = vld [vmem:[%s5 + $0xa0] sm:$0xff]
      %v6143 = vld [vmem:[%s5 + $0xa8] sm:$0xff]
      %v6144 = vld [vmem:[%s5 + $0xb0] sm:$0xff]
      %v6145 = vld [vmem:[%s5 + $0xb8] sm:$0xff]
      %v6146 = vld [vmem:[%s5 + $0xc0] sm:$0xff]
      %v6147 = vld [vmem:[%s5 + $0xc8] sm:$0xff]
      %v6148 = vld [vmem:[%s5 + $0xd0] sm:$0xff]
      %v6149 = vld [vmem:[%s5 + $0xd8] sm:$0xff]
      %v6150 = vld [vmem:[%s5 + $0xe0] sm:$0xff]
      %v6151 = vld [vmem:[%s5 + $0xe8] sm:$0xff]
      %v6152 = vld [vmem:[%s5 + $0xf0] sm:$0xff]
      %v6153 = vld [vmem:[%s5 + $0xf8] sm:$0xff]
      %v6154 = vld [vmem:[%s5 + $0x100] sm:$0xff]
      %v6155 = vld [vmem:[%s5 + $0x108] sm:$0xff]
      %v6156 = vld [vmem:[%s5 + $0x110] sm:$0xff]
      %v6157 = vld [vmem:[%s5 + $0x118] sm:$0xff]
      %v6158 = vld [vmem:[%s5 + $0x120] sm:$0xff]
      %v6159 = vld [vmem:[%s5 + $0x128] sm:$0xff]
      %v6160 = vld [vmem:[%s5 + $0x130] sm:$0xff]
      %v6161 = vld [vmem:[%s5 + $0x138] sm:$0xff]
      %v6162 = vld [vmem:[%s5 + $0x140] sm:$0xff]
      %v6163 = vld [vmem:[%s5 + $0x148] sm:$0xff]
      %v6164 = vld [vmem:[%s5 + $0x150] sm:$0xff]
      %v6165 = vld [vmem:[%s5 + $0x158] sm:$0xff]
      %v6166 = vld [vmem:[%s5 + $0x160] sm:$0xff]
      %v6167 = vld [vmem:[%s5 + $0x168] sm:$0xff]
      %v6168 = vld [vmem:[%s5 + $0x170] sm:$0xff]
      %v6169 = vld [vmem:[%s5 + $0x178] sm:$0xff]
      %6170 = vmatprep.subr.mxu0 0.0
      %6171 = vmatpush1.msra.mxu0 %v6026
      %6172 = vmatprep.subr.mxu0 0.0
      %6173 = vmatpush1.msra.mxu0 %v6027
      %6174 = vmatprep.subr.mxu0 0.0
      %6175 = vmatpush1.msra.mxu0 %v6028
      %6176 = vmatprep.subr.mxu0 0.0
      %6177 = vmatpush1.msra.mxu0 %v6029
      %6178 = vmatprep.subr.mxu0 0.0
      %6179 = vmatpush1.msra.mxu0 %v6030
      %6180 = vmatprep.subr.mxu0 0.0
      %6181 = vmatpush1.msra.mxu0 %v6031
      %6182 = vmatprep.subr.mxu0 0.0
      %6183 = vmatpush1.msra.mxu0 %v6032
      %6184 = vmatprep.subr.mxu0 0.0
      %6185 = vmatpush1.msra.mxu0 %v6033
      %6186 = vmatprep.subr.mxu0 0.0
      %6187 = vmatpush1.msra.mxu0 %v6034
      %6188 = vmatprep.subr.mxu0 0.0
      %6189 = vmatpush1.msra.mxu0 %v6035
      %6190 = vmatprep.subr.mxu0 0.0
      %6191 = vmatpush1.msra.mxu0 %v6036
      %6192 = vmatprep.subr.mxu0 0.0
      %6193 = vmatpush1.msra.mxu0 %v6037
      %6194 = vmatprep.subr.mxu0 0.0
      %6195 = vmatpush1.msra.mxu0 %v6038
      %6196 = vmatprep.subr.mxu0 0.0
      %6197 = vmatpush1.msra.mxu0 %v6039
      %6198 = vmatprep.subr.mxu0 0.0
      %6199 = vmatpush1.msra.mxu0 %v6040
      %6200 = vmatprep.subr.mxu0 0.0
      %6201 = vmatpush1.msra.mxu0 %v6041
      %6202 = vmatprep.subr.mxu0 0.0
      %6203 = vmatpush1.msra.mxu0 %v6042
      %6204 = vmatprep.subr.mxu0 0.0
      %6205 = vmatpush1.msra.mxu0 %v6043
      %6206 = vmatprep.subr.mxu0 0.0
      %6207 = vmatpush1.msra.mxu0 %v6044
      %6208 = vmatprep.subr.mxu0 0.0
      %6209 = vmatpush1.msra.mxu0 %v6045
      %6210 = vmatprep.subr.mxu0 0.0
      %6211 = vmatpush1.msra.mxu0 %v6046
      %6212 = vmatprep.subr.mxu0 0.0
      %6213 = vmatpush1.msra.mxu0 %v6047
      %6214 = vmatprep.subr.mxu0 0.0
      %6215 = vmatpush1.msra.mxu0 %v6048
      %6216 = vmatprep.subr.mxu0 0.0
      %6217 = vmatpush1.msra.mxu0 %v6049
      %6218 = vmatprep.subr.mxu0 0.0
      %6219 = vmatpush1.msra.mxu0 %v6050
      %6220 = vmatprep.subr.mxu0 0.0
      %6221 = vmatpush1.msra.mxu0 %v6051
      %6222 = vmatprep.subr.mxu0 0.0
      %6223 = vmatpush1.msra.mxu0 %v6052
      %6224 = vmatprep.subr.mxu0 0.0
      %6225 = vmatpush1.msra.mxu0 %v6053
      %6226 = vmatprep.subr.mxu0 0.0
      %6227 = vmatpush1.msra.mxu0 %v6054
      %6228 = vmatprep.subr.mxu0 0.0
      %6229 = vmatpush1.msra.mxu0 %v6055
      %6230 = vmatprep.subr.mxu0 0.0
      %6231 = vmatpush1.msra.mxu0 %v6056
      %6232 = vmatprep.subr.mxu0 0.0
      %6233 = vmatpush1.msra.mxu0 %v6057
      %6234 = vmatprep.mubr.f32.mxu0 %v6123
      %6235 = vmatmul.mubr.f32.gmra.mrb[0].mxu0 %v6122
      %v6236 = vpop.f32.mrb[0].mxu0
      %v6237 = vadd.f32 0.0, %v6236
      %v6238 = vpop.f32.mrb[0].mxu0
      %6239 = vmatprep.mubr.f32.mxu0 %v6126
      %6240 = vmatmul.mubr.f32.gmra.mrb[0].mxu0 %v6125
      %v6241 = vpop.f32.mrb[0].mxu0
      %v6242 = vadd.f32 0.0, %v6241
      %v6243 = vpop.f32.mrb[0].mxu0
      %6244 = vmatprep.mubr.f32.mxu0 %v6129
      %6245 = vmatmul.mubr.f32.gmra.mrb[0].mxu0 %v6128
      %v6246 = vpop.f32.mrb[0].mxu0
      %v6247 = vadd.f32 0.0, %v6246
      %v6248 = vpop.f32.mrb[0].mxu0
      %6249 = vmatprep.mubr.f32.mxu0 %v6132
      %6250 = vmatmul.mubr.f32.gmra.mrb[0].mxu0 %v6131
      %v6251 = vpop.f32.mrb[0].mxu0
      %v6252 = vadd.f32 0.0, %v6251
      %v6253 = vpop.f32.mrb[0].mxu0
      %6254 = vmatprep.mubr.f32.mxu0 %v6135
      %6255 = vmatmul.mubr.f32.gmra.mrb[0].mxu0 %v6134
      %v6256 = vpop.f32.mrb[0].mxu0
      %v6257 = vadd.f32 0.0, %v6256
      %v6258 = vpop.f32.mrb[0].mxu0
      %6259 = vmatprep.mubr.f32.mxu0 %v6138
      %6260 = vmatmul.mubr.f32.gmra.mrb[0].mxu0 %v6137
      %v6261 = vpop.f32.mrb[0].mxu0
      %v6262 = vadd.f32 0.0, %v6261
      %v6263 = vpop.f32.mrb[0].mxu0
      %6264 = vmatprep.mubr.f32.mxu0 %v6141
      %6265 = vmatmul.mubr.f32.gmra.mrb[0].mxu0 %v6140
      %v6266 = vpop.f32.mrb[0].mxu0
      %v6267 = vadd.f32 0.0, %v6266
      %v6268 = vpop.f32.mrb[0].mxu0
      %6269 = vmatprep.mubr.f32.mxu0 %v6144
      %6270 = vmatmul.mubr.f32.gmra.mrb[0].mxu0 %v6143
      %v6271 = vpop.f32.mrb[0].mxu0
      %v6272 = vadd.f32 0.0, %v6271
      %v6273 = vpop.f32.mrb[0].mxu0
      %6274 = vmatprep.mubr.f32.mxu0 %v6147
      %6275 = vmatmul.mubr.f32.gmra.mrb[0].mxu0 %v6146
      %v6276 = vpop.f32.mrb[0].mxu0
      %v6277 = vadd.f32 0.0, %v6276
      %v6278 = vpop.f32.mrb[0].mxu0
      %6279 = vmatprep.mubr.f32.mxu0 %v6150
      %6280 = vmatmul.mubr.f32.gmra.mrb[0].mxu0 %v6149
      %v6281 = vpop.f32.mrb[0].mxu0
      %v6282 = vadd.f32 0.0, %v6281
      %v6283 = vpop.f32.mrb[0].mxu0
      %6284 = vmatprep.mubr.f32.mxu0 %v6153
      %6285 = vmatmul.mubr.f32.gmra.mrb[0].mxu0 %v6152
      %v6286 = vpop.f32.mrb[0].mxu0
      %v6287 = vadd.f32 0.0, %v6286
      %v6288 = vpop.f32.mrb[0].mxu0
      %6289 = vmatprep.mubr.f32.mxu0 %v6156
      %6290 = vmatmul.mubr.f32.gmra.mrb[0].mxu0 %v6155
      %v6291 = vpop.f32.mrb[0].mxu0
      %v6292 = vadd.f32 0.0, %v6291
      %v6293 = vpop.f32.mrb[0].mxu0
      %6294 = vmatprep.mubr.f32.mxu0 %v6159
      %6295 = vmatmul.mubr.f32.gmra.mrb[0].mxu0 %v6158
      %v6296 = vpop.f32.mrb[0].mxu0
      %v6297 = vadd.f32 0.0, %v6296
      %v6298 = vpop.f32.mrb[0].mxu0
      %6299 = vmatprep.mubr.f32.mxu0 %v6162
      %6300 = vmatmul.mubr.f32.gmra.mrb[0].mxu0 %v6161
      %v6301 = vpop.f32.mrb[0].mxu0
      %v6302 = vadd.f32 0.0, %v6301
      %v6303 = vpop.f32.mrb[0].mxu0
      %6304 = vmatprep.mubr.f32.mxu0 %v6165
      %6305 = vmatmul.mubr.f32.gmra.mrb[0].mxu0 %v6164
      %v6306 = vpop.f32.mrb[0].mxu0
      %v6307 = vadd.f32 0.0, %v6306
      %v6308 = vpop.f32.mrb[0].mxu0
      %6309 = vmatprep.mubr.f32.mxu0 %v6168
      %6310 = vmatmul.mubr.f32.gmra.mrb[0].mxu0 %v6167
      %v6311 = vpop.f32.mrb[0].mxu0
      %v6312 = vadd.f32 0.0, %v6311
      %v6313 = vpop.f32.mrb[0].mxu0
      %6314 = vdwg.mxu0
      %6315 = vmatprep.subr.mxu0 0.0
      %6316 = vmatpush1.msra.mxu0 %v6058
      %6317 = vmatprep.subr.mxu0 0.0
      %6318 = vmatpush1.msra.mxu0 %v6059
      %6319 = vmatprep.subr.mxu0 0.0
      %6320 = vmatpush1.msra.mxu0 %v6060
      %6321 = vmatprep.subr.mxu0 0.0
      %6322 = vmatpush1.msra.mxu0 %v6061
      %6323 = vmatprep.subr.mxu0 0.0
      %6324 = vmatpush1.msra.mxu0 %v6062
      %6325 = vmatprep.subr.mxu0 0.0
      %6326 = vmatpush1.msra.mxu0 %v6063
      %6327 = vmatprep.subr.mxu0 0.0
      %6328 = vmatpush1.msra.mxu0 %v6064
      %6329 = vmatprep.subr.mxu0 0.0
      %6330 = vmatpush1.msra.mxu0 %v6065
      %6331 = vmatprep.subr.mxu0 0.0
      %6332 = vmatpush1.msra.mxu0 %v6066
      %6333 = vmatprep.subr.mxu0 0.0
      %6334 = vmatpush1.msra.mxu0 %v6067
      %6335 = vmatprep.subr.mxu0 0.0
      %6336 = vmatpush1.msra.mxu0 %v6068
      %6337 = vmatprep.subr.mxu0 0.0
      %6338 = vmatpush1.msra.mxu0 %v6069
      %6339 = vmatprep.subr.mxu0 0.0
      %6340 = vmatpush1.msra.mxu0 %v6070
      %6341 = vmatprep.subr.mxu0 0.0
      %6342 = vmatpush1.msra.mxu0 %v6071
      %6343 = vmatprep.subr.mxu0 0.0
      %6344 = vmatpush1.msra.mxu0 %v6072
      %6345 = vmatprep.subr.mxu0 0.0
      %6346 = vmatpush1.msra.mxu0 %v6073
      %6347 = vmatprep.subr.mxu0 0.0
      %6348 = vmatpush1.msra.mxu0 0.0
      %6349 = vmatprep.subr.mxu0 0.0
      %6350 = vmatpush1.msra.mxu0 0.0
      %6351 = vmatprep.subr.mxu0 0.0
      %6352 = vmatpush1.msra.mxu0 0.0
      %6353 = vmatprep.subr.mxu0 0.0
      %6354 = vmatpush1.msra.mxu0 0.0
      %6355 = vmatprep.subr.mxu0 0.0
      %6356 = vmatpush1.msra.mxu0 0.0
      %6357 = vmatprep.subr.mxu0 0.0
      %6358 = vmatpush1.msra.mxu0 0.0
      %6359 = vmatprep.subr.mxu0 0.0
      %6360 = vmatpush1.msra.mxu0 0.0
      %6361 = vmatprep.subr.mxu0 0.0
      %6362 = vmatpush1.msra.mxu0 0.0
      %6363 = vmatprep.subr.mxu0 0.0
      %6364 = vmatpush1.msra.mxu0 0.0
      %6365 = vmatprep.subr.mxu0 0.0
      %6366 = vmatpush1.msra.mxu0 0.0
      %6367 = vmatprep.subr.mxu0 0.0
      %6368 = vmatpush1.msra.mxu0 0.0
      %6369 = vmatprep.subr.mxu0 0.0
      %6370 = vmatpush1.msra.mxu0 0.0
      %6371 = vmatprep.subr.mxu0 0.0
      %6372 = vmatpush1.msra.mxu0 0.0
      %6373 = vmatprep.subr.mxu0 0.0
      %6374 = vmatpush1.msra.mxu0 0.0
      %6375 = vmatprep.subr.mxu0 0.0
      %6376 = vmatpush1.msra.mxu0 0.0
      %6377 = vmatprep.subr.mxu0 0.0
      %6378 = vmatpush1.msra.mxu0 0.0
      %6379 = vmatprep.mubr.f32.mxu0 0.0
      %6380 = vmatmul.mubr.f32.gmra.mrb[0].mxu0 %v6124
      %v6381 = vpop.f32.mrb[0].mxu0
      %v6382 = vadd.f32 %v6237, %v6381
      %v6383 = vpop.f32.mrb[0].mxu0
      %6384 = vmatprep.mubr.f32.mxu0 0.0
      %6385 = vmatmul.mubr.f32.gmra.mrb[0].mxu0 %v6127
      %v6386 = vpop.f32.mrb[0].mxu0
      %v6387 = vadd.f32 %v6242, %v6386
      %v6388 = vpop.f32.mrb[0].mxu0
      %6389 = vmatprep.mubr.f32.mxu0 0.0
      %6390 = vmatmul.mubr.f32.gmra.mrb[0].mxu0 %v6130
      %v6391 = vpop.f32.mrb[0].mxu0
      %v6392 = vadd.f32 %v6247, %v6391
      %v6393 = vpop.f32.mrb[0].mxu0
      %6394 = vmatprep.mubr.f32.mxu0 0.0
      %6395 = vmatmul.mubr.f32.gmra.mrb[0].mxu0 %v6133
      %v6396 = vpop.f32.mrb[0].mxu0
      %v6397 = vadd.f32 %v6252, %v6396
      %v6398 = vpop.f32.mrb[0].mxu0
      %6399 = vmatprep.mubr.f32.mxu0 0.0
      %6400 = vmatmul.mubr.f32.gmra.mrb[0].mxu0 %v6136
      %v6401 = vpop.f32.mrb[0].mxu0
      %v6402 = vadd.f32 %v6257, %v6401
      %v6403 = vpop.f32.mrb[0].mxu0
      %6404 = vmatprep.mubr.f32.mxu0 0.0
      %6405 = vmatmul.mubr.f32.gmra.mrb[0].mxu0 %v6139
      %v6406 = vpop.f32.mrb[0].mxu0
      %v6407 = vadd.f32 %v6262, %v6406
      %v6408 = vpop.f32.mrb[0].mxu0
      %6409 = vmatprep.mubr.f32.mxu0 0.0
      %6410 = vmatmul.mubr.f32.gmra.mrb[0].mxu0 %v6142
      %v6411 = vpop.f32.mrb[0].mxu0
      %v6412 = vadd.f32 %v6267, %v6411
      %v6413 = vpop.f32.mrb[0].mxu0
      %6414 = vmatprep.mubr.f32.mxu0 0.0
      %6415 = vmatmul.mubr.f32.gmra.mrb[0].mxu0 %v6145
      %v6416 = vpop.f32.mrb[0].mxu0
      %v6417 = vadd.f32 %v6272, %v6416
      %v6418 = vpop.f32.mrb[0].mxu0
      %6419 = vmatprep.mubr.f32.mxu0 0.0
      %6420 = vmatmul.mubr.f32.gmra.mrb[0].mxu0 %v6148
      %v6421 = vpop.f32.mrb[0].mxu0
      %v6422 = vadd.f32 %v6277, %v6421
      %v6423 = vpop.f32.mrb[0].mxu0
      %6424 = vmatprep.mubr.f32.mxu0 0.0
      %6425 = vmatmul.mubr.f32.gmra.mrb[0].mxu0 %v6151
      %v6426 = vpop.f32.mrb[0].mxu0
      %v6427 = vadd.f32 %v6282, %v6426
      %v6428 = vpop.f32.mrb[0].mxu0
      %6429 = vmatprep.mubr.f32.mxu0 0.0
      %6430 = vmatmul.mubr.f32.gmra.mrb[0].mxu0 %v6154
      %v6431 = vpop.f32.mrb[0].mxu0
      %v6432 = vadd.f32 %v6287, %v6431
      %v6433 = vpop.f32.mrb[0].mxu0
      %6434 = vmatprep.mubr.f32.mxu0 0.0
      %6435 = vmatmul.mubr.f32.gmra.mrb[0].mxu0 %v6157
      %v6436 = vpop.f32.mrb[0].mxu0
      %v6437 = vadd.f32 %v6292, %v6436
      %v6438 = vpop.f32.mrb[0].mxu0
      %6439 = vmatprep.mubr.f32.mxu0 0.0
      %6440 = vmatmul.mubr.f32.gmra.mrb[0].mxu0 %v6160
      %v6441 = vpop.f32.mrb[0].mxu0
      %v6442 = vadd.f32 %v6297, %v6441
      %v6443 = vpop.f32.mrb[0].mxu0
      %6444 = vmatprep.mubr.f32.mxu0 0.0
      %6445 = vmatmul.mubr.f32.gmra.mrb[0].mxu0 %v6163
      %v6446 = vpop.f32.mrb[0].mxu0
      %v6447 = vadd.f32 %v6302, %v6446
      %v6448 = vpop.f32.mrb[0].mxu0
      %6449 = vmatprep.mubr.f32.mxu0 0.0
      %6450 = vmatmul.mubr.f32.gmra.mrb[0].mxu0 %v6166
      %v6451 = vpop.f32.mrb[0].mxu0
      %v6452 = vadd.f32 %v6307, %v6451
      %v6453 = vpop.f32.mrb[0].mxu0
      %6454 = vmatprep.mubr.f32.mxu0 0.0
      %6455 = vmatmul.mubr.f32.gmra.mrb[0].mxu0 %v6169
      %v6456 = vpop.f32.mrb[0].mxu0
      %v6457 = vadd.f32 %v6312, %v6456
      %v6458 = vpop.f32.mrb[0].mxu0
      %6459 = vdwg.mxu0
      %6460 = vst.msk [vmem:[%s291] sm:$0xff] %vm1815, 0.0
      %6461 = vst.msk [vmem:[%s291 + $0x8] sm:$0xff] %vm1815, 0.0
      %6462 = vst.msk [vmem:[%s291 + $0x10] sm:$0xff] %vm1815, %v6382
      %6463 = vst.msk [vmem:[%s291 + $0x18] sm:$0xff] %vm1815, %v6387
      %6464 = vst.msk [vmem:[%s291 + $0x20] sm:$0xff] %vm1815, %v6392
      %6465 = vst.msk [vmem:[%s291 + $0x28] sm:$0xff] %vm1815, %v6397
      %6466 = vst.msk [vmem:[%s291 + $0x30] sm:$0xff] %vm1815, %v6402
      %6467 = vst.msk [vmem:[%s291 + $0x38] sm:$0xff] %vm1815, %v6407
      %6468 = vst.msk [vmem:[%s291 + $0x40] sm:$0xff] %vm1815, %v6412
      %6469 = vst.msk [vmem:[%s291 + $0x48] sm:$0xff] %vm1815, %v6417
      %6470 = vst.msk [vmem:[%s291 + $0x50] sm:$0xff] %vm1815, %v6422
      %6471 = vst.msk [vmem:[%s291 + $0x58] sm:$0xff] %vm1815, %v6427
      %6472 = vst.msk [vmem:[%s291 + $0x60] sm:$0xff] %vm1815, %v6432
      %6473 = vst.msk [vmem:[%s291 + $0x68] sm:$0xff] %vm1815, %v6437
      %6474 = vst.msk [vmem:[%s291 + $0x70] sm:$0xff] %vm1815, %v6442
      %6475 = vst.msk [vmem:[%s291 + $0x78] sm:$0xff] %vm1815, %v6447
      %6476 = vst.msk [vmem:[%s291 + $0x80] sm:$0xff] %vm1815, %v6452
      %6477 = vst.msk [vmem:[%s291 + $0x88] sm:$0xff] %vm1815, %v6457
      %6478 = vst.msk [vmem:[%s291 + $0x90] sm:$0xff] %vm1815, 0.0
      %6479 = vst.msk [vmem:[%s291 + $0x98] sm:$0xff] %vm1815, 0.0
      %6480 = vst.msk [vmem:[%s291 + $0xa0] sm:$0xff] %vm1815, 0.0
      %6481 = vst.msk [vmem:[%s291 + $0xa8] sm:$0xff] %vm1815, 0.0
      %p6482 = scmp.lt.s32.totalorder %s19, 1
      %s6483 = scalar_select %p6482, %s19, 1
      %s6484 = smul.addr %s6483, 48
      %s6485 = smul.addr %s6484, 8
      %s6486 = scalar_lea.vmem %s6, %s6485
      %p6487 = scmp.lt.s32.totalorder %s19, 1
      %s6488 = scalar_select %p6487, %s19, 1
      %s6489 = smul.addr %s6488, 22
      %s6490 = smul.addr %s6489, 8
      %s6491 = scalar_lea.vmem %s7, %s6490
      // Predicated region
      $region45: #{tpu_custom_call.1} parent=43 // pred_check
        %p6492 = pneg %p168
      $region46: #{tpu_custom_call.1} parent=43 // pred_check_branch
        %6494 = sbr.rel (%p6492) target = $region48
      $region47: #{tpu_custom_call.1} parent=43 // pred_region
        _
      $region48: #{tpu_custom_call.1} parent=43 // pred_fallthru
        _
      // Predicated region
      $region49: #{tpu_custom_call.1} parent=43 // pred_check
        %p6495 = pneg %p194
      $region50: #{tpu_custom_call.1} parent=43 // pred_check_branch
        %6497 = sbr.rel (%p6495) target = $region52
      $region51: #{tpu_custom_call.1} parent=43 // pred_region
        _
      $region52: #{tpu_custom_call.1} parent=43 // pred_fallthru
        _
    $region44: #{tpu_custom_call.1} parent=5 // pred_fallthru
      _
    %p6498 = scmp.le.s32.totalorder 2, %s14
    // Predicated region
    $region53: #{tpu_custom_call.1} parent=5 // pred_check
      %p6499 = pneg %p6498
    $region54: #{tpu_custom_call.1} parent=5 // pred_check_branch
      %6501 = sbr.rel (%p6499) target = $region56
    $region55: #{tpu_custom_call.1} parent=5 // pred_region
      %s6502 = ssub.s32 %s14, 2
      // Predicated region
      $region57: #{tpu_custom_call.1} parent=55 // pred_check
        %p6503 = pneg %p174
      $region58: #{tpu_custom_call.1} parent=55 // pred_check_branch
        %6505 = sbr.rel (%p6503) target = $region60
      $region59: #{tpu_custom_call.1} parent=55 // pred_region
        %p6506 = scmp.lt.s32.totalorder %s20, 1
        %s6507 = scalar_select %p6506, %s20, 1
        %s6508 = smul.addr %s6507, 48
        %s6509 = smul.addr %s6508, 8
        %s6510 = scalar_lea.vmem %s6, %s6509
      $region60: #{tpu_custom_call.1} parent=55 // pred_fallthru
        _
      // Predicated region
      $region61: #{tpu_custom_call.1} parent=55 // pred_check
        %p6511 = pneg %p200
      $region62: #{tpu_custom_call.1} parent=55 // pred_check_branch
        %6513 = sbr.rel (%p6511) target = $region64
      $region63: #{tpu_custom_call.1} parent=55 // pred_region
        %p6514 = scmp.lt.s32.totalorder %s20, 1
        %s6515 = scalar_select %p6514, %s20, 1
        %s6516 = smul.addr %s6515, 22
        %s6517 = smul.addr %s6516, 8
        %s6518 = scalar_lea.vmem %s7, %s6517
      $region64: #{tpu_custom_call.1} parent=55 // pred_fallthru
        _
    $region56: #{tpu_custom_call.1} parent=5 // pred_fallthru
      _
  $region6: #{tpu_custom_call.1} parent=0 // loop_footer
    %s18 = sadd.s32 1, %s14
  $region7: #{tpu_custom_call.1} parent=0 // loop_footer_branch
    %13 = sbr.rel target = $region3
  $region8: #{tpu_custom_call.1} parent=0 // loop_exit
    _

</llo_original>
